<compile_context>
chip_gen: v7x
topology: tpu7x:2x2x1
jax: 0.10.0
libtpu: 0.0.40
codegen_flags: <defaults>
</compile_context>

<pallas_src>
import jax
import jax.numpy as jnp
import numpy as np
from jax.experimental import pallas as pl
from jax.experimental.pallas import tpu as pltpu

C_OUT = 20
K = 5
H_IN = 28
H_DS = 14                       # after bilinear x0.5 downsample
H_CONV = H_DS - K + 1           # 10
H_POOL = H_CONV // 2            # 5
FLAT = C_OUT * H_POOL * H_POOL  # 500
HID = 64
EPS = 1e-5

IMG = H_IN * H_IN               # 784 input lanes
NPOOL = 512                     # one (pi,pj) parity block: lane = p*100 + q*20 + c, 500 -> 512 pad
NCONV = 4 * NPOOL               # 2048 conv-output lanes: pi*1024 + pj*512 + p*100 + q*20 + c


def _elu(v):
    # ELU(alpha=1): x if x>0 else exp(x)-1  (clamp arg of exp for the untaken branch)
    return jnp.where(v > 0.0, v, jnp.exp(jnp.minimum(v, 0.0)) - 1.0)


def encoder_kernel(x_ref, wc_ref, bc_ref, s2_ref, t2_ref,
                   w1_ref, b1_ref, w2_ref, b2_ref, out_ref):
    # ---- Downsample(0.5, bilinear) + Dropout2d(eval identity) + Conv2d(1,20,5):
    #      fully folded host-side into one dense (784, 2048) bf16 operator -> single MXU matmul.
    # TODO(synk): training-mode Dropout/Dropout2d stochastic masking not implemented (eval only).
    x = x_ref[...].astype(jnp.bfloat16)                                    # (bt, 784)
    h = jnp.dot(x, wc_ref[...], preferred_element_type=jnp.float32) + bc_ref[...]   # (bt, 2048)

    # ---- ELU + BatchNorm2d(20) (eval: folded per-channel affine tiled onto the lane layout).
    h = _elu(h) * s2_ref[...] + t2_ref[...]

    # ---- MaxPool2d(2,2): the four pool candidates of each (p,q,c) live in four 128-aligned
    #      512-lane blocks -> three lane-aligned VPU maxes, no relayout.
    hp = jnp.maximum(jnp.maximum(h[:, 0 * NPOOL:1 * NPOOL], h[:, 1 * NPOOL:2 * NPOOL]),
                     jnp.maximum(h[:, 2 * NPOOL:3 * NPOOL], h[:, 3 * NPOOL:4 * NPOOL]))

    # ---- Flatten + Dropout(0.5) (eval identity) + Linear(500,64): single K=512 matmul
    #      (the 12 dead lanes per block carry zero weights).
    y1 = jnp.dot(hp.astype(jnp.bfloat16), w1_ref[...],
                 preferred_element_type=jnp.float32) + b1_ref[...]
    y1 = _elu(y1)

    # ---- BatchNorm1d(64) folded into Linear(64, latent) host-side; Sigmoid; lane-dense store.
    y2 = jnp.dot(y1.astype(jnp.bfloat16), w2_ref[...],
                 preferred_element_type=jnp.float32) + b2_ref[...]
    out_ref[...] = jax.nn.sigmoid(y2)


def encoder_forward(x, kernel_params, latent_size, *, b_tile=256):
    B = x.shape[0]
    # Free HBM-level reshape: NCHW [B,1,28,28] -> lane-dense [B, 784] (r*28 + c ordering).
    x2d = x.reshape(B, IMG).astype(jnp.float32)

    lat_pad = kernel_params[-1].shape[1]            # padded output lanes (multiple of 128)

    # Sublane-aligned batch tile; aim for >=2 grid steps when B allows (v7x dual-TC), and keep
    # per-step VMEM a few MB (safe for v7x's 64 MiB).
    bt = min(b_tile, max(8, pl.cdiv(pl.cdiv(B, 2), 8) * 8))
    b_pad = pl.cdiv(B, bt) * bt
    if b_pad != B:
        x2d = jnp.pad(x2d, ((0, b_pad - B), (0, 0)))
    nb = b_pad // bt

    def w_spec(a):
        n = a.ndim
        return pl.BlockSpec(a.shape, lambda i, n=n: (0,) * n)

    weights = kernel_params

    out = pl.pallas_call(
        encoder_kernel,
        out_shape=jax.ShapeDtypeStruct((b_pad, lat_pad), jnp.float32),
        grid=(nb,),
        in_specs=[pl.BlockSpec((bt, IMG), lambda i: (i, 0))]
                 + [w_spec(a) for a in weights],
        out_specs=pl.BlockSpec((bt, lat_pad), lambda i: (i, 0)),
        compiler_params=pltpu.CompilerParams(
            dimension_semantics=("parallel",),
            vmem_limit_bytes=32 * 1024 * 1024),
    )(x2d, *weights)
    return out[:B, :latent_size]


def init_params(key, latent_size):
    """Deterministic synthetic parameters (torch layouts) + kernel-layout repack (host glue)."""
    ks = jax.random.split(key, 12)
    # Conv2d(1, 20, 5): weight [20,1,5,5], bias [20]
    conv_w = jax.random.normal(ks[0], (C_OUT, 1, K, K), jnp.float32) * 0.2
    conv_b = jax.random.normal(ks[1], (C_OUT,), jnp.float32) * 0.1
    # BatchNorm2d(20): gamma, beta, running mean/var (eval mode)
    g2 = 1.0 + 0.1 * jax.random.normal(ks[2], (C_OUT,), jnp.float32)
    beta2 = 0.1 * jax.random.normal(ks[3], (C_OUT,), jnp.float32)
    rm2 = 0.1 * jax.random.normal(ks[4], (C_OUT,), jnp.float32)
    rv2 = 1.0 + 0.1 * jax.random.uniform(ks[5], (C_OUT,), jnp.float32)
    # Linear(500, 64): weight [64,500], bias [64]
    w1 = jax.random.normal(ks[6], (HID, FLAT), jnp.float32) * 0.05
    b1 = jax.random.normal(ks[7], (HID,), jnp.float32) * 0.1
    # BatchNorm1d(64)
    g1 = 1.0 + 0.1 * jax.random.normal(ks[8], (HID,), jnp.float32)
    beta1 = 0.1 * jax.random.normal(ks[9], (HID,), jnp.float32)
    rm1 = 0.1 * jax.random.normal(ks[10], (HID,), jnp.float32)
    rv1 = 1.0 + 0.1 * jax.random.uniform(ks[11], (HID,), jnp.float32)
    # Linear(64, latent)
    k2a, k2b = jax.random.split(jax.random.fold_in(key, 99))
    w2 = jax.random.normal(k2a, (latent_size, HID), jnp.float32) * 0.1
    b2 = jax.random.normal(k2b, (latent_size,), jnp.float32) * 0.1

    torch_params = dict(conv_w=conv_w, conv_b=conv_b, g2=g2, beta2=beta2, rm2=rm2, rv2=rv2,
                        w1=w1, b1=b1, g1=g1, beta1=beta1, rm1=rm1, rv1=rv1, w2=w2, b2=b2)

    # --- repack for the kernel layout (host-side, runs once) -----------------------------------
    # Fused Downsample(2x2 avg, exact for bilinear x0.5 / align_corners=False) + Conv2d operator.
    # Input index rin = r*28 + cc; output lane = pi*1024 + pj*512 + p*100 + q*20 + c where the
    # conv output position is (i, j) = (2p+pi, 2q+pj).
    cw = np.asarray(conv_w)[:, 0]                                   # [20, 5, 5]
    wbig = np.zeros((IMG, NCONV), np.float32)
    for i in range(H_CONV):
        pi, p = i % 2, i // 2
        for j in range(H_CONV):
            pj, q = j % 2, j // 2
            lane0 = pi * 2 * NPOOL + pj * NPOOL + p * 100 + q * 20
            for ki in range(K):
                for kj in range(K):
                    w_tap = 0.25 * cw[:, ki, kj]
                    for dr in range(2):
                        for dq in range(2):
                            r = 2 * (i + ki) + dr
                            cc = 2 * (j + kj) + dq
                            wbig[r * H_IN + cc, lane0:lane0 + C_OUT] += w_tap

    def pack_lanes(vec_c):
        # tile a per-channel vector onto the (p, q, c) lane layout; dead lanes (500..511) = 0
        blk = np.zeros(NPOOL, np.float32)
        blk[:FLAT // 1 if False else H_POOL * H_POOL * C_OUT] = np.tile(np.asarray(vec_c), H_POOL * H_POOL)
        return np.tile(blk, 4).reshape(1, NCONV)

    s2v = np.asarray(g2) / np.sqrt(np.asarray(rv2) + EPS)
    t2v = np.asarray(beta2) - np.asarray(rm2) * s2v
    bc = pack_lanes(conv_b)
    s2 = pack_lanes(s2v)
    t2 = pack_lanes(t2v)

    # torch Flatten of NCHW [B,20,5,5] indexes as c*25 + p*5 + q; pooled lane layout is
    # p*100 + q*20 + c  ->  regroup W1 as [p*100+q*20+c, f], dead lanes = 0.
    w1r = np.asarray(w1).reshape(HID, C_OUT, H_POOL, H_POOL)        # [f, c, p, q]
    w1p = np.zeros((NPOOL, HID), np.float32)
    w1p[:H_POOL * H_POOL * C_OUT] = np.transpose(w1r, (2, 3, 1, 0)).reshape(H_POOL * H_POOL * C_OUT, HID)
    b1r = np.asarray(b1).reshape(1, HID)

    # Fold BatchNorm1d into the final Linear:  y2 = (s1*y1 + t1) @ W2^T + b2
    #   -> W2'[k, l] = s1[k]*w2[l, k],  b2'[l] = sum_k t1[k]*w2[l, k] + b2[l]
    s1v = np.asarray(g1) / np.sqrt(np.asarray(rv1) + EPS)
    t1v = np.asarray(beta1) - np.asarray(rm1) * s1v
    w2_np = np.asarray(w2)                                          # [L, 64]
    lat_pad = int(pl.cdiv(latent_size, 128) * 128)
    w2p = np.zeros((HID, lat_pad), np.float32)
    w2p[:, :latent_size] = (w2_np * s1v[None, :]).T
    b2p = np.zeros((1, lat_pad), np.float32)
    b2p[0, :latent_size] = w2_np @ t1v + np.asarray(b2)

    kernel_params = (
        jnp.asarray(wbig, jnp.bfloat16),       # fused downsample+conv operator (bf16 MXU operand)
        jnp.asarray(bc, jnp.float32),
        jnp.asarray(s2, jnp.float32),
        jnp.asarray(t2, jnp.float32),
        jnp.asarray(w1p, jnp.bfloat16),        # FC1 weights (bf16 MXU operand)
        jnp.asarray(b1r, jnp.float32),
        jnp.asarray(w2p, jnp.bfloat16),        # FC2 weights with BN1 folded in (bf16 MXU operand)
        jnp.asarray(b2p, jnp.float32),
    )
    return torch_params, kernel_params


def encoder_reference(x, tp):
    """Plain-JAX reference with torch layouts / semantics (eval mode, f32)."""
    B = x.shape[0]
    xd = x.reshape(B, 1, H_DS, 2, H_DS, 2).mean(axis=(3, 5))   # bilinear 0.5 == 2x2 avg pool
    h = jax.lax.conv_general_dilated(
        xd, tp['conv_w'], window_strides=(1, 1), padding='VALID',
        dimension_numbers=('NCHW', 'OIHW', 'NCHW')) + tp['conv_b'][None, :, None, None]
    h = _elu(h)
    h = ((h - tp['rm2'][None, :, None, None]) / jnp.sqrt(tp['rv2'] + EPS)[None, :, None, None]
         * tp['g2'][None, :, None, None] + tp['beta2'][None, :, None, None])
    hp = h.reshape(B, C_OUT, H_POOL, 2, H_POOL, 2).max(axis=(3, 5))
    f = hp.reshape(B, FLAT)
    y1 = f @ tp['w1'].T + tp['b1']
    y1 = _elu(y1)
    y1 = (y1 - tp['rm1']) / jnp.sqrt(tp['rv1'] + EPS) * tp['g1'] + tp['beta1']
    y2 = y1 @ tp['w2'].T + tp['b2']
    return jax.nn.sigmoid(y2)


if __name__ == "__main__":
    B, latent_size = 2, 32
    key = jax.random.PRNGKey(0)
    kx, kp = jax.random.split(key)
    x = jax.random.normal(kx, (B, 1, H_IN, H_IN), jnp.float32)

    torch_params, kernel_params = init_params(kp, latent_size)

    out = jax.block_until_ready(encoder_forward(x, kernel_params, latent_size))
    ref = jax.block_until_ready(encoder_reference(x, torch_params))

    assert out.shape == (B, latent_size)
    assert bool(jnp.all(jnp.isfinite(out)))
    # bf16 matmul operands with f32 accumulation vs an all-f32 reference.
    assert bool(jnp.allclose(out, ref, atol=2e-2, rtol=2e-2))
    print("KERNEL_OK")
</pallas_src>

<mosaic_0001>
module attributes {stable_mosaic.version = 11 : i64} {
  func.func @encoder_kernel(%arg0: i32, %arg1: memref<8x784xf32, #tpu.memory_space<vmem>>, %arg2: memref<784x2048xbf16, #tpu.memory_space<vmem>>, %arg3: memref<1x2048xf32, #tpu.memory_space<vmem>>, %arg4: memref<1x2048xf32, #tpu.memory_space<vmem>>, %arg5: memref<1x2048xf32, #tpu.memory_space<vmem>>, %arg6: memref<512x64xbf16, #tpu.memory_space<vmem>>, %arg7: memref<1x64xf32, #tpu.memory_space<vmem>>, %arg8: memref<64x128xbf16, #tpu.memory_space<vmem>>, %arg9: memref<1x128xf32, #tpu.memory_space<vmem>>, %arg10: memref<8x128xf32, #tpu.memory_space<vmem>>) attributes {dimension_semantics = [#tpu.dimension_semantics<parallel>], iteration_bounds = array<i64: 1>, scalar_prefetch = 0 : i64, scratch_operands = 0 : i64, tpu.core_type = #tpu.core_type<tc>, window_params = [{transform_indices = @transform_0, window_bounds = array<i64: 8, 784>}, {pipeline_mode = #tpu.pipeline_mode<synchronous>, transform_indices = @transform_1, window_bounds = array<i64: 784, 2048>}, {pipeline_mode = #tpu.pipeline_mode<synchronous>, transform_indices = @transform_2, window_bounds = array<i64: 1, 2048>}, {pipeline_mode = #tpu.pipeline_mode<synchronous>, transform_indices = @transform_3, window_bounds = array<i64: 1, 2048>}, {pipeline_mode = #tpu.pipeline_mode<synchronous>, transform_indices = @transform_4, window_bounds = array<i64: 1, 2048>}, {pipeline_mode = #tpu.pipeline_mode<synchronous>, transform_indices = @transform_5, window_bounds = array<i64: 512, 64>}, {pipeline_mode = #tpu.pipeline_mode<synchronous>, transform_indices = @transform_6, window_bounds = array<i64: 1, 64>}, {pipeline_mode = #tpu.pipeline_mode<synchronous>, transform_indices = @transform_7, window_bounds = array<i64: 64, 128>}, {pipeline_mode = #tpu.pipeline_mode<synchronous>, transform_indices = @transform_8, window_bounds = array<i64: 1, 128>}, {transform_indices = @transform_9, window_bounds = array<i64: 8, 128>}]} {
    %c0 = arith.constant 0 : index
    %c0_0 = arith.constant 0 : index
    %0 = vector.load %arg1[%c0, %c0_0] : memref<8x784xf32, #tpu.memory_space<vmem>>, vector<8x784xf32>
    %1 = arith.truncf %0 : vector<8x784xf32> to vector<8x784xbf16>
    %c0_1 = arith.constant 0 : index
    %c0_2 = arith.constant 0 : index
    %2 = vector.load %arg2[%c0_1, %c0_2] : memref<784x2048xbf16, #tpu.memory_space<vmem>>, vector<784x2048xbf16>
    %cst = arith.constant dense<0.000000e+00> : vector<8x2048xf32>
    %3 = tpu.matmul %1, %2, %cst {dimension_numbers = #tpu.dot_dimension_numbers<[1], [0], [0], [1], [0, 0, 1, 1], [], []>} : vector<8x784xbf16>, vector<784x2048xbf16>, vector<8x2048xf32> -> vector<8x2048xf32>
    %c0_3 = arith.constant 0 : index
    %c0_4 = arith.constant 0 : index
    %4 = vector.load %arg3[%c0_3, %c0_4] : memref<1x2048xf32, #tpu.memory_space<vmem>>, vector<1x2048xf32>
    %5 = vector.broadcast %4 : vector<1x2048xf32> to vector<8x2048xf32>
    %6 = arith.addf %3, %5 : vector<8x2048xf32>
    %cst_5 = arith.constant 0.000000e+00 : f32
    %7 = vector.broadcast %cst_5 : f32 to vector<8x2048xf32>
    %8 = arith.cmpf ogt, %6, %7 : vector<8x2048xf32>
    %cst_6 = arith.constant 0.000000e+00 : f32
    %9 = vector.broadcast %cst_6 : f32 to vector<8x2048xf32>
    %10 = arith.minimumf %6, %9 : vector<8x2048xf32>
    %11 = math.exp %10 : vector<8x2048xf32>
    %cst_7 = arith.constant 1.000000e+00 : f32
    %12 = vector.broadcast %cst_7 : f32 to vector<8x2048xf32>
    %13 = arith.subf %11, %12 : vector<8x2048xf32>
    %14 = arith.select %8, %6, %13 : vector<8x2048xi1>, vector<8x2048xf32>
    %c0_8 = arith.constant 0 : index
    %c0_9 = arith.constant 0 : index
    %15 = vector.load %arg4[%c0_8, %c0_9] : memref<1x2048xf32, #tpu.memory_space<vmem>>, vector<1x2048xf32>
    %16 = vector.broadcast %15 : vector<1x2048xf32> to vector<8x2048xf32>
    %17 = arith.mulf %14, %16 : vector<8x2048xf32>
    %c0_10 = arith.constant 0 : index
    %c0_11 = arith.constant 0 : index
    %18 = vector.load %arg5[%c0_10, %c0_11] : memref<1x2048xf32, #tpu.memory_space<vmem>>, vector<1x2048xf32>
    %19 = vector.broadcast %18 : vector<1x2048xf32> to vector<8x2048xf32>
    %20 = arith.addf %17, %19 : vector<8x2048xf32>
    %21 = vector.extract_strided_slice %20 {offsets = [0, 0], sizes = [8, 512], strides = [1, 1]} : vector<8x2048xf32> to vector<8x512xf32>
    %22 = vector.extract_strided_slice %20 {offsets = [0, 512], sizes = [8, 512], strides = [1, 1]} : vector<8x2048xf32> to vector<8x512xf32>
    %23 = arith.maximumf %21, %22 : vector<8x512xf32>
    %24 = vector.extract_strided_slice %20 {offsets = [0, 1024], sizes = [8, 512], strides = [1, 1]} : vector<8x2048xf32> to vector<8x512xf32>
    %25 = vector.extract_strided_slice %20 {offsets = [0, 1536], sizes = [8, 512], strides = [1, 1]} : vector<8x2048xf32> to vector<8x512xf32>
    %26 = arith.maximumf %24, %25 : vector<8x512xf32>
    %27 = arith.maximumf %23, %26 : vector<8x512xf32>
    %28 = arith.truncf %27 : vector<8x512xf32> to vector<8x512xbf16>
    %c0_12 = arith.constant 0 : index
    %c0_13 = arith.constant 0 : index
    %29 = vector.load %arg6[%c0_12, %c0_13] : memref<512x64xbf16, #tpu.memory_space<vmem>>, vector<512x64xbf16>
    %cst_14 = arith.constant dense<0.000000e+00> : vector<8x64xf32>
    %30 = tpu.matmul %28, %29, %cst_14 {dimension_numbers = #tpu.dot_dimension_numbers<[1], [0], [0], [1], [0, 0, 1, 1], [], []>} : vector<8x512xbf16>, vector<512x64xbf16>, vector<8x64xf32> -> vector<8x64xf32>
    %c0_15 = arith.constant 0 : index
    %c0_16 = arith.constant 0 : index
    %31 = vector.load %arg7[%c0_15, %c0_16] : memref<1x64xf32, #tpu.memory_space<vmem>>, vector<1x64xf32>
    %32 = vector.broadcast %31 : vector<1x64xf32> to vector<8x64xf32>
    %33 = arith.addf %30, %32 : vector<8x64xf32>
    %cst_17 = arith.constant 0.000000e+00 : f32
    %34 = vector.broadcast %cst_17 : f32 to vector<8x64xf32>
    %35 = arith.cmpf ogt, %33, %34 : vector<8x64xf32>
    %cst_18 = arith.constant 0.000000e+00 : f32
    %36 = vector.broadcast %cst_18 : f32 to vector<8x64xf32>
    %37 = arith.minimumf %33, %36 : vector<8x64xf32>
    %38 = math.exp %37 : vector<8x64xf32>
    %cst_19 = arith.constant 1.000000e+00 : f32
    %39 = vector.broadcast %cst_19 : f32 to vector<8x64xf32>
    %40 = arith.subf %38, %39 : vector<8x64xf32>
    %41 = arith.select %35, %33, %40 : vector<8x64xi1>, vector<8x64xf32>
    %42 = arith.truncf %41 : vector<8x64xf32> to vector<8x64xbf16>
    %c0_20 = arith.constant 0 : index
    %c0_21 = arith.constant 0 : index
    %43 = vector.load %arg8[%c0_20, %c0_21] : memref<64x128xbf16, #tpu.memory_space<vmem>>, vector<64x128xbf16>
    %cst_22 = arith.constant dense<0.000000e+00> : vector<8x128xf32>
    %44 = tpu.matmul %42, %43, %cst_22 {dimension_numbers = #tpu.dot_dimension_numbers<[1], [0], [0], [1], [0, 0, 1, 1], [], []>} : vector<8x64xbf16>, vector<64x128xbf16>, vector<8x128xf32> -> vector<8x128xf32>
    %c0_23 = arith.constant 0 : index
    %c0_24 = arith.constant 0 : index
    %45 = vector.load %arg9[%c0_23, %c0_24] : memref<1x128xf32, #tpu.memory_space<vmem>>, vector<1x128xf32>
    %46 = vector.broadcast %45 : vector<1x128xf32> to vector<8x128xf32>
    %47 = arith.addf %44, %46 : vector<8x128xf32>
    %48 = arith.negf %47 : vector<8x128xf32>
    %49 = math.exp %48 : vector<8x128xf32>
    %cst_25 = arith.constant 1.000000e+00 : f32
    %50 = vector.broadcast %cst_25 : f32 to vector<8x128xf32>
    %51 = arith.addf %50, %49 : vector<8x128xf32>
    %52 = arith.divf %50, %51 : vector<8x128xf32>
    %c0_26 = arith.constant 0 : index
    %c0_27 = arith.constant 0 : index
    %53 = vector.load %arg10[%c0_26, %c0_27] : memref<8x128xf32, #tpu.memory_space<vmem>>, vector<8x128xf32>
    tpu.vector_store %arg10[%c0_26, %c0_27], %52 {strides = array<i32>} : memref<8x128xf32, #tpu.memory_space<vmem>>, vector<8x128xf32>,
    return
  }
  func.func @transform_0(%arg0: i32) -> (i32, i32) {
    %c0_i32 = arith.constant 0 : i32
    %c0_i32_0 = arith.constant 0 : i32
    return %arg0, %c0_i32 : i32, i32
  }
  func.func @transform_1(%arg0: i32) -> (i32, i32) {
    %c0_i32 = arith.constant 0 : i32
    %c0_i32_0 = arith.constant 0 : i32
    %c0_i32_1 = arith.constant 0 : i32
    return %c0_i32, %c0_i32_0 : i32, i32
  }
  func.func @transform_2(%arg0: i32) -> (i32, i32) {
    %c0_i32 = arith.constant 0 : i32
    %c0_i32_0 = arith.constant 0 : i32
    %c0_i32_1 = arith.constant 0 : i32
    return %c0_i32, %c0_i32_0 : i32, i32
  }
  func.func @transform_3(%arg0: i32) -> (i32, i32) {
    %c0_i32 = arith.constant 0 : i32
    %c0_i32_0 = arith.constant 0 : i32
    %c0_i32_1 = arith.constant 0 : i32
    return %c0_i32, %c0_i32_0 : i32, i32
  }
  func.func @transform_4(%arg0: i32) -> (i32, i32) {
    %c0_i32 = arith.constant 0 : i32
    %c0_i32_0 = arith.constant 0 : i32
    %c0_i32_1 = arith.constant 0 : i32
    return %c0_i32, %c0_i32_0 : i32, i32
  }
  func.func @transform_5(%arg0: i32) -> (i32, i32) {
    %c0_i32 = arith.constant 0 : i32
    %c0_i32_0 = arith.constant 0 : i32
    %c0_i32_1 = arith.constant 0 : i32
    return %c0_i32, %c0_i32_0 : i32, i32
  }
  func.func @transform_6(%arg0: i32) -> (i32, i32) {
    %c0_i32 = arith.constant 0 : i32
    %c0_i32_0 = arith.constant 0 : i32
    %c0_i32_1 = arith.constant 0 : i32
    return %c0_i32, %c0_i32_0 : i32, i32
  }
  func.func @transform_7(%arg0: i32) -> (i32, i32) {
    %c0_i32 = arith.constant 0 : i32
    %c0_i32_0 = arith.constant 0 : i32
    %c0_i32_1 = arith.constant 0 : i32
    return %c0_i32, %c0_i32_0 : i32, i32
  }
  func.func @transform_8(%arg0: i32) -> (i32, i32) {
    %c0_i32 = arith.constant 0 : i32
    %c0_i32_0 = arith.constant 0 : i32
    %c0_i32_1 = arith.constant 0 : i32
    return %c0_i32, %c0_i32_0 : i32, i32
  }
  func.func @transform_9(%arg0: i32) -> (i32, i32) {
    %c0_i32 = arith.constant 0 : i32
    %c0_i32_0 = arith.constant 0 : i32
    return %arg0, %c0_i32 : i32, i32
  }
}

</mosaic_0001>

<llo_original>
// kernel: tpu_custom_call.1
$region0: #{tpu_custom_call.1}
  #allocation0 [shape = 'u32[]', space=smem, size = 0x4, offset = 0x4, fixed_abs, tag = 'smem constant byte address 0x4 - core index']
  #allocation1 [shape = 'u32[144,128]{1,0:T(1,128)}', space=vmem, size = 0x12000, scoped, tag = 'internal scratch']
  %s0 = inlined_call_operand.hbm [shape: f32[8,784], index: 0, kind: input, shape index: {}]
  %s1 = inlined_call_operand.hbm [shape: bf16[784,2048], index: 1, kind: input, shape index: {}]
  %s2 = inlined_call_operand.hbm [shape: f32[1,2048], index: 2, kind: input, shape index: {}]
  %s3 = inlined_call_operand.hbm [shape: f32[1,2048], index: 3, kind: input, shape index: {}]
  %s4 = inlined_call_operand.hbm [shape: f32[1,2048], index: 4, kind: input, shape index: {}]
  %s5 = inlined_call_operand.vmem [shape: bf16[512,64], index: 5, kind: input, shape index: {}]
  %s6 = inlined_call_operand.hbm [shape: f32[1,64], index: 6, kind: input, shape index: {}]
  %s7 = inlined_call_operand.hbm [shape: bf16[64,128], index: 7, kind: input, shape index: {}]
  %s8 = inlined_call_operand.hbm [shape: f32[1,128], index: 8, kind: input, shape index: {}]
  %s9 = inlined_call_operand.hbm [shape: f32[8,128], index: 9, kind: output, shape index: {}]
  %s10 = sld [smem:[#allocation0]]
  $region78: #{tpu_custom_call.1} parent=0
    _
  %s12 = ssub.s32 1, %s10
  %s13 = scalar_select 0, %s12, %s10
  $region1: #{tpu_custom_call.1} parent=0
    #allocation2 [shape = 'u8[28672]{0}', space=vmem, size = 0x7000, scoped, tag = 'input window, operand 0, single buffered']
    #allocation3 [shape = 's32[1]{0}', space=sflag, size = 0x4, scoped, tag = 'scoped memory for tpu_custom_call.1']
    #allocation4 [shape = 's32[1]{0}', space=sflag, size = 0x4, scoped, tag = 'scoped memory for tpu_custom_call.1']
    #allocation5 [shape = 'u8[3211264]{0}', space=vmem, size = 0x310000, scoped, tag = 'input window, operand 1, single buffered']
    #allocation6 [shape = 's32[1]{0}', space=sflag, size = 0x4, scoped, tag = 'scoped memory for tpu_custom_call.1']
    #allocation7 [shape = 'u8[8192]{0}', space=vmem, size = 0x2000, scoped, tag = 'input window, operand 2, single buffered']
    #allocation8 [shape = 'u8[8192]{0}', space=vmem, size = 0x2000, scoped, tag = 'input window, operand 3, single buffered']
    #allocation9 [shape = 's32[1]{0}', space=sflag, size = 0x4, scoped, tag = 'scoped memory for tpu_custom_call.1']
    #allocation10 [shape = 'u8[8192]{0}', space=vmem, size = 0x2000, scoped, tag = 'input window, operand 4, single buffered']
    #allocation11 [shape = 'u8[512]{0}', space=vmem, size = 0x400, scoped, tag = 'input window, operand 6, single buffered']
    #allocation12 [shape = 's32[1]{0}', space=sflag, size = 0x4, scoped, tag = 'scoped memory for tpu_custom_call.1']
    #allocation13 [shape = 'u8[16384]{0}', space=vmem, size = 0x4000, scoped, tag = 'input window, operand 7, single buffered']
    #allocation14 [shape = 'u8[512]{0}', space=vmem, size = 0x400, scoped, tag = 'input window, operand 8, single buffered']
    #allocation15 [shape = 's32[1]{0}', space=sflag, size = 0x4, scoped, tag = 'scoped memory for tpu_custom_call.1']
    #allocation16 [shape = 'u8[4096]{0}', space=vmem, size = 0x1000, scoped, tag = 'output window, operand 0, single buffered']
    %14 = vsyncpa [#allocation3], 0
    %15 = vsyncpa [#allocation6], 0
    %16 = vsyncpa [#allocation9], 0
    %17 = vsyncpa [#allocation12], 0
    %18 = vsyncpa [#allocation15], 0
    %19 = vsyncpa [#allocation4], 0
    // Predicated region
    $region2: #{tpu_custom_call.1} parent=1 // pred_check
      _
    $region3: #{tpu_custom_call.1} parent=1 // pred_check_branch
      %21 = sbr.rel (0) target = $region5
    $region4: #{tpu_custom_call.1} parent=1 // pred_region
      %s23 = ssub.s32 896, 896
      %24 = vsyncadd [#allocation3], %s23
      %s26 = sshll.u32 [#allocation2], 4
      %s27 = int_to_ptr.vmem [resolvable:$true] %s26
      %29 = dma.hbm_to_vmem [thread:$0]  %s0, 896, %s27, [#allocation3]
    $region5: #{tpu_custom_call.1} parent=1 // pred_fallthru
      _
    // Predicated region
    $region6: #{tpu_custom_call.1} parent=1 // pred_check
      _
    $region7: #{tpu_custom_call.1} parent=1 // pred_check_branch
      %31 = sbr.rel (0) target = $region9
    $region8: #{tpu_custom_call.1} parent=1 // pred_region
      %s33 = ssub.s32 100352, 100352
      %34 = vsyncadd [#allocation6], %s33
      %s35 = sshll.u32 [#allocation5], 4
      %s36 = int_to_ptr.vmem [resolvable:$true] %s35
      %41 = dma.hbm_to_vmem [thread:$0]  %s1, 100352, %s36, [#allocation6], 1024, 1024, 64
    $region9: #{tpu_custom_call.1} parent=1 // pred_fallthru
      _
    // Predicated region
    $region10: #{tpu_custom_call.1} parent=1 // pred_check
      _
    $region11: #{tpu_custom_call.1} parent=1 // pred_check_branch
      %43 = sbr.rel (0) target = $region13
    $region12: #{tpu_custom_call.1} parent=1 // pred_region
      %s45 = ssub.s32 256, 256
      %46 = vsyncadd [#allocation6], %s45
      %s48 = sshll.u32 [#allocation7], 4
      %s49 = int_to_ptr.vmem [resolvable:$true] %s48
      %51 = dma.hbm_to_vmem [thread:$0]  %s2, 256, %s49, [#allocation6]
    $region13: #{tpu_custom_call.1} parent=1 // pred_fallthru
      _
    // Predicated region
    $region14: #{tpu_custom_call.1} parent=1 // pred_check
      _
    $region15: #{tpu_custom_call.1} parent=1 // pred_check_branch
      %53 = sbr.rel (0) target = $region17
    $region16: #{tpu_custom_call.1} parent=1 // pred_region
      %s55 = ssub.s32 256, 256
      %56 = vsyncadd [#allocation9], %s55
      %s58 = sshll.u32 [#allocation8], 4
      %s59 = int_to_ptr.vmem [resolvable:$true] %s58
      %61 = dma.hbm_to_vmem [thread:$0]  %s3, 256, %s59, [#allocation9]
    $region17: #{tpu_custom_call.1} parent=1 // pred_fallthru
      _
    // Predicated region
    $region18: #{tpu_custom_call.1} parent=1 // pred_check
      _
    $region19: #{tpu_custom_call.1} parent=1 // pred_check_branch
      %63 = sbr.rel (0) target = $region21
    $region20: #{tpu_custom_call.1} parent=1 // pred_region
      %s65 = ssub.s32 256, 256
      %66 = vsyncadd [#allocation9], %s65
      %s68 = sshll.u32 [#allocation10], 4
      %s69 = int_to_ptr.vmem [resolvable:$true] %s68
      %71 = dma.hbm_to_vmem [thread:$0]  %s4, 256, %s69, [#allocation9]
    $region21: #{tpu_custom_call.1} parent=1 // pred_fallthru
      _
    // Predicated region
    $region22: #{tpu_custom_call.1} parent=1 // pred_check
      _
    $region23: #{tpu_custom_call.1} parent=1 // pred_check_branch
      %73 = sbr.rel (0) target = $region25
    $region24: #{tpu_custom_call.1} parent=1 // pred_region
      _
    $region25: #{tpu_custom_call.1} parent=1 // pred_fallthru
      _
    // Predicated region
    $region26: #{tpu_custom_call.1} parent=1 // pred_check
      _
    $region27: #{tpu_custom_call.1} parent=1 // pred_check_branch
      %75 = sbr.rel (0) target = $region29
    $region28: #{tpu_custom_call.1} parent=1 // pred_region
      %s77 = ssub.s32 16, 16
      %78 = vsyncadd [#allocation12], %s77
      %s80 = sshll.u32 [#allocation11], 4
      %s81 = int_to_ptr.vmem [resolvable:$true] %s80
      %83 = dma.hbm_to_vmem [thread:$0]  %s6, 16, %s81, [#allocation12]
    $region29: #{tpu_custom_call.1} parent=1 // pred_fallthru
      _
    // Predicated region
    $region30: #{tpu_custom_call.1} parent=1 // pred_check
      _
    $region31: #{tpu_custom_call.1} parent=1 // pred_check_branch
      %85 = sbr.rel (0) target = $region33
    $region32: #{tpu_custom_call.1} parent=1 // pred_region
      %s87 = ssub.s32 512, 512
      %88 = vsyncadd [#allocation12], %s87
      %s89 = sshll.u32 [#allocation13], 4
      %s90 = int_to_ptr.vmem [resolvable:$true] %s89
      %95 = dma.hbm_to_vmem [thread:$0]  %s7, 512, %s90, [#allocation12], 64, 64, 4
    $region33: #{tpu_custom_call.1} parent=1 // pred_fallthru
      _
    // Predicated region
    $region34: #{tpu_custom_call.1} parent=1 // pred_check
      _
    $region35: #{tpu_custom_call.1} parent=1 // pred_check_branch
      %97 = sbr.rel (0) target = $region37
    $region36: #{tpu_custom_call.1} parent=1 // pred_region
      %s99 = ssub.s32 16, 16
      %100 = vsyncadd [#allocation15], %s99
      %s102 = sshll.u32 [#allocation14], 4
      %s103 = int_to_ptr.vmem [resolvable:$true] %s102
      %105 = dma.hbm_to_vmem [thread:$0]  %s8, 16, %s103, [#allocation15]
    $region37: #{tpu_custom_call.1} parent=1 // pred_fallthru
      _
    // Predicated region
    $region38: #{tpu_custom_call.1} parent=1 // pred_check
      _
    $region39: #{tpu_custom_call.1} parent=1 // pred_check_branch
      %107 = sbr.rel (0) target = $region41
    $region40: #{tpu_custom_call.1} parent=1 // pred_region
      %108 = dma.done [#allocation3], 896
    $region41: #{tpu_custom_call.1} parent=1 // pred_fallthru
      _
    // Predicated region
    $region42: #{tpu_custom_call.1} parent=1 // pred_check
      _
    $region43: #{tpu_custom_call.1} parent=1 // pred_check_branch
      %110 = sbr.rel (0) target = $region45
    $region44: #{tpu_custom_call.1} parent=1 // pred_region
      %111 = dma.done [#allocation6], 100352
    $region45: #{tpu_custom_call.1} parent=1 // pred_fallthru
      _
    // Predicated region
    $region46: #{tpu_custom_call.1} parent=1 // pred_check
      _
    $region47: #{tpu_custom_call.1} parent=1 // pred_check_branch
      %113 = sbr.rel (0) target = $region49
    $region48: #{tpu_custom_call.1} parent=1 // pred_region
      %114 = dma.done [#allocation6], 256
    $region49: #{tpu_custom_call.1} parent=1 // pred_fallthru
      _
    // Predicated region
    $region50: #{tpu_custom_call.1} parent=1 // pred_check
      _
    $region51: #{tpu_custom_call.1} parent=1 // pred_check_branch
      %116 = sbr.rel (0) target = $region53
    $region52: #{tpu_custom_call.1} parent=1 // pred_region
      %117 = dma.done [#allocation9], 256
    $region53: #{tpu_custom_call.1} parent=1 // pred_fallthru
      _
    // Predicated region
    $region54: #{tpu_custom_call.1} parent=1 // pred_check
      _
    $region55: #{tpu_custom_call.1} parent=1 // pred_check_branch
      %119 = sbr.rel (0) target = $region57
    $region56: #{tpu_custom_call.1} parent=1 // pred_region
      %120 = dma.done [#allocation9], 256
    $region57: #{tpu_custom_call.1} parent=1 // pred_fallthru
      _
    // Predicated region
    $region58: #{tpu_custom_call.1} parent=1 // pred_check
      _
    $region59: #{tpu_custom_call.1} parent=1 // pred_check_branch
      %122 = sbr.rel (0) target = $region61
    $region60: #{tpu_custom_call.1} parent=1 // pred_region
      %123 = dma.done [#allocation12], 16
    $region61: #{tpu_custom_call.1} parent=1 // pred_fallthru
      _
    // Predicated region
    $region62: #{tpu_custom_call.1} parent=1 // pred_check
      _
    $region63: #{tpu_custom_call.1} parent=1 // pred_check_branch
      %125 = sbr.rel (0) target = $region65
    $region64: #{tpu_custom_call.1} parent=1 // pred_region
      %126 = dma.done [#allocation12], 512
    $region65: #{tpu_custom_call.1} parent=1 // pred_fallthru
      _
    // Predicated region
    $region66: #{tpu_custom_call.1} parent=1 // pred_check
      _
    $region67: #{tpu_custom_call.1} parent=1 // pred_check_branch
      %128 = sbr.rel (0) target = $region69
    $region68: #{tpu_custom_call.1} parent=1 // pred_region
      %129 = dma.done [#allocation15], 16
    $region69: #{tpu_custom_call.1} parent=1 // pred_fallthru
      _
    %v131 = vld [vmem:[#allocation2] sm:$0xff]
    %v132 = vld [vmem:[#allocation2 + $0x8] sm:$0xff]
    %v133 = vld [vmem:[#allocation2 + $0x10] sm:$0xff]
    %v134 = vld [vmem:[#allocation2 + $0x18] sm:$0xff]
    %v135 = vld [vmem:[#allocation2 + $0x20] sm:$0xff]
    %v136 = vld [vmem:[#allocation2 + $0x28] sm:$0xff]
    %v137 = vld [vmem:[#allocation2 + $0x30] sm:$0xff]
    %v138 = vpack.c.bf16 %v131, %v131
    %v139 = vpack.c.bf16 %v132, %v132
    %v140 = vpack.c.bf16 %v133, %v133
    %v141 = vpack.c.bf16 %v134, %v134
    %v142 = vpack.c.bf16 %v135, %v135
    %v143 = vpack.c.bf16 %v136, %v136
    %v144 = vpack.c.bf16 %v137, %v137
    %v145 = vld [vmem:[#allocation5] sm:$0xff]
    %v146 = vld [vmem:[#allocation5 + $0x8] sm:$0xff]
    %v147 = vld [vmem:[#allocation5 + $0x10] sm:$0xff]
    %v148 = vld [vmem:[#allocation5 + $0x18] sm:$0xff]
    %v149 = vld [vmem:[#allocation5 + $0x20] sm:$0xff]
    %v150 = vld [vmem:[#allocation5 + $0x28] sm:$0xff]
    %v151 = vld [vmem:[#allocation5 + $0x30] sm:$0xff]
    %v152 = vld [vmem:[#allocation5 + $0x38] sm:$0xff]
    %v153 = vld [vmem:[#allocation5 + $0x40] sm:$0xff]
    %v154 = vld [vmem:[#allocation5 + $0x48] sm:$0xff]
    %v155 = vld [vmem:[#allocation5 + $0x50] sm:$0xff]
    %v156 = vld [vmem:[#allocation5 + $0x58] sm:$0xff]
    %v157 = vld [vmem:[#allocation5 + $0x60] sm:$0xff]
    %v158 = vld [vmem:[#allocation5 + $0x68] sm:$0xff]
    %v159 = vld [vmem:[#allocation5 + $0x70] sm:$0xff]
    %v160 = vld [vmem:[#allocation5 + $0x78] sm:$0xff]
    %v161 = vld [vmem:[#allocation5 + $0x80] sm:$0xff]
    %v162 = vld [vmem:[#allocation5 + $0x88] sm:$0xff]
    %v163 = vld [vmem:[#allocation5 + $0x90] sm:$0xff]
    %v164 = vld [vmem:[#allocation5 + $0x98] sm:$0xff]
    %v165 = vld [vmem:[#allocation5 + $0xa0] sm:$0xff]
    %v166 = vld [vmem:[#allocation5 + $0xa8] sm:$0xff]
    %v167 = vld [vmem:[#allocation5 + $0xb0] sm:$0xff]
    %v168 = vld [vmem:[#allocation5 + $0xb8] sm:$0xff]
    %v169 = vld [vmem:[#allocation5 + $0xc0] sm:$0xff]
    %v170 = vld [vmem:[#allocation5 + $0xc8] sm:$0xff]
    %v171 = vld [vmem:[#allocation5 + $0xd0] sm:$0xff]
    %v172 = vld [vmem:[#allocation5 + $0xd8] sm:$0xff]
    %v173 = vld [vmem:[#allocation5 + $0xe0] sm:$0xff]
    %v174 = vld [vmem:[#allocation5 + $0xe8] sm:$0xff]
    %v175 = vld [vmem:[#allocation5 + $0xf0] sm:$0xff]
    %v176 = vld [vmem:[#allocation5 + $0xf8] sm:$0xff]
    %v177 = vld [vmem:[#allocation5 + $0x100] sm:$0xff]
    %v178 = vld [vmem:[#allocation5 + $0x108] sm:$0xff]
    %v179 = vld [vmem:[#allocation5 + $0x110] sm:$0xff]
    %v180 = vld [vmem:[#allocation5 + $0x118] sm:$0xff]
    %v181 = vld [vmem:[#allocation5 + $0x120] sm:$0xff]
    %v182 = vld [vmem:[#allocation5 + $0x128] sm:$0xff]
    %v183 = vld [vmem:[#allocation5 + $0x130] sm:$0xff]
    %v184 = vld [vmem:[#allocation5 + $0x138] sm:$0xff]
    %v185 = vld [vmem:[#allocation5 + $0x140] sm:$0xff]
    %v186 = vld [vmem:[#allocation5 + $0x148] sm:$0xff]
    %v187 = vld [vmem:[#allocation5 + $0x150] sm:$0xff]
    %v188 = vld [vmem:[#allocation5 + $0x158] sm:$0xff]
    %v189 = vld [vmem:[#allocation5 + $0x160] sm:$0xff]
    %v190 = vld [vmem:[#allocation5 + $0x168] sm:$0xff]
    %v191 = vld [vmem:[#allocation5 + $0x170] sm:$0xff]
    %v192 = vld [vmem:[#allocation5 + $0x178] sm:$0xff]
    %v193 = vld [vmem:[#allocation5 + $0x180] sm:$0xff]
    %v194 = vld [vmem:[#allocation5 + $0x188] sm:$0xff]
    %v195 = vld [vmem:[#allocation5 + $0x190] sm:$0xff]
    %v196 = vld [vmem:[#allocation5 + $0x198] sm:$0xff]
    %v197 = vld [vmem:[#allocation5 + $0x1a0] sm:$0xff]
    %v198 = vld [vmem:[#allocation5 + $0x1a8] sm:$0xff]
    %v199 = vld [vmem:[#allocation5 + $0x1b0] sm:$0xff]
    %v200 = vld [vmem:[#allocation5 + $0x1b8] sm:$0xff]
    %v201 = vld [vmem:[#allocation5 + $0x1c0] sm:$0xff]
    %v202 = vld [vmem:[#allocation5 + $0x1c8] sm:$0xff]
    %v203 = vld [vmem:[#allocation5 + $0x1d0] sm:$0xff]
    %v204 = vld [vmem:[#allocation5 + $0x1d8] sm:$0xff]
    %v205 = vld [vmem:[#allocation5 + $0x1e0] sm:$0xff]
    %v206 = vld [vmem:[#allocation5 + $0x1e8] sm:$0xff]
    %v207 = vld [vmem:[#allocation5 + $0x1f0] sm:$0xff]
    %v208 = vld [vmem:[#allocation5 + $0x1f8] sm:$0xff]
    %v209 = vld [vmem:[#allocation5 + $0x200] sm:$0xff]
    %v210 = vld [vmem:[#allocation5 + $0x208] sm:$0xff]
    %v211 = vld [vmem:[#allocation5 + $0x210] sm:$0xff]
    %v212 = vld [vmem:[#allocation5 + $0x218] sm:$0xff]
    %v213 = vld [vmem:[#allocation5 + $0x220] sm:$0xff]
    %v214 = vld [vmem:[#allocation5 + $0x228] sm:$0xff]
    %v215 = vld [vmem:[#allocation5 + $0x230] sm:$0xff]
    %v216 = vld [vmem:[#allocation5 + $0x238] sm:$0xff]
    %v217 = vld [vmem:[#allocation5 + $0x240] sm:$0xff]
    %v218 = vld [vmem:[#allocation5 + $0x248] sm:$0xff]
    %v219 = vld [vmem:[#allocation5 + $0x250] sm:$0xff]
    %v220 = vld [vmem:[#allocation5 + $0x258] sm:$0xff]
    %v221 = vld [vmem:[#allocation5 + $0x260] sm:$0xff]
    %v222 = vld [vmem:[#allocation5 + $0x268] sm:$0xff]
    %v223 = vld [vmem:[#allocation5 + $0x270] sm:$0xff]
    %v224 = vld [vmem:[#allocation5 + $0x278] sm:$0xff]
    %v225 = vld [vmem:[#allocation5 + $0x280] sm:$0xff]
    %v226 = vld [vmem:[#allocation5 + $0x288] sm:$0xff]
    %v227 = vld [vmem:[#allocation5 + $0x290] sm:$0xff]
    %v228 = vld [vmem:[#allocation5 + $0x298] sm:$0xff]
    %v229 = vld [vmem:[#allocation5 + $0x2a0] sm:$0xff]
    %v230 = vld [vmem:[#allocation5 + $0x2a8] sm:$0xff]
    %v231 = vld [vmem:[#allocation5 + $0x2b0] sm:$0xff]
    %v232 = vld [vmem:[#allocation5 + $0x2b8] sm:$0xff]
    %v233 = vld [vmem:[#allocation5 + $0x2c0] sm:$0xff]
    %v234 = vld [vmem:[#allocation5 + $0x2c8] sm:$0xff]
    %v235 = vld [vmem:[#allocation5 + $0x2d0] sm:$0xff]
    %v236 = vld [vmem:[#allocation5 + $0x2d8] sm:$0xff]
    %v237 = vld [vmem:[#allocation5 + $0x2e0] sm:$0xff]
    %v238 = vld [vmem:[#allocation5 + $0x2e8] sm:$0xff]
    %v239 = vld [vmem:[#allocation5 + $0x2f0] sm:$0xff]
    %v240 = vld [vmem:[#allocation5 + $0x2f8] sm:$0xff]
    %v241 = vld [vmem:[#allocation5 + $0x300] sm:$0xff]
    %v242 = vld [vmem:[#allocation5 + $0x308] sm:$0xff]
    %v243 = vld [vmem:[#allocation5 + $0x310] sm:$0xff]
    %v244 = vld [vmem:[#allocation5 + $0x318] sm:$0xff]
    %v245 = vld [vmem:[#allocation5 + $0x320] sm:$0xff]
    %v246 = vld [vmem:[#allocation5 + $0x328] sm:$0xff]
    %v247 = vld [vmem:[#allocation5 + $0x330] sm:$0xff]
    %v248 = vld [vmem:[#allocation5 + $0x338] sm:$0xff]
    %v249 = vld [vmem:[#allocation5 + $0x340] sm:$0xff]
    %v250 = vld [vmem:[#allocation5 + $0x348] sm:$0xff]
    %v251 = vld [vmem:[#allocation5 + $0x350] sm:$0xff]
    %v252 = vld [vmem:[#allocation5 + $0x358] sm:$0xff]
    %v253 = vld [vmem:[#allocation5 + $0x360] sm:$0xff]
    %v254 = vld [vmem:[#allocation5 + $0x368] sm:$0xff]
    %v255 = vld [vmem:[#allocation5 + $0x370] sm:$0xff]
    %v256 = vld [vmem:[#allocation5 + $0x378] sm:$0xff]
    %v257 = vld [vmem:[#allocation5 + $0x380] sm:$0xff]
    %v258 = vld [vmem:[#allocation5 + $0x388] sm:$0xff]
    %v259 = vld [vmem:[#allocation5 + $0x390] sm:$0xff]
    %v260 = vld [vmem:[#allocation5 + $0x398] sm:$0xff]
    %v261 = vld [vmem:[#allocation5 + $0x3a0] sm:$0xff]
    %v262 = vld [vmem:[#allocation5 + $0x3a8] sm:$0xff]
    %v263 = vld [vmem:[#allocation5 + $0x3b0] sm:$0xff]
    %v264 = vld [vmem:[#allocation5 + $0x3b8] sm:$0xff]
    %v265 = vld [vmem:[#allocation5 + $0x3c0] sm:$0xff]
    %v266 = vld [vmem:[#allocation5 + $0x3c8] sm:$0xff]
    %v267 = vld [vmem:[#allocation5 + $0x3d0] sm:$0xff]
    %v268 = vld [vmem:[#allocation5 + $0x3d8] sm:$0xff]
    %v269 = vld [vmem:[#allocation5 + $0x3e0] sm:$0xff]
    %v270 = vld [vmem:[#allocation5 + $0x3e8] sm:$0xff]
    %v271 = vld [vmem:[#allocation5 + $0x3f0] sm:$0xff]
    %v272 = vld [vmem:[#allocation5 + $0x3f8] sm:$0xff]
    %v273 = vld [vmem:[#allocation5 + $0x400] sm:$0xff]
    %v274 = vld [vmem:[#allocation5 + $0x408] sm:$0xff]
    %v275 = vld [vmem:[#allocation5 + $0x410] sm:$0xff]
    %v276 = vld [vmem:[#allocation5 + $0x418] sm:$0xff]
    %v277 = vld [vmem:[#allocation5 + $0x420] sm:$0xff]
    %v278 = vld [vmem:[#allocation5 + $0x428] sm:$0xff]
    %v279 = vld [vmem:[#allocation5 + $0x430] sm:$0xff]
    %v280 = vld [vmem:[#allocation5 + $0x438] sm:$0xff]
    %v281 = vld [vmem:[#allocation5 + $0x440] sm:$0xff]
    %v282 = vld [vmem:[#allocation5 + $0x448] sm:$0xff]
    %v283 = vld [vmem:[#allocation5 + $0x450] sm:$0xff]
    %v284 = vld [vmem:[#allocation5 + $0x458] sm:$0xff]
    %v285 = vld [vmem:[#allocation5 + $0x460] sm:$0xff]
    %v286 = vld [vmem:[#allocation5 + $0x468] sm:$0xff]
    %v287 = vld [vmem:[#allocation5 + $0x470] sm:$0xff]
    %v288 = vld [vmem:[#allocation5 + $0x478] sm:$0xff]
    %v289 = vld [vmem:[#allocation5 + $0x480] sm:$0xff]
    %v290 = vld [vmem:[#allocation5 + $0x488] sm:$0xff]
    %v291 = vld [vmem:[#allocation5 + $0x490] sm:$0xff]
    %v292 = vld [vmem:[#allocation5 + $0x498] sm:$0xff]
    %v293 = vld [vmem:[#allocation5 + $0x4a0] sm:$0xff]
    %v294 = vld [vmem:[#allocation5 + $0x4a8] sm:$0xff]
    %v295 = vld [vmem:[#allocation5 + $0x4b0] sm:$0xff]
    %v296 = vld [vmem:[#allocation5 + $0x4b8] sm:$0xff]
    %v297 = vld [vmem:[#allocation5 + $0x4c0] sm:$0xff]
    %v298 = vld [vmem:[#allocation5 + $0x4c8] sm:$0xff]
    %v299 = vld [vmem:[#allocation5 + $0x4d0] sm:$0xff]
    %v300 = vld [vmem:[#allocation5 + $0x4d8] sm:$0xff]
    %v301 = vld [vmem:[#allocation5 + $0x4e0] sm:$0xff]
    %v302 = vld [vmem:[#allocation5 + $0x4e8] sm:$0xff]
    %v303 = vld [vmem:[#allocation5 + $0x4f0] sm:$0xff]
    %v304 = vld [vmem:[#allocation5 + $0x4f8] sm:$0xff]
    %v305 = vld [vmem:[#allocation5 + $0x500] sm:$0xff]
    %v306 = vld [vmem:[#allocation5 + $0x508] sm:$0xff]
    %v307 = vld [vmem:[#allocation5 + $0x510] sm:$0xff]
    %v308 = vld [vmem:[#allocation5 + $0x518] sm:$0xff]
    %v309 = vld [vmem:[#allocation5 + $0x520] sm:$0xff]
    %v310 = vld [vmem:[#allocation5 + $0x528] sm:$0xff]
    %v311 = vld [vmem:[#allocation5 + $0x530] sm:$0xff]
    %v312 = vld [vmem:[#allocation5 + $0x538] sm:$0xff]
    %v313 = vld [vmem:[#allocation5 + $0x540] sm:$0xff]
    %v314 = vld [vmem:[#allocation5 + $0x548] sm:$0xff]
    %v315 = vld [vmem:[#allocation5 + $0x550] sm:$0xff]
    %v316 = vld [vmem:[#allocation5 + $0x558] sm:$0xff]
    %v317 = vld [vmem:[#allocation5 + $0x560] sm:$0xff]
    %v318 = vld [vmem:[#allocation5 + $0x568] sm:$0xff]
    %v319 = vld [vmem:[#allocation5 + $0x570] sm:$0xff]
    %v320 = vld [vmem:[#allocation5 + $0x578] sm:$0xff]
    %v321 = vld [vmem:[#allocation5 + $0x580] sm:$0xff]
    %v322 = vld [vmem:[#allocation5 + $0x588] sm:$0xff]
    %v323 = vld [vmem:[#allocation5 + $0x590] sm:$0xff]
    %v324 = vld [vmem:[#allocation5 + $0x598] sm:$0xff]
    %v325 = vld [vmem:[#allocation5 + $0x5a0] sm:$0xff]
    %v326 = vld [vmem:[#allocation5 + $0x5a8] sm:$0xff]
    %v327 = vld [vmem:[#allocation5 + $0x5b0] sm:$0xff]
    %v328 = vld [vmem:[#allocation5 + $0x5b8] sm:$0xff]
    %v329 = vld [vmem:[#allocation5 + $0x5c0] sm:$0xff]
    %v330 = vld [vmem:[#allocation5 + $0x5c8] sm:$0xff]
    %v331 = vld [vmem:[#allocation5 + $0x5d0] sm:$0xff]
    %v332 = vld [vmem:[#allocation5 + $0x5d8] sm:$0xff]
    %v333 = vld [vmem:[#allocation5 + $0x5e0] sm:$0xff]
    %v334 = vld [vmem:[#allocation5 + $0x5e8] sm:$0xff]
    %v335 = vld [vmem:[#allocation5 + $0x5f0] sm:$0xff]
    %v336 = vld [vmem:[#allocation5 + $0x5f8] sm:$0xff]
    %v337 = vld [vmem:[#allocation5 + $0x600] sm:$0xff]
    %v338 = vld [vmem:[#allocation5 + $0x608] sm:$0xff]
    %v339 = vld [vmem:[#allocation5 + $0x610] sm:$0xff]
    %v340 = vld [vmem:[#allocation5 + $0x618] sm:$0xff]
    %v341 = vld [vmem:[#allocation5 + $0x620] sm:$0xff]
    %v342 = vld [vmem:[#allocation5 + $0x628] sm:$0xff]
    %v343 = vld [vmem:[#allocation5 + $0x630] sm:$0xff]
    %v344 = vld [vmem:[#allocation5 + $0x638] sm:$0xff]
    %v345 = vld [vmem:[#allocation5 + $0x640] sm:$0xff]
    %v346 = vld [vmem:[#allocation5 + $0x648] sm:$0xff]
    %v347 = vld [vmem:[#allocation5 + $0x650] sm:$0xff]
    %v348 = vld [vmem:[#allocation5 + $0x658] sm:$0xff]
    %v349 = vld [vmem:[#allocation5 + $0x660] sm:$0xff]
    %v350 = vld [vmem:[#allocation5 + $0x668] sm:$0xff]
    %v351 = vld [vmem:[#allocation5 + $0x670] sm:$0xff]
    %v352 = vld [vmem:[#allocation5 + $0x678] sm:$0xff]
    %v353 = vld [vmem:[#allocation5 + $0x680] sm:$0xff]
    %v354 = vld [vmem:[#allocation5 + $0x688] sm:$0xff]
    %v355 = vld [vmem:[#allocation5 + $0x690] sm:$0xff]
    %v356 = vld [vmem:[#allocation5 + $0x698] sm:$0xff]
    %v357 = vld [vmem:[#allocation5 + $0x6a0] sm:$0xff]
    %v358 = vld [vmem:[#allocation5 + $0x6a8] sm:$0xff]
    %v359 = vld [vmem:[#allocation5 + $0x6b0] sm:$0xff]
    %v360 = vld [vmem:[#allocation5 + $0x6b8] sm:$0xff]
    %v361 = vld [vmem:[#allocation5 + $0x6c0] sm:$0xff]
    %v362 = vld [vmem:[#allocation5 + $0x6c8] sm:$0xff]
    %v363 = vld [vmem:[#allocation5 + $0x6d0] sm:$0xff]
    %v364 = vld [vmem:[#allocation5 + $0x6d8] sm:$0xff]
    %v365 = vld [vmem:[#allocation5 + $0x6e0] sm:$0xff]
    %v366 = vld [vmem:[#allocation5 + $0x6e8] sm:$0xff]
    %v367 = vld [vmem:[#allocation5 + $0x6f0] sm:$0xff]
    %v368 = vld [vmem:[#allocation5 + $0x6f8] sm:$0xff]
    %v369 = vld [vmem:[#allocation5 + $0x700] sm:$0xff]
    %v370 = vld [vmem:[#allocation5 + $0x708] sm:$0xff]
    %v371 = vld [vmem:[#allocation5 + $0x710] sm:$0xff]
    %v372 = vld [vmem:[#allocation5 + $0x718] sm:$0xff]
    %v373 = vld [vmem:[#allocation5 + $0x720] sm:$0xff]
    %v374 = vld [vmem:[#allocation5 + $0x728] sm:$0xff]
    %v375 = vld [vmem:[#allocation5 + $0x730] sm:$0xff]
    %v376 = vld [vmem:[#allocation5 + $0x738] sm:$0xff]
    %v377 = vld [vmem:[#allocation5 + $0x740] sm:$0xff]
    %v378 = vld [vmem:[#allocation5 + $0x748] sm:$0xff]
    %v379 = vld [vmem:[#allocation5 + $0x750] sm:$0xff]
    %v380 = vld [vmem:[#allocation5 + $0x758] sm:$0xff]
    %v381 = vld [vmem:[#allocation5 + $0x760] sm:$0xff]
    %v382 = vld [vmem:[#allocation5 + $0x768] sm:$0xff]
    %v383 = vld [vmem:[#allocation5 + $0x770] sm:$0xff]
    %v384 = vld [vmem:[#allocation5 + $0x778] sm:$0xff]
    %v385 = vld [vmem:[#allocation5 + $0x780] sm:$0xff]
    %v386 = vld [vmem:[#allocation5 + $0x788] sm:$0xff]
    %v387 = vld [vmem:[#allocation5 + $0x790] sm:$0xff]
    %v388 = vld [vmem:[#allocation5 + $0x798] sm:$0xff]
    %v389 = vld [vmem:[#allocation5 + $0x7a0] sm:$0xff]
    %v390 = vld [vmem:[#allocation5 + $0x7a8] sm:$0xff]
    %v391 = vld [vmem:[#allocation5 + $0x7b0] sm:$0xff]
    %v392 = vld [vmem:[#allocation5 + $0x7b8] sm:$0xff]
    %v393 = vld [vmem:[#allocation5 + $0x7c0] sm:$0xff]
    %v394 = vld [vmem:[#allocation5 + $0x7c8] sm:$0xff]
    %v395 = vld [vmem:[#allocation5 + $0x7d0] sm:$0xff]
    %v396 = vld [vmem:[#allocation5 + $0x7d8] sm:$0xff]
    %v397 = vld [vmem:[#allocation5 + $0x7e0] sm:$0xff]
    %v398 = vld [vmem:[#allocation5 + $0x7e8] sm:$0xff]
    %v399 = vld [vmem:[#allocation5 + $0x7f0] sm:$0xff]
    %v400 = vld [vmem:[#allocation5 + $0x7f8] sm:$0xff]
    %v401 = vld [vmem:[#allocation5 + $0x800] sm:$0xff]
    %v402 = vld [vmem:[#allocation5 + $0x808] sm:$0xff]
    %v403 = vld [vmem:[#allocation5 + $0x810] sm:$0xff]
    %v404 = vld [vmem:[#allocation5 + $0x818] sm:$0xff]
    %v405 = vld [vmem:[#allocation5 + $0x820] sm:$0xff]
    %v406 = vld [vmem:[#allocation5 + $0x828] sm:$0xff]
    %v407 = vld [vmem:[#allocation5 + $0x830] sm:$0xff]
    %v408 = vld [vmem:[#allocation5 + $0x838] sm:$0xff]
    %v409 = vld [vmem:[#allocation5 + $0x840] sm:$0xff]
    %v410 = vld [vmem:[#allocation5 + $0x848] sm:$0xff]
    %v411 = vld [vmem:[#allocation5 + $0x850] sm:$0xff]
    %v412 = vld [vmem:[#allocation5 + $0x858] sm:$0xff]
    %v413 = vld [vmem:[#allocation5 + $0x860] sm:$0xff]
    %v414 = vld [vmem:[#allocation5 + $0x868] sm:$0xff]
    %v415 = vld [vmem:[#allocation5 + $0x870] sm:$0xff]
    %v416 = vld [vmem:[#allocation5 + $0x878] sm:$0xff]
    %v417 = vld [vmem:[#allocation5 + $0x880] sm:$0xff]
    %v418 = vld [vmem:[#allocation5 + $0x888] sm:$0xff]
    %v419 = vld [vmem:[#allocation5 + $0x890] sm:$0xff]
    %v420 = vld [vmem:[#allocation5 + $0x898] sm:$0xff]
    %v421 = vld [vmem:[#allocation5 + $0x8a0] sm:$0xff]
    %v422 = vld [vmem:[#allocation5 + $0x8a8] sm:$0xff]
    %v423 = vld [vmem:[#allocation5 + $0x8b0] sm:$0xff]
    %v424 = vld [vmem:[#allocation5 + $0x8b8] sm:$0xff]
    %v425 = vld [vmem:[#allocation5 + $0x8c0] sm:$0xff]
    %v426 = vld [vmem:[#allocation5 + $0x8c8] sm:$0xff]
    %v427 = vld [vmem:[#allocation5 + $0x8d0] sm:$0xff]
    %v428 = vld [vmem:[#allocation5 + $0x8d8] sm:$0xff]
    %v429 = vld [vmem:[#allocation5 + $0x8e0] sm:$0xff]
    %v430 = vld [vmem:[#allocation5 + $0x8e8] sm:$0xff]
    %v431 = vld [vmem:[#allocation5 + $0x8f0] sm:$0xff]
    %v432 = vld [vmem:[#allocation5 + $0x8f8] sm:$0xff]
    %v433 = vld [vmem:[#allocation5 + $0x900] sm:$0xff]
    %v434 = vld [vmem:[#allocation5 + $0x908] sm:$0xff]
    %v435 = vld [vmem:[#allocation5 + $0x910] sm:$0xff]
    %v436 = vld [vmem:[#allocation5 + $0x918] sm:$0xff]
    %v437 = vld [vmem:[#allocation5 + $0x920] sm:$0xff]
    %v438 = vld [vmem:[#allocation5 + $0x928] sm:$0xff]
    %v439 = vld [vmem:[#allocation5 + $0x930] sm:$0xff]
    %v440 = vld [vmem:[#allocation5 + $0x938] sm:$0xff]
    %v441 = vld [vmem:[#allocation5 + $0x940] sm:$0xff]
    %v442 = vld [vmem:[#allocation5 + $0x948] sm:$0xff]
    %v443 = vld [vmem:[#allocation5 + $0x950] sm:$0xff]
    %v444 = vld [vmem:[#allocation5 + $0x958] sm:$0xff]
    %v445 = vld [vmem:[#allocation5 + $0x960] sm:$0xff]
    %v446 = vld [vmem:[#allocation5 + $0x968] sm:$0xff]
    %v447 = vld [vmem:[#allocation5 + $0x970] sm:$0xff]
    %v448 = vld [vmem:[#allocation5 + $0x978] sm:$0xff]
    %v449 = vld [vmem:[#allocation5 + $0x980] sm:$0xff]
    %v450 = vld [vmem:[#allocation5 + $0x988] sm:$0xff]
    %v451 = vld [vmem:[#allocation5 + $0x990] sm:$0xff]
    %v452 = vld [vmem:[#allocation5 + $0x998] sm:$0xff]
    %v453 = vld [vmem:[#allocation5 + $0x9a0] sm:$0xff]
    %v454 = vld [vmem:[#allocation5 + $0x9a8] sm:$0xff]
    %v455 = vld [vmem:[#allocation5 + $0x9b0] sm:$0xff]
    %v456 = vld [vmem:[#allocation5 + $0x9b8] sm:$0xff]
    %v457 = vld [vmem:[#allocation5 + $0x9c0] sm:$0xff]
    %v458 = vld [vmem:[#allocation5 + $0x9c8] sm:$0xff]
    %v459 = vld [vmem:[#allocation5 + $0x9d0] sm:$0xff]
    %v460 = vld [vmem:[#allocation5 + $0x9d8] sm:$0xff]
    %v461 = vld [vmem:[#allocation5 + $0x9e0] sm:$0xff]
    %v462 = vld [vmem:[#allocation5 + $0x9e8] sm:$0xff]
    %v463 = vld [vmem:[#allocation5 + $0x9f0] sm:$0xff]
    %v464 = vld [vmem:[#allocation5 + $0x9f8] sm:$0xff]
    %v465 = vld [vmem:[#allocation5 + $0xa00] sm:$0xff]
    %v466 = vld [vmem:[#allocation5 + $0xa08] sm:$0xff]
    %v467 = vld [vmem:[#allocation5 + $0xa10] sm:$0xff]
    %v468 = vld [vmem:[#allocation5 + $0xa18] sm:$0xff]
    %v469 = vld [vmem:[#allocation5 + $0xa20] sm:$0xff]
    %v470 = vld [vmem:[#allocation5 + $0xa28] sm:$0xff]
    %v471 = vld [vmem:[#allocation5 + $0xa30] sm:$0xff]
    %v472 = vld [vmem:[#allocation5 + $0xa38] sm:$0xff]
    %v473 = vld [vmem:[#allocation5 + $0xa40] sm:$0xff]
    %v474 = vld [vmem:[#allocation5 + $0xa48] sm:$0xff]
    %v475 = vld [vmem:[#allocation5 + $0xa50] sm:$0xff]
    %v476 = vld [vmem:[#allocation5 + $0xa58] sm:$0xff]
    %v477 = vld [vmem:[#allocation5 + $0xa60] sm:$0xff]
    %v478 = vld [vmem:[#allocation5 + $0xa68] sm:$0xff]
    %v479 = vld [vmem:[#allocation5 + $0xa70] sm:$0xff]
    %v480 = vld [vmem:[#allocation5 + $0xa78] sm:$0xff]
    %v481 = vld [vmem:[#allocation5 + $0xa80] sm:$0xff]
    %v482 = vld [vmem:[#allocation5 + $0xa88] sm:$0xff]
    %v483 = vld [vmem:[#allocation5 + $0xa90] sm:$0xff]
    %v484 = vld [vmem:[#allocation5 + $0xa98] sm:$0xff]
    %v485 = vld [vmem:[#allocation5 + $0xaa0] sm:$0xff]
    %v486 = vld [vmem:[#allocation5 + $0xaa8] sm:$0xff]
    %v487 = vld [vmem:[#allocation5 + $0xab0] sm:$0xff]
    %v488 = vld [vmem:[#allocation5 + $0xab8] sm:$0xff]
    %v489 = vld [vmem:[#allocation5 + $0xac0] sm:$0xff]
    %v490 = vld [vmem:[#allocation5 + $0xac8] sm:$0xff]
    %v491 = vld [vmem:[#allocation5 + $0xad0] sm:$0xff]
    %v492 = vld [vmem:[#allocation5 + $0xad8] sm:$0xff]
    %v493 = vld [vmem:[#allocation5 + $0xae0] sm:$0xff]
    %v494 = vld [vmem:[#allocation5 + $0xae8] sm:$0xff]
    %v495 = vld [vmem:[#allocation5 + $0xaf0] sm:$0xff]
    %v496 = vld [vmem:[#allocation5 + $0xaf8] sm:$0xff]
    %v497 = vld [vmem:[#allocation5 + $0xb00] sm:$0xff]
    %v498 = vld [vmem:[#allocation5 + $0xb08] sm:$0xff]
    %v499 = vld [vmem:[#allocation5 + $0xb10] sm:$0xff]
    %v500 = vld [vmem:[#allocation5 + $0xb18] sm:$0xff]
    %v501 = vld [vmem:[#allocation5 + $0xb20] sm:$0xff]
    %v502 = vld [vmem:[#allocation5 + $0xb28] sm:$0xff]
    %v503 = vld [vmem:[#allocation5 + $0xb30] sm:$0xff]
    %v504 = vld [vmem:[#allocation5 + $0xb38] sm:$0xff]
    %v505 = vld [vmem:[#allocation5 + $0xb40] sm:$0xff]
    %v506 = vld [vmem:[#allocation5 + $0xb48] sm:$0xff]
    %v507 = vld [vmem:[#allocation5 + $0xb50] sm:$0xff]
    %v508 = vld [vmem:[#allocation5 + $0xb58] sm:$0xff]
    %v509 = vld [vmem:[#allocation5 + $0xb60] sm:$0xff]
    %v510 = vld [vmem:[#allocation5 + $0xb68] sm:$0xff]
    %v511 = vld [vmem:[#allocation5 + $0xb70] sm:$0xff]
    %v512 = vld [vmem:[#allocation5 + $0xb78] sm:$0xff]
    %v513 = vld [vmem:[#allocation5 + $0xb80] sm:$0xff]
    %v514 = vld [vmem:[#allocation5 + $0xb88] sm:$0xff]
    %v515 = vld [vmem:[#allocation5 + $0xb90] sm:$0xff]
    %v516 = vld [vmem:[#allocation5 + $0xb98] sm:$0xff]
    %v517 = vld [vmem:[#allocation5 + $0xba0] sm:$0xff]
    %v518 = vld [vmem:[#allocation5 + $0xba8] sm:$0xff]
    %v519 = vld [vmem:[#allocation5 + $0xbb0] sm:$0xff]
    %v520 = vld [vmem:[#allocation5 + $0xbb8] sm:$0xff]
    %v521 = vld [vmem:[#allocation5 + $0xbc0] sm:$0xff]
    %v522 = vld [vmem:[#allocation5 + $0xbc8] sm:$0xff]
    %v523 = vld [vmem:[#allocation5 + $0xbd0] sm:$0xff]
    %v524 = vld [vmem:[#allocation5 + $0xbd8] sm:$0xff]
    %v525 = vld [vmem:[#allocation5 + $0xbe0] sm:$0xff]
    %v526 = vld [vmem:[#allocation5 + $0xbe8] sm:$0xff]
    %v527 = vld [vmem:[#allocation5 + $0xbf0] sm:$0xff]
    %v528 = vld [vmem:[#allocation5 + $0xbf8] sm:$0xff]
    %v529 = vld [vmem:[#allocation5 + $0xc00] sm:$0xff]
    %v530 = vld [vmem:[#allocation5 + $0xc08] sm:$0xff]
    %v531 = vld [vmem:[#allocation5 + $0xc10] sm:$0xff]
    %v532 = vld [vmem:[#allocation5 + $0xc18] sm:$0xff]
    %v533 = vld [vmem:[#allocation5 + $0xc20] sm:$0xff]
    %v534 = vld [vmem:[#allocation5 + $0xc28] sm:$0xff]
    %v535 = vld [vmem:[#allocation5 + $0xc30] sm:$0xff]
    %v536 = vld [vmem:[#allocation5 + $0xc38] sm:$0xff]
    %v537 = vld [vmem:[#allocation5 + $0xc40] sm:$0xff]
    %v538 = vld [vmem:[#allocation5 + $0xc48] sm:$0xff]
    %v539 = vld [vmem:[#allocation5 + $0xc50] sm:$0xff]
    %v540 = vld [vmem:[#allocation5 + $0xc58] sm:$0xff]
    %v541 = vld [vmem:[#allocation5 + $0xc60] sm:$0xff]
    %v542 = vld [vmem:[#allocation5 + $0xc68] sm:$0xff]
    %v543 = vld [vmem:[#allocation5 + $0xc70] sm:$0xff]
    %v544 = vld [vmem:[#allocation5 + $0xc78] sm:$0xff]
    %v545 = vld [vmem:[#allocation5 + $0xc80] sm:$0xff]
    %v546 = vld [vmem:[#allocation5 + $0xc88] sm:$0xff]
    %v547 = vld [vmem:[#allocation5 + $0xc90] sm:$0xff]
    %v548 = vld [vmem:[#allocation5 + $0xc98] sm:$0xff]
    %v549 = vld [vmem:[#allocation5 + $0xca0] sm:$0xff]
    %v550 = vld [vmem:[#allocation5 + $0xca8] sm:$0xff]
    %v551 = vld [vmem:[#allocation5 + $0xcb0] sm:$0xff]
    %v552 = vld [vmem:[#allocation5 + $0xcb8] sm:$0xff]
    %v553 = vld [vmem:[#allocation5 + $0xcc0] sm:$0xff]
    %v554 = vld [vmem:[#allocation5 + $0xcc8] sm:$0xff]
    %v555 = vld [vmem:[#allocation5 + $0xcd0] sm:$0xff]
    %v556 = vld [vmem:[#allocation5 + $0xcd8] sm:$0xff]
    %v557 = vld [vmem:[#allocation5 + $0xce0] sm:$0xff]
    %v558 = vld [vmem:[#allocation5 + $0xce8] sm:$0xff]
    %v559 = vld [vmem:[#allocation5 + $0xcf0] sm:$0xff]
    %v560 = vld [vmem:[#allocation5 + $0xcf8] sm:$0xff]
    %v561 = vld [vmem:[#allocation5 + $0xd00] sm:$0xff]
    %v562 = vld [vmem:[#allocation5 + $0xd08] sm:$0xff]
    %v563 = vld [vmem:[#allocation5 + $0xd10] sm:$0xff]
    %v564 = vld [vmem:[#allocation5 + $0xd18] sm:$0xff]
    %v565 = vld [vmem:[#allocation5 + $0xd20] sm:$0xff]
    %v566 = vld [vmem:[#allocation5 + $0xd28] sm:$0xff]
    %v567 = vld [vmem:[#allocation5 + $0xd30] sm:$0xff]
    %v568 = vld [vmem:[#allocation5 + $0xd38] sm:$0xff]
    %v569 = vld [vmem:[#allocation5 + $0xd40] sm:$0xff]
    %v570 = vld [vmem:[#allocation5 + $0xd48] sm:$0xff]
    %v571 = vld [vmem:[#allocation5 + $0xd50] sm:$0xff]
    %v572 = vld [vmem:[#allocation5 + $0xd58] sm:$0xff]
    %v573 = vld [vmem:[#allocation5 + $0xd60] sm:$0xff]
    %v574 = vld [vmem:[#allocation5 + $0xd68] sm:$0xff]
    %v575 = vld [vmem:[#allocation5 + $0xd70] sm:$0xff]
    %v576 = vld [vmem:[#allocation5 + $0xd78] sm:$0xff]
    %v577 = vld [vmem:[#allocation5 + $0xd80] sm:$0xff]
    %v578 = vld [vmem:[#allocation5 + $0xd88] sm:$0xff]
    %v579 = vld [vmem:[#allocation5 + $0xd90] sm:$0xff]
    %v580 = vld [vmem:[#allocation5 + $0xd98] sm:$0xff]
    %v581 = vld [vmem:[#allocation5 + $0xda0] sm:$0xff]
    %v582 = vld [vmem:[#allocation5 + $0xda8] sm:$0xff]
    %v583 = vld [vmem:[#allocation5 + $0xdb0] sm:$0xff]
    %v584 = vld [vmem:[#allocation5 + $0xdb8] sm:$0xff]
    %v585 = vld [vmem:[#allocation5 + $0xdc0] sm:$0xff]
    %v586 = vld [vmem:[#allocation5 + $0xdc8] sm:$0xff]
    %v587 = vld [vmem:[#allocation5 + $0xdd0] sm:$0xff]
    %v588 = vld [vmem:[#allocation5 + $0xdd8] sm:$0xff]
    %v589 = vld [vmem:[#allocation5 + $0xde0] sm:$0xff]
    %v590 = vld [vmem:[#allocation5 + $0xde8] sm:$0xff]
    %v591 = vld [vmem:[#allocation5 + $0xdf0] sm:$0xff]
    %v592 = vld [vmem:[#allocation5 + $0xdf8] sm:$0xff]
    %v593 = vld [vmem:[#allocation5 + $0xe00] sm:$0xff]
    %v594 = vld [vmem:[#allocation5 + $0xe08] sm:$0xff]
    %v595 = vld [vmem:[#allocation5 + $0xe10] sm:$0xff]
    %v596 = vld [vmem:[#allocation5 + $0xe18] sm:$0xff]
    %v597 = vld [vmem:[#allocation5 + $0xe20] sm:$0xff]
    %v598 = vld [vmem:[#allocation5 + $0xe28] sm:$0xff]
    %v599 = vld [vmem:[#allocation5 + $0xe30] sm:$0xff]
    %v600 = vld [vmem:[#allocation5 + $0xe38] sm:$0xff]
    %v601 = vld [vmem:[#allocation5 + $0xe40] sm:$0xff]
    %v602 = vld [vmem:[#allocation5 + $0xe48] sm:$0xff]
    %v603 = vld [vmem:[#allocation5 + $0xe50] sm:$0xff]
    %v604 = vld [vmem:[#allocation5 + $0xe58] sm:$0xff]
    %v605 = vld [vmem:[#allocation5 + $0xe60] sm:$0xff]
    %v606 = vld [vmem:[#allocation5 + $0xe68] sm:$0xff]
    %v607 = vld [vmem:[#allocation5 + $0xe70] sm:$0xff]
    %v608 = vld [vmem:[#allocation5 + $0xe78] sm:$0xff]
    %v609 = vld [vmem:[#allocation5 + $0xe80] sm:$0xff]
    %v610 = vld [vmem:[#allocation5 + $0xe88] sm:$0xff]
    %v611 = vld [vmem:[#allocation5 + $0xe90] sm:$0xff]
    %v612 = vld [vmem:[#allocation5 + $0xe98] sm:$0xff]
    %v613 = vld [vmem:[#allocation5 + $0xea0] sm:$0xff]
    %v614 = vld [vmem:[#allocation5 + $0xea8] sm:$0xff]
    %v615 = vld [vmem:[#allocation5 + $0xeb0] sm:$0xff]
    %v616 = vld [vmem:[#allocation5 + $0xeb8] sm:$0xff]
    %v617 = vld [vmem:[#allocation5 + $0xec0] sm:$0xff]
    %v618 = vld [vmem:[#allocation5 + $0xec8] sm:$0xff]
    %v619 = vld [vmem:[#allocation5 + $0xed0] sm:$0xff]
    %v620 = vld [vmem:[#allocation5 + $0xed8] sm:$0xff]
    %v621 = vld [vmem:[#allocation5 + $0xee0] sm:$0xff]
    %v622 = vld [vmem:[#allocation5 + $0xee8] sm:$0xff]
    %v623 = vld [vmem:[#allocation5 + $0xef0] sm:$0xff]
    %v624 = vld [vmem:[#allocation5 + $0xef8] sm:$0xff]
    %v625 = vld [vmem:[#allocation5 + $0xf00] sm:$0xff]
    %v626 = vld [vmem:[#allocation5 + $0xf08] sm:$0xff]
    %v627 = vld [vmem:[#allocation5 + $0xf10] sm:$0xff]
    %v628 = vld [vmem:[#allocation5 + $0xf18] sm:$0xff]
    %v629 = vld [vmem:[#allocation5 + $0xf20] sm:$0xff]
    %v630 = vld [vmem:[#allocation5 + $0xf28] sm:$0xff]
    %v631 = vld [vmem:[#allocation5 + $0xf30] sm:$0xff]
    %v632 = vld [vmem:[#allocation5 + $0xf38] sm:$0xff]
    %v633 = vld [vmem:[#allocation5 + $0xf40] sm:$0xff]
    %v634 = vld [vmem:[#allocation5 + $0xf48] sm:$0xff]
    %v635 = vld [vmem:[#allocation5 + $0xf50] sm:$0xff]
    %v636 = vld [vmem:[#allocation5 + $0xf58] sm:$0xff]
    %v637 = vld [vmem:[#allocation5 + $0xf60] sm:$0xff]
    %v638 = vld [vmem:[#allocation5 + $0xf68] sm:$0xff]
    %v639 = vld [vmem:[#allocation5 + $0xf70] sm:$0xff]
    %v640 = vld [vmem:[#allocation5 + $0xf78] sm:$0xff]
    %v641 = vld [vmem:[#allocation5 + $0xf80] sm:$0xff]
    %v642 = vld [vmem:[#allocation5 + $0xf88] sm:$0xff]
    %v643 = vld [vmem:[#allocation5 + $0xf90] sm:$0xff]
    %v644 = vld [vmem:[#allocation5 + $0xf98] sm:$0xff]
    %v645 = vld [vmem:[#allocation5 + $0xfa0] sm:$0xff]
    %v646 = vld [vmem:[#allocation5 + $0xfa8] sm:$0xff]
    %v647 = vld [vmem:[#allocation5 + $0xfb0] sm:$0xff]
    %v648 = vld [vmem:[#allocation5 + $0xfb8] sm:$0xff]
    %v649 = vld [vmem:[#allocation5 + $0xfc0] sm:$0xff]
    %v650 = vld [vmem:[#allocation5 + $0xfc8] sm:$0xff]
    %v651 = vld [vmem:[#allocation5 + $0xfd0] sm:$0xff]
    %v652 = vld [vmem:[#allocation5 + $0xfd8] sm:$0xff]
    %v653 = vld [vmem:[#allocation5 + $0xfe0] sm:$0xff]
    %v654 = vld [vmem:[#allocation5 + $0xfe8] sm:$0xff]
    %v655 = vld [vmem:[#allocation5 + $0xff0] sm:$0xff]
    %v656 = vld [vmem:[#allocation5 + $0xff8] sm:$0xff]
    %v657 = vld [vmem:[#allocation5 + $0x1000] sm:$0xff]
    %v658 = vld [vmem:[#allocation5 + $0x1008] sm:$0xff]
    %v659 = vld [vmem:[#allocation5 + $0x1010] sm:$0xff]
    %v660 = vld [vmem:[#allocation5 + $0x1018] sm:$0xff]
    %v661 = vld [vmem:[#allocation5 + $0x1020] sm:$0xff]
    %v662 = vld [vmem:[#allocation5 + $0x1028] sm:$0xff]
    %v663 = vld [vmem:[#allocation5 + $0x1030] sm:$0xff]
    %v664 = vld [vmem:[#allocation5 + $0x1038] sm:$0xff]
    %v665 = vld [vmem:[#allocation5 + $0x1040] sm:$0xff]
    %v666 = vld [vmem:[#allocation5 + $0x1048] sm:$0xff]
    %v667 = vld [vmem:[#allocation5 + $0x1050] sm:$0xff]
    %v668 = vld [vmem:[#allocation5 + $0x1058] sm:$0xff]
    %v669 = vld [vmem:[#allocation5 + $0x1060] sm:$0xff]
    %v670 = vld [vmem:[#allocation5 + $0x1068] sm:$0xff]
    %v671 = vld [vmem:[#allocation5 + $0x1070] sm:$0xff]
    %v672 = vld [vmem:[#allocation5 + $0x1078] sm:$0xff]
    %v673 = vld [vmem:[#allocation5 + $0x1080] sm:$0xff]
    %v674 = vld [vmem:[#allocation5 + $0x1088] sm:$0xff]
    %v675 = vld [vmem:[#allocation5 + $0x1090] sm:$0xff]
    %v676 = vld [vmem:[#allocation5 + $0x1098] sm:$0xff]
    %v677 = vld [vmem:[#allocation5 + $0x10a0] sm:$0xff]
    %v678 = vld [vmem:[#allocation5 + $0x10a8] sm:$0xff]
    %v679 = vld [vmem:[#allocation5 + $0x10b0] sm:$0xff]
    %v680 = vld [vmem:[#allocation5 + $0x10b8] sm:$0xff]
    %v681 = vld [vmem:[#allocation5 + $0x10c0] sm:$0xff]
    %v682 = vld [vmem:[#allocation5 + $0x10c8] sm:$0xff]
    %v683 = vld [vmem:[#allocation5 + $0x10d0] sm:$0xff]
    %v684 = vld [vmem:[#allocation5 + $0x10d8] sm:$0xff]
    %v685 = vld [vmem:[#allocation5 + $0x10e0] sm:$0xff]
    %v686 = vld [vmem:[#allocation5 + $0x10e8] sm:$0xff]
    %v687 = vld [vmem:[#allocation5 + $0x10f0] sm:$0xff]
    %v688 = vld [vmem:[#allocation5 + $0x10f8] sm:$0xff]
    %v689 = vld [vmem:[#allocation5 + $0x1100] sm:$0xff]
    %v690 = vld [vmem:[#allocation5 + $0x1108] sm:$0xff]
    %v691 = vld [vmem:[#allocation5 + $0x1110] sm:$0xff]
    %v692 = vld [vmem:[#allocation5 + $0x1118] sm:$0xff]
    %v693 = vld [vmem:[#allocation5 + $0x1120] sm:$0xff]
    %v694 = vld [vmem:[#allocation5 + $0x1128] sm:$0xff]
    %v695 = vld [vmem:[#allocation5 + $0x1130] sm:$0xff]
    %v696 = vld [vmem:[#allocation5 + $0x1138] sm:$0xff]
    %v697 = vld [vmem:[#allocation5 + $0x1140] sm:$0xff]
    %v698 = vld [vmem:[#allocation5 + $0x1148] sm:$0xff]
    %v699 = vld [vmem:[#allocation5 + $0x1150] sm:$0xff]
    %v700 = vld [vmem:[#allocation5 + $0x1158] sm:$0xff]
    %v701 = vld [vmem:[#allocation5 + $0x1160] sm:$0xff]
    %v702 = vld [vmem:[#allocation5 + $0x1168] sm:$0xff]
    %v703 = vld [vmem:[#allocation5 + $0x1170] sm:$0xff]
    %v704 = vld [vmem:[#allocation5 + $0x1178] sm:$0xff]
    %v705 = vld [vmem:[#allocation5 + $0x1180] sm:$0xff]
    %v706 = vld [vmem:[#allocation5 + $0x1188] sm:$0xff]
    %v707 = vld [vmem:[#allocation5 + $0x1190] sm:$0xff]
    %v708 = vld [vmem:[#allocation5 + $0x1198] sm:$0xff]
    %v709 = vld [vmem:[#allocation5 + $0x11a0] sm:$0xff]
    %v710 = vld [vmem:[#allocation5 + $0x11a8] sm:$0xff]
    %v711 = vld [vmem:[#allocation5 + $0x11b0] sm:$0xff]
    %v712 = vld [vmem:[#allocation5 + $0x11b8] sm:$0xff]
    %v713 = vld [vmem:[#allocation5 + $0x11c0] sm:$0xff]
    %v714 = vld [vmem:[#allocation5 + $0x11c8] sm:$0xff]
    %v715 = vld [vmem:[#allocation5 + $0x11d0] sm:$0xff]
    %v716 = vld [vmem:[#allocation5 + $0x11d8] sm:$0xff]
    %v717 = vld [vmem:[#allocation5 + $0x11e0] sm:$0xff]
    %v718 = vld [vmem:[#allocation5 + $0x11e8] sm:$0xff]
    %v719 = vld [vmem:[#allocation5 + $0x11f0] sm:$0xff]
    %v720 = vld [vmem:[#allocation5 + $0x11f8] sm:$0xff]
    %v721 = vld [vmem:[#allocation5 + $0x1200] sm:$0xff]
    %v722 = vld [vmem:[#allocation5 + $0x1208] sm:$0xff]
    %v723 = vld [vmem:[#allocation5 + $0x1210] sm:$0xff]
    %v724 = vld [vmem:[#allocation5 + $0x1218] sm:$0xff]
    %v725 = vld [vmem:[#allocation5 + $0x1220] sm:$0xff]
    %v726 = vld [vmem:[#allocation5 + $0x1228] sm:$0xff]
    %v727 = vld [vmem:[#allocation5 + $0x1230] sm:$0xff]
    %v728 = vld [vmem:[#allocation5 + $0x1238] sm:$0xff]
    %v729 = vld [vmem:[#allocation5 + $0x1240] sm:$0xff]
    %v730 = vld [vmem:[#allocation5 + $0x1248] sm:$0xff]
    %v731 = vld [vmem:[#allocation5 + $0x1250] sm:$0xff]
    %v732 = vld [vmem:[#allocation5 + $0x1258] sm:$0xff]
    %v733 = vld [vmem:[#allocation5 + $0x1260] sm:$0xff]
    %v734 = vld [vmem:[#allocation5 + $0x1268] sm:$0xff]
    %v735 = vld [vmem:[#allocation5 + $0x1270] sm:$0xff]
    %v736 = vld [vmem:[#allocation5 + $0x1278] sm:$0xff]
    %v737 = vld [vmem:[#allocation5 + $0x1280] sm:$0xff]
    %v738 = vld [vmem:[#allocation5 + $0x1288] sm:$0xff]
    %v739 = vld [vmem:[#allocation5 + $0x1290] sm:$0xff]
    %v740 = vld [vmem:[#allocation5 + $0x1298] sm:$0xff]
    %v741 = vld [vmem:[#allocation5 + $0x12a0] sm:$0xff]
    %v742 = vld [vmem:[#allocation5 + $0x12a8] sm:$0xff]
    %v743 = vld [vmem:[#allocation5 + $0x12b0] sm:$0xff]
    %v744 = vld [vmem:[#allocation5 + $0x12b8] sm:$0xff]
    %v745 = vld [vmem:[#allocation5 + $0x12c0] sm:$0xff]
    %v746 = vld [vmem:[#allocation5 + $0x12c8] sm:$0xff]
    %v747 = vld [vmem:[#allocation5 + $0x12d0] sm:$0xff]
    %v748 = vld [vmem:[#allocation5 + $0x12d8] sm:$0xff]
    %v749 = vld [vmem:[#allocation5 + $0x12e0] sm:$0xff]
    %v750 = vld [vmem:[#allocation5 + $0x12e8] sm:$0xff]
    %v751 = vld [vmem:[#allocation5 + $0x12f0] sm:$0xff]
    %v752 = vld [vmem:[#allocation5 + $0x12f8] sm:$0xff]
    %v753 = vld [vmem:[#allocation5 + $0x1300] sm:$0xff]
    %v754 = vld [vmem:[#allocation5 + $0x1308] sm:$0xff]
    %v755 = vld [vmem:[#allocation5 + $0x1310] sm:$0xff]
    %v756 = vld [vmem:[#allocation5 + $0x1318] sm:$0xff]
    %v757 = vld [vmem:[#allocation5 + $0x1320] sm:$0xff]
    %v758 = vld [vmem:[#allocation5 + $0x1328] sm:$0xff]
    %v759 = vld [vmem:[#allocation5 + $0x1330] sm:$0xff]
    %v760 = vld [vmem:[#allocation5 + $0x1338] sm:$0xff]
    %v761 = vld [vmem:[#allocation5 + $0x1340] sm:$0xff]
    %v762 = vld [vmem:[#allocation5 + $0x1348] sm:$0xff]
    %v763 = vld [vmem:[#allocation5 + $0x1350] sm:$0xff]
    %v764 = vld [vmem:[#allocation5 + $0x1358] sm:$0xff]
    %v765 = vld [vmem:[#allocation5 + $0x1360] sm:$0xff]
    %v766 = vld [vmem:[#allocation5 + $0x1368] sm:$0xff]
    %v767 = vld [vmem:[#allocation5 + $0x1370] sm:$0xff]
    %v768 = vld [vmem:[#allocation5 + $0x1378] sm:$0xff]
    %v769 = vld [vmem:[#allocation5 + $0x1380] sm:$0xff]
    %v770 = vld [vmem:[#allocation5 + $0x1388] sm:$0xff]
    %v771 = vld [vmem:[#allocation5 + $0x1390] sm:$0xff]
    %v772 = vld [vmem:[#allocation5 + $0x1398] sm:$0xff]
    %v773 = vld [vmem:[#allocation5 + $0x13a0] sm:$0xff]
    %v774 = vld [vmem:[#allocation5 + $0x13a8] sm:$0xff]
    %v775 = vld [vmem:[#allocation5 + $0x13b0] sm:$0xff]
    %v776 = vld [vmem:[#allocation5 + $0x13b8] sm:$0xff]
    %v777 = vld [vmem:[#allocation5 + $0x13c0] sm:$0xff]
    %v778 = vld [vmem:[#allocation5 + $0x13c8] sm:$0xff]
    %v779 = vld [vmem:[#allocation5 + $0x13d0] sm:$0xff]
    %v780 = vld [vmem:[#allocation5 + $0x13d8] sm:$0xff]
    %v781 = vld [vmem:[#allocation5 + $0x13e0] sm:$0xff]
    %v782 = vld [vmem:[#allocation5 + $0x13e8] sm:$0xff]
    %v783 = vld [vmem:[#allocation5 + $0x13f0] sm:$0xff]
    %v784 = vld [vmem:[#allocation5 + $0x13f8] sm:$0xff]
    %v785 = vld [vmem:[#allocation5 + $0x1400] sm:$0xff]
    %v786 = vld [vmem:[#allocation5 + $0x1408] sm:$0xff]
    %v787 = vld [vmem:[#allocation5 + $0x1410] sm:$0xff]
    %v788 = vld [vmem:[#allocation5 + $0x1418] sm:$0xff]
    %v789 = vld [vmem:[#allocation5 + $0x1420] sm:$0xff]
    %v790 = vld [vmem:[#allocation5 + $0x1428] sm:$0xff]
    %v791 = vld [vmem:[#allocation5 + $0x1430] sm:$0xff]
    %v792 = vld [vmem:[#allocation5 + $0x1438] sm:$0xff]
    %v793 = vld [vmem:[#allocation5 + $0x1440] sm:$0xff]
    %v794 = vld [vmem:[#allocation5 + $0x1448] sm:$0xff]
    %v795 = vld [vmem:[#allocation5 + $0x1450] sm:$0xff]
    %v796 = vld [vmem:[#allocation5 + $0x1458] sm:$0xff]
    %v797 = vld [vmem:[#allocation5 + $0x1460] sm:$0xff]
    %v798 = vld [vmem:[#allocation5 + $0x1468] sm:$0xff]
    %v799 = vld [vmem:[#allocation5 + $0x1470] sm:$0xff]
    %v800 = vld [vmem:[#allocation5 + $0x1478] sm:$0xff]
    %v801 = vld [vmem:[#allocation5 + $0x1480] sm:$0xff]
    %v802 = vld [vmem:[#allocation5 + $0x1488] sm:$0xff]
    %v803 = vld [vmem:[#allocation5 + $0x1490] sm:$0xff]
    %v804 = vld [vmem:[#allocation5 + $0x1498] sm:$0xff]
    %v805 = vld [vmem:[#allocation5 + $0x14a0] sm:$0xff]
    %v806 = vld [vmem:[#allocation5 + $0x14a8] sm:$0xff]
    %v807 = vld [vmem:[#allocation5 + $0x14b0] sm:$0xff]
    %v808 = vld [vmem:[#allocation5 + $0x14b8] sm:$0xff]
    %v809 = vld [vmem:[#allocation5 + $0x14c0] sm:$0xff]
    %v810 = vld [vmem:[#allocation5 + $0x14c8] sm:$0xff]
    %v811 = vld [vmem:[#allocation5 + $0x14d0] sm:$0xff]
    %v812 = vld [vmem:[#allocation5 + $0x14d8] sm:$0xff]
    %v813 = vld [vmem:[#allocation5 + $0x14e0] sm:$0xff]
    %v814 = vld [vmem:[#allocation5 + $0x14e8] sm:$0xff]
    %v815 = vld [vmem:[#allocation5 + $0x14f0] sm:$0xff]
    %v816 = vld [vmem:[#allocation5 + $0x14f8] sm:$0xff]
    %v817 = vld [vmem:[#allocation5 + $0x1500] sm:$0xff]
    %v818 = vld [vmem:[#allocation5 + $0x1508] sm:$0xff]
    %v819 = vld [vmem:[#allocation5 + $0x1510] sm:$0xff]
    %v820 = vld [vmem:[#allocation5 + $0x1518] sm:$0xff]
    %v821 = vld [vmem:[#allocation5 + $0x1520] sm:$0xff]
    %v822 = vld [vmem:[#allocation5 + $0x1528] sm:$0xff]
    %v823 = vld [vmem:[#allocation5 + $0x1530] sm:$0xff]
    %v824 = vld [vmem:[#allocation5 + $0x1538] sm:$0xff]
    %v825 = vld [vmem:[#allocation5 + $0x1540] sm:$0xff]
    %v826 = vld [vmem:[#allocation5 + $0x1548] sm:$0xff]
    %v827 = vld [vmem:[#allocation5 + $0x1550] sm:$0xff]
    %v828 = vld [vmem:[#allocation5 + $0x1558] sm:$0xff]
    %v829 = vld [vmem:[#allocation5 + $0x1560] sm:$0xff]
    %v830 = vld [vmem:[#allocation5 + $0x1568] sm:$0xff]
    %v831 = vld [vmem:[#allocation5 + $0x1570] sm:$0xff]
    %v832 = vld [vmem:[#allocation5 + $0x1578] sm:$0xff]
    %v833 = vld [vmem:[#allocation5 + $0x1580] sm:$0xff]
    %v834 = vld [vmem:[#allocation5 + $0x1588] sm:$0xff]
    %v835 = vld [vmem:[#allocation5 + $0x1590] sm:$0xff]
    %v836 = vld [vmem:[#allocation5 + $0x1598] sm:$0xff]
    %v837 = vld [vmem:[#allocation5 + $0x15a0] sm:$0xff]
    %v838 = vld [vmem:[#allocation5 + $0x15a8] sm:$0xff]
    %v839 = vld [vmem:[#allocation5 + $0x15b0] sm:$0xff]
    %v840 = vld [vmem:[#allocation5 + $0x15b8] sm:$0xff]
    %v841 = vld [vmem:[#allocation5 + $0x15c0] sm:$0xff]
    %v842 = vld [vmem:[#allocation5 + $0x15c8] sm:$0xff]
    %v843 = vld [vmem:[#allocation5 + $0x15d0] sm:$0xff]
    %v844 = vld [vmem:[#allocation5 + $0x15d8] sm:$0xff]
    %v845 = vld [vmem:[#allocation5 + $0x15e0] sm:$0xff]
    %v846 = vld [vmem:[#allocation5 + $0x15e8] sm:$0xff]
    %v847 = vld [vmem:[#allocation5 + $0x15f0] sm:$0xff]
    %v848 = vld [vmem:[#allocation5 + $0x15f8] sm:$0xff]
    %v849 = vld [vmem:[#allocation5 + $0x1600] sm:$0xff]
    %v850 = vld [vmem:[#allocation5 + $0x1608] sm:$0xff]
    %v851 = vld [vmem:[#allocation5 + $0x1610] sm:$0xff]
    %v852 = vld [vmem:[#allocation5 + $0x1618] sm:$0xff]
    %v853 = vld [vmem:[#allocation5 + $0x1620] sm:$0xff]
    %v854 = vld [vmem:[#allocation5 + $0x1628] sm:$0xff]
    %v855 = vld [vmem:[#allocation5 + $0x1630] sm:$0xff]
    %v856 = vld [vmem:[#allocation5 + $0x1638] sm:$0xff]
    %v857 = vld [vmem:[#allocation5 + $0x1640] sm:$0xff]
    %v858 = vld [vmem:[#allocation5 + $0x1648] sm:$0xff]
    %v859 = vld [vmem:[#allocation5 + $0x1650] sm:$0xff]
    %v860 = vld [vmem:[#allocation5 + $0x1658] sm:$0xff]
    %v861 = vld [vmem:[#allocation5 + $0x1660] sm:$0xff]
    %v862 = vld [vmem:[#allocation5 + $0x1668] sm:$0xff]
    %v863 = vld [vmem:[#allocation5 + $0x1670] sm:$0xff]
    %v864 = vld [vmem:[#allocation5 + $0x1678] sm:$0xff]
    %v865 = vld [vmem:[#allocation5 + $0x1680] sm:$0xff]
    %v866 = vld [vmem:[#allocation5 + $0x1688] sm:$0xff]
    %v867 = vld [vmem:[#allocation5 + $0x1690] sm:$0xff]
    %v868 = vld [vmem:[#allocation5 + $0x1698] sm:$0xff]
    %v869 = vld [vmem:[#allocation5 + $0x16a0] sm:$0xff]
    %v870 = vld [vmem:[#allocation5 + $0x16a8] sm:$0xff]
    %v871 = vld [vmem:[#allocation5 + $0x16b0] sm:$0xff]
    %v872 = vld [vmem:[#allocation5 + $0x16b8] sm:$0xff]
    %v873 = vld [vmem:[#allocation5 + $0x16c0] sm:$0xff]
    %v874 = vld [vmem:[#allocation5 + $0x16c8] sm:$0xff]
    %v875 = vld [vmem:[#allocation5 + $0x16d0] sm:$0xff]
    %v876 = vld [vmem:[#allocation5 + $0x16d8] sm:$0xff]
    %v877 = vld [vmem:[#allocation5 + $0x16e0] sm:$0xff]
    %v878 = vld [vmem:[#allocation5 + $0x16e8] sm:$0xff]
    %v879 = vld [vmem:[#allocation5 + $0x16f0] sm:$0xff]
    %v880 = vld [vmem:[#allocation5 + $0x16f8] sm:$0xff]
    %v881 = vld [vmem:[#allocation5 + $0x1700] sm:$0xff]
    %v882 = vld [vmem:[#allocation5 + $0x1708] sm:$0xff]
    %v883 = vld [vmem:[#allocation5 + $0x1710] sm:$0xff]
    %v884 = vld [vmem:[#allocation5 + $0x1718] sm:$0xff]
    %v885 = vld [vmem:[#allocation5 + $0x1720] sm:$0xff]
    %v886 = vld [vmem:[#allocation5 + $0x1728] sm:$0xff]
    %v887 = vld [vmem:[#allocation5 + $0x1730] sm:$0xff]
    %v888 = vld [vmem:[#allocation5 + $0x1738] sm:$0xff]
    %v889 = vld [vmem:[#allocation5 + $0x1740] sm:$0xff]
    %v890 = vld [vmem:[#allocation5 + $0x1748] sm:$0xff]
    %v891 = vld [vmem:[#allocation5 + $0x1750] sm:$0xff]
    %v892 = vld [vmem:[#allocation5 + $0x1758] sm:$0xff]
    %v893 = vld [vmem:[#allocation5 + $0x1760] sm:$0xff]
    %v894 = vld [vmem:[#allocation5 + $0x1768] sm:$0xff]
    %v895 = vld [vmem:[#allocation5 + $0x1770] sm:$0xff]
    %v896 = vld [vmem:[#allocation5 + $0x1778] sm:$0xff]
    %v897 = vld [vmem:[#allocation5 + $0x1780] sm:$0xff]
    %v898 = vld [vmem:[#allocation5 + $0x1788] sm:$0xff]
    %v899 = vld [vmem:[#allocation5 + $0x1790] sm:$0xff]
    %v900 = vld [vmem:[#allocation5 + $0x1798] sm:$0xff]
    %v901 = vld [vmem:[#allocation5 + $0x17a0] sm:$0xff]
    %v902 = vld [vmem:[#allocation5 + $0x17a8] sm:$0xff]
    %v903 = vld [vmem:[#allocation5 + $0x17b0] sm:$0xff]
    %v904 = vld [vmem:[#allocation5 + $0x17b8] sm:$0xff]
    %v905 = vld [vmem:[#allocation5 + $0x17c0] sm:$0xff]
    %v906 = vld [vmem:[#allocation5 + $0x17c8] sm:$0xff]
    %v907 = vld [vmem:[#allocation5 + $0x17d0] sm:$0xff]
    %v908 = vld [vmem:[#allocation5 + $0x17d8] sm:$0xff]
    %v909 = vld [vmem:[#allocation5 + $0x17e0] sm:$0xff]
    %v910 = vld [vmem:[#allocation5 + $0x17e8] sm:$0xff]
    %v911 = vld [vmem:[#allocation5 + $0x17f0] sm:$0xff]
    %v912 = vld [vmem:[#allocation5 + $0x17f8] sm:$0xff]
    %v913 = vld [vmem:[#allocation5 + $0x1800] sm:$0xff]
    %v914 = vld [vmem:[#allocation5 + $0x1808] sm:$0xff]
    %v915 = vld [vmem:[#allocation5 + $0x1810] sm:$0xff]
    %v916 = vld [vmem:[#allocation5 + $0x1818] sm:$0xff]
    %v917 = vld [vmem:[#allocation5 + $0x1820] sm:$0xff]
    %v918 = vld [vmem:[#allocation5 + $0x1828] sm:$0xff]
    %v919 = vld [vmem:[#allocation5 + $0x1830] sm:$0xff]
    %v920 = vld [vmem:[#allocation5 + $0x1838] sm:$0xff]
    %v921 = vld [vmem:[#allocation5 + $0x1840] sm:$0xff]
    %v922 = vld [vmem:[#allocation5 + $0x1848] sm:$0xff]
    %v923 = vld [vmem:[#allocation5 + $0x1850] sm:$0xff]
    %v924 = vld [vmem:[#allocation5 + $0x1858] sm:$0xff]
    %v925 = vld [vmem:[#allocation5 + $0x1860] sm:$0xff]
    %v926 = vld [vmem:[#allocation5 + $0x1868] sm:$0xff]
    %v927 = vld [vmem:[#allocation5 + $0x1870] sm:$0xff]
    %v928 = vld [vmem:[#allocation5 + $0x1878] sm:$0xff]
    %v929 = vld [vmem:[#allocation7] sm:$0xff]
    %v930 = vld [vmem:[#allocation7 + $0x8] sm:$0xff]
    %v933 = vlaneseq
    %v934 = vshrl.u32 %v933, 7
    %v935 = vsub.s32 0, %v934
    %v936 = vrot.slane %v929, %v935
    %v937 = vlaneseq
    %v938 = vshrl.u32 %v937, 7
    %v939 = vsub.s32 1, %v938
    %v940 = vrot.slane %v929, %v939
    %v941 = vlaneseq
    %v942 = vshrl.u32 %v941, 7
    %v943 = vsub.s32 2, %v942
    %v944 = vrot.slane %v929, %v943
    %v945 = vlaneseq
    %v946 = vshrl.u32 %v945, 7
    %v947 = vsub.s32 3, %v946
    %v948 = vrot.slane %v929, %v947
    %v949 = vlaneseq
    %v950 = vshrl.u32 %v949, 7
    %v951 = vsub.s32 4, %v950
    %v952 = vrot.slane %v929, %v951
    %v953 = vlaneseq
    %v954 = vshrl.u32 %v953, 7
    %v955 = vsub.s32 5, %v954
    %v956 = vrot.slane %v929, %v955
    %v957 = vlaneseq
    %v958 = vshrl.u32 %v957, 7
    %v959 = vsub.s32 6, %v958
    %v960 = vrot.slane %v929, %v959
    %v961 = vlaneseq
    %v962 = vshrl.u32 %v961, 7
    %v963 = vsub.s32 7, %v962
    %v964 = vrot.slane %v929, %v963
    %v965 = vlaneseq
    %v966 = vshrl.u32 %v965, 7
    %v967 = vsub.s32 0, %v966
    %v968 = vrot.slane %v930, %v967
    %v969 = vlaneseq
    %v970 = vshrl.u32 %v969, 7
    %v971 = vsub.s32 1, %v970
    %v972 = vrot.slane %v930, %v971
    %v973 = vlaneseq
    %v974 = vshrl.u32 %v973, 7
    %v975 = vsub.s32 2, %v974
    %v976 = vrot.slane %v930, %v975
    %v977 = vlaneseq
    %v978 = vshrl.u32 %v977, 7
    %v979 = vsub.s32 3, %v978
    %v980 = vrot.slane %v930, %v979
    %v981 = vlaneseq
    %v982 = vshrl.u32 %v981, 7
    %v983 = vsub.s32 4, %v982
    %v984 = vrot.slane %v930, %v983
    %v985 = vlaneseq
    %v986 = vshrl.u32 %v985, 7
    %v987 = vsub.s32 5, %v986
    %v988 = vrot.slane %v930, %v987
    %v989 = vlaneseq
    %v990 = vshrl.u32 %v989, 7
    %v991 = vsub.s32 6, %v990
    %v992 = vrot.slane %v930, %v991
    %v993 = vlaneseq
    %v994 = vshrl.u32 %v993, 7
    %v995 = vsub.s32 7, %v994
    %v996 = vrot.slane %v930, %v995
    %v1797 = vunpack.c.l.b16 %v145
    %v1798 = vunpack.c.h.b16 %v145
    %v1799 = vunpack.c.l.b16 %v146
    %v1800 = vunpack.c.h.b16 %v146
    %v1801 = vunpack.c.l.b16 %v147
    %v1802 = vunpack.c.h.b16 %v147
    %v1803 = vunpack.c.l.b16 %v148
    %v1804 = vunpack.c.h.b16 %v148
    %v1805 = vunpack.c.l.b16 %v149
    %v1806 = vunpack.c.h.b16 %v149
    %v1807 = vunpack.c.l.b16 %v150
    %v1808 = vunpack.c.h.b16 %v150
    %v1809 = vunpack.c.l.b16 %v151
    %v1810 = vunpack.c.h.b16 %v151
    %v1811 = vunpack.c.l.b16 %v152
    %v1812 = vunpack.c.h.b16 %v152
    %v1813 = vunpack.c.l.b16 %v153
    %v1814 = vunpack.c.h.b16 %v153
    %v1815 = vunpack.c.l.b16 %v154
    %v1816 = vunpack.c.h.b16 %v154
    %v1817 = vunpack.c.l.b16 %v155
    %v1818 = vunpack.c.h.b16 %v155
    %v1819 = vunpack.c.l.b16 %v156
    %v1820 = vunpack.c.h.b16 %v156
    %v1821 = vunpack.c.l.b16 %v157
    %v1822 = vunpack.c.h.b16 %v157
    %v1823 = vunpack.c.l.b16 %v158
    %v1824 = vunpack.c.h.b16 %v158
    %v1825 = vunpack.c.l.b16 %v159
    %v1826 = vunpack.c.h.b16 %v159
    %v1827 = vunpack.c.l.b16 %v160
    %v1828 = vunpack.c.h.b16 %v160
    %v1829 = vunpack.c.l.b16 %v161
    %v1830 = vunpack.c.h.b16 %v161
    %v1831 = vunpack.c.l.b16 %v162
    %v1832 = vunpack.c.h.b16 %v162
    %v1833 = vunpack.c.l.b16 %v163
    %v1834 = vunpack.c.h.b16 %v163
    %v1835 = vunpack.c.l.b16 %v164
    %v1836 = vunpack.c.h.b16 %v164
    %v1837 = vunpack.c.l.b16 %v165
    %v1838 = vunpack.c.h.b16 %v165
    %v1839 = vunpack.c.l.b16 %v166
    %v1840 = vunpack.c.h.b16 %v166
    %v1841 = vunpack.c.l.b16 %v167
    %v1842 = vunpack.c.h.b16 %v167
    %v1843 = vunpack.c.l.b16 %v168
    %v1844 = vunpack.c.h.b16 %v168
    %v1845 = vunpack.c.l.b16 %v169
    %v1846 = vunpack.c.h.b16 %v169
    %v1847 = vunpack.c.l.b16 %v170
    %v1848 = vunpack.c.h.b16 %v170
    %v1849 = vunpack.c.l.b16 %v171
    %v1850 = vunpack.c.h.b16 %v171
    %v1851 = vunpack.c.l.b16 %v172
    %v1852 = vunpack.c.h.b16 %v172
    %v1853 = vunpack.c.l.b16 %v173
    %v1854 = vunpack.c.h.b16 %v173
    %v1855 = vunpack.c.l.b16 %v174
    %v1856 = vunpack.c.h.b16 %v174
    %v1857 = vunpack.c.l.b16 %v175
    %v1858 = vunpack.c.h.b16 %v175
    %v1859 = vunpack.c.l.b16 %v176
    %v1860 = vunpack.c.h.b16 %v176
    %v1861 = vunpack.c.l.b16 %v177
    %v1862 = vunpack.c.h.b16 %v177
    %v1863 = vunpack.c.l.b16 %v178
    %v1864 = vunpack.c.h.b16 %v178
    %v1865 = vunpack.c.l.b16 %v179
    %v1866 = vunpack.c.h.b16 %v179
    %v1867 = vunpack.c.l.b16 %v180
    %v1868 = vunpack.c.h.b16 %v180
    %v1869 = vunpack.c.l.b16 %v181
    %v1870 = vunpack.c.h.b16 %v181
    %v1871 = vunpack.c.l.b16 %v182
    %v1872 = vunpack.c.h.b16 %v182
    %v1873 = vunpack.c.l.b16 %v183
    %v1874 = vunpack.c.h.b16 %v183
    %v1875 = vunpack.c.l.b16 %v184
    %v1876 = vunpack.c.h.b16 %v184
    %v1877 = vunpack.c.l.b16 %v185
    %v1878 = vunpack.c.h.b16 %v185
    %v1879 = vunpack.c.l.b16 %v186
    %v1880 = vunpack.c.h.b16 %v186
    %v1881 = vunpack.c.l.b16 %v187
    %v1882 = vunpack.c.h.b16 %v187
    %v1883 = vunpack.c.l.b16 %v188
    %v1884 = vunpack.c.h.b16 %v188
    %v1885 = vunpack.c.l.b16 %v189
    %v1886 = vunpack.c.h.b16 %v189
    %v1887 = vunpack.c.l.b16 %v190
    %v1888 = vunpack.c.h.b16 %v190
    %v1889 = vunpack.c.l.b16 %v191
    %v1890 = vunpack.c.h.b16 %v191
    %v1891 = vunpack.c.l.b16 %v192
    %v1892 = vunpack.c.h.b16 %v192
    %v1893 = vunpack.c.l.b16 %v193
    %v1894 = vunpack.c.h.b16 %v193
    %v1895 = vunpack.c.l.b16 %v194
    %v1896 = vunpack.c.h.b16 %v194
    %v1897 = vunpack.c.l.b16 %v195
    %v1898 = vunpack.c.h.b16 %v195
    %v1899 = vunpack.c.l.b16 %v196
    %v1900 = vunpack.c.h.b16 %v196
    %v1901 = vunpack.c.l.b16 %v197
    %v1902 = vunpack.c.h.b16 %v197
    %v1903 = vunpack.c.l.b16 %v198
    %v1904 = vunpack.c.h.b16 %v198
    %v1905 = vunpack.c.l.b16 %v199
    %v1906 = vunpack.c.h.b16 %v199
    %v1907 = vunpack.c.l.b16 %v200
    %v1908 = vunpack.c.h.b16 %v200
    %v1909 = vunpack.c.l.b16 %v201
    %v1910 = vunpack.c.h.b16 %v201
    %v1911 = vunpack.c.l.b16 %v202
    %v1912 = vunpack.c.h.b16 %v202
    %v1913 = vunpack.c.l.b16 %v203
    %v1914 = vunpack.c.h.b16 %v203
    %v1915 = vunpack.c.l.b16 %v204
    %v1916 = vunpack.c.h.b16 %v204
    %v1917 = vunpack.c.l.b16 %v205
    %v1918 = vunpack.c.h.b16 %v205
    %v1919 = vunpack.c.l.b16 %v206
    %v1920 = vunpack.c.h.b16 %v206
    %v1921 = vunpack.c.l.b16 %v207
    %v1922 = vunpack.c.h.b16 %v207
    %v1923 = vunpack.c.l.b16 %v208
    %v1924 = vunpack.c.h.b16 %v208
    %v1925 = vunpack.c.l.b16 %v209
    %v1926 = vunpack.c.h.b16 %v209
    %v1927 = vunpack.c.l.b16 %v210
    %v1928 = vunpack.c.h.b16 %v210
    %v1929 = vunpack.c.l.b16 %v211
    %v1930 = vunpack.c.h.b16 %v211
    %v1931 = vunpack.c.l.b16 %v212
    %v1932 = vunpack.c.h.b16 %v212
    %v1933 = vunpack.c.l.b16 %v213
    %v1934 = vunpack.c.h.b16 %v213
    %v1935 = vunpack.c.l.b16 %v214
    %v1936 = vunpack.c.h.b16 %v214
    %v1937 = vunpack.c.l.b16 %v215
    %v1938 = vunpack.c.h.b16 %v215
    %v1939 = vunpack.c.l.b16 %v216
    %v1940 = vunpack.c.h.b16 %v216
    %v1941 = vunpack.c.l.b16 %v217
    %v1942 = vunpack.c.h.b16 %v217
    %v1943 = vunpack.c.l.b16 %v218
    %v1944 = vunpack.c.h.b16 %v218
    %v1945 = vunpack.c.l.b16 %v219
    %v1946 = vunpack.c.h.b16 %v219
    %v1947 = vunpack.c.l.b16 %v220
    %v1948 = vunpack.c.h.b16 %v220
    %v1949 = vunpack.c.l.b16 %v221
    %v1950 = vunpack.c.h.b16 %v221
    %v1951 = vunpack.c.l.b16 %v222
    %v1952 = vunpack.c.h.b16 %v222
    %v1953 = vunpack.c.l.b16 %v223
    %v1954 = vunpack.c.h.b16 %v223
    %v1955 = vunpack.c.l.b16 %v224
    %v1956 = vunpack.c.h.b16 %v224
    %v1957 = vunpack.c.l.b16 %v225
    %v1958 = vunpack.c.h.b16 %v225
    %v1959 = vunpack.c.l.b16 %v226
    %v1960 = vunpack.c.h.b16 %v226
    %v1961 = vunpack.c.l.b16 %v227
    %v1962 = vunpack.c.h.b16 %v227
    %v1963 = vunpack.c.l.b16 %v228
    %v1964 = vunpack.c.h.b16 %v228
    %v1965 = vunpack.c.l.b16 %v229
    %v1966 = vunpack.c.h.b16 %v229
    %v1967 = vunpack.c.l.b16 %v230
    %v1968 = vunpack.c.h.b16 %v230
    %v1969 = vunpack.c.l.b16 %v231
    %v1970 = vunpack.c.h.b16 %v231
    %v1971 = vunpack.c.l.b16 %v232
    %v1972 = vunpack.c.h.b16 %v232
    %v1973 = vunpack.c.l.b16 %v233
    %v1974 = vunpack.c.h.b16 %v233
    %v1975 = vunpack.c.l.b16 %v234
    %v1976 = vunpack.c.h.b16 %v234
    %v1977 = vunpack.c.l.b16 %v235
    %v1978 = vunpack.c.h.b16 %v235
    %v1979 = vunpack.c.l.b16 %v236
    %v1980 = vunpack.c.h.b16 %v236
    %v1981 = vunpack.c.l.b16 %v237
    %v1982 = vunpack.c.h.b16 %v237
    %v1983 = vunpack.c.l.b16 %v238
    %v1984 = vunpack.c.h.b16 %v238
    %v1985 = vunpack.c.l.b16 %v239
    %v1986 = vunpack.c.h.b16 %v239
    %v1987 = vunpack.c.l.b16 %v240
    %v1988 = vunpack.c.h.b16 %v240
    %v1989 = vunpack.c.l.b16 %v241
    %v1990 = vunpack.c.h.b16 %v241
    %v1991 = vunpack.c.l.b16 %v242
    %v1992 = vunpack.c.h.b16 %v242
    %v1993 = vunpack.c.l.b16 %v243
    %v1994 = vunpack.c.h.b16 %v243
    %v1995 = vunpack.c.l.b16 %v244
    %v1996 = vunpack.c.h.b16 %v244
    %v1997 = vunpack.c.l.b16 %v245
    %v1998 = vunpack.c.h.b16 %v245
    %v1999 = vunpack.c.l.b16 %v246
    %v2000 = vunpack.c.h.b16 %v246
    %v2001 = vunpack.c.l.b16 %v247
    %v2002 = vunpack.c.h.b16 %v247
    %v2003 = vunpack.c.l.b16 %v248
    %v2004 = vunpack.c.h.b16 %v248
    %v2005 = vunpack.c.l.b16 %v249
    %v2006 = vunpack.c.h.b16 %v249
    %v2007 = vunpack.c.l.b16 %v250
    %v2008 = vunpack.c.h.b16 %v250
    %v2009 = vunpack.c.l.b16 %v251
    %v2010 = vunpack.c.h.b16 %v251
    %v2011 = vunpack.c.l.b16 %v252
    %v2012 = vunpack.c.h.b16 %v252
    %v2013 = vunpack.c.l.b16 %v253
    %v2014 = vunpack.c.h.b16 %v253
    %v2015 = vunpack.c.l.b16 %v254
    %v2016 = vunpack.c.h.b16 %v254
    %v2017 = vunpack.c.l.b16 %v255
    %v2018 = vunpack.c.h.b16 %v255
    %v2019 = vunpack.c.l.b16 %v256
    %v2020 = vunpack.c.h.b16 %v256
    %v2021 = vunpack.c.l.b16 %v257
    %v2022 = vunpack.c.h.b16 %v257
    %v2023 = vunpack.c.l.b16 %v258
    %v2024 = vunpack.c.h.b16 %v258
    %v2025 = vunpack.c.l.b16 %v259
    %v2026 = vunpack.c.h.b16 %v259
    %v2027 = vunpack.c.l.b16 %v260
    %v2028 = vunpack.c.h.b16 %v260
    %v2029 = vunpack.c.l.b16 %v261
    %v2030 = vunpack.c.h.b16 %v261
    %v2031 = vunpack.c.l.b16 %v262
    %v2032 = vunpack.c.h.b16 %v262
    %v2033 = vunpack.c.l.b16 %v263
    %v2034 = vunpack.c.h.b16 %v263
    %v2035 = vunpack.c.l.b16 %v264
    %v2036 = vunpack.c.h.b16 %v264
    %v2037 = vunpack.c.l.b16 %v265
    %v2038 = vunpack.c.h.b16 %v265
    %v2039 = vunpack.c.l.b16 %v266
    %v2040 = vunpack.c.h.b16 %v266
    %v2041 = vunpack.c.l.b16 %v267
    %v2042 = vunpack.c.h.b16 %v267
    %v2043 = vunpack.c.l.b16 %v268
    %v2044 = vunpack.c.h.b16 %v268
    %v2045 = vunpack.c.l.b16 %v269
    %v2046 = vunpack.c.h.b16 %v269
    %v2047 = vunpack.c.l.b16 %v270
    %v2048 = vunpack.c.h.b16 %v270
    %v2049 = vunpack.c.l.b16 %v271
    %v2050 = vunpack.c.h.b16 %v271
    %v2051 = vunpack.c.l.b16 %v272
    %v2052 = vunpack.c.h.b16 %v272
    %v2053 = vunpack.c.l.b16 %v273
    %v2054 = vunpack.c.h.b16 %v273
    %v2055 = vunpack.c.l.b16 %v274
    %v2056 = vunpack.c.h.b16 %v274
    %v2057 = vunpack.c.l.b16 %v275
    %v2058 = vunpack.c.h.b16 %v275
    %v2059 = vunpack.c.l.b16 %v276
    %v2060 = vunpack.c.h.b16 %v276
    %v2061 = vunpack.c.l.b16 %v277
    %v2062 = vunpack.c.h.b16 %v277
    %v2063 = vunpack.c.l.b16 %v278
    %v2064 = vunpack.c.h.b16 %v278
    %v2065 = vunpack.c.l.b16 %v279
    %v2066 = vunpack.c.h.b16 %v279
    %v2067 = vunpack.c.l.b16 %v280
    %v2068 = vunpack.c.h.b16 %v280
    %v2069 = vunpack.c.l.b16 %v281
    %v2070 = vunpack.c.h.b16 %v281
    %v2071 = vunpack.c.l.b16 %v282
    %v2072 = vunpack.c.h.b16 %v282
    %v2073 = vunpack.c.l.b16 %v283
    %v2074 = vunpack.c.h.b16 %v283
    %v2075 = vunpack.c.l.b16 %v284
    %v2076 = vunpack.c.h.b16 %v284
    %v2077 = vunpack.c.l.b16 %v285
    %v2078 = vunpack.c.h.b16 %v285
    %v2079 = vunpack.c.l.b16 %v286
    %v2080 = vunpack.c.h.b16 %v286
    %v2081 = vunpack.c.l.b16 %v287
    %v2082 = vunpack.c.h.b16 %v287
    %v2083 = vunpack.c.l.b16 %v288
    %v2084 = vunpack.c.h.b16 %v288
    %v2085 = vunpack.c.l.b16 %v289
    %v2086 = vunpack.c.h.b16 %v289
    %v2087 = vunpack.c.l.b16 %v290
    %v2088 = vunpack.c.h.b16 %v290
    %v2089 = vunpack.c.l.b16 %v291
    %v2090 = vunpack.c.h.b16 %v291
    %v2091 = vunpack.c.l.b16 %v292
    %v2092 = vunpack.c.h.b16 %v292
    %v2093 = vunpack.c.l.b16 %v293
    %v2094 = vunpack.c.h.b16 %v293
    %v2095 = vunpack.c.l.b16 %v294
    %v2096 = vunpack.c.h.b16 %v294
    %v2097 = vunpack.c.l.b16 %v295
    %v2098 = vunpack.c.h.b16 %v295
    %v2099 = vunpack.c.l.b16 %v296
    %v2100 = vunpack.c.h.b16 %v296
    %v2101 = vunpack.c.l.b16 %v297
    %v2102 = vunpack.c.h.b16 %v297
    %v2103 = vunpack.c.l.b16 %v298
    %v2104 = vunpack.c.h.b16 %v298
    %v2105 = vunpack.c.l.b16 %v299
    %v2106 = vunpack.c.h.b16 %v299
    %v2107 = vunpack.c.l.b16 %v300
    %v2108 = vunpack.c.h.b16 %v300
    %v2109 = vunpack.c.l.b16 %v301
    %v2110 = vunpack.c.h.b16 %v301
    %v2111 = vunpack.c.l.b16 %v302
    %v2112 = vunpack.c.h.b16 %v302
    %v2113 = vunpack.c.l.b16 %v303
    %v2114 = vunpack.c.h.b16 %v303
    %v2115 = vunpack.c.l.b16 %v304
    %v2116 = vunpack.c.h.b16 %v304
    %v2117 = vunpack.c.l.b16 %v305
    %v2118 = vunpack.c.h.b16 %v305
    %v2119 = vunpack.c.l.b16 %v306
    %v2120 = vunpack.c.h.b16 %v306
    %v2121 = vunpack.c.l.b16 %v307
    %v2122 = vunpack.c.h.b16 %v307
    %v2123 = vunpack.c.l.b16 %v308
    %v2124 = vunpack.c.h.b16 %v308
    %v2125 = vunpack.c.l.b16 %v309
    %v2126 = vunpack.c.h.b16 %v309
    %v2127 = vunpack.c.l.b16 %v310
    %v2128 = vunpack.c.h.b16 %v310
    %v2129 = vunpack.c.l.b16 %v311
    %v2130 = vunpack.c.h.b16 %v311
    %v2131 = vunpack.c.l.b16 %v312
    %v2132 = vunpack.c.h.b16 %v312
    %v2133 = vunpack.c.l.b16 %v313
    %v2134 = vunpack.c.h.b16 %v313
    %v2135 = vunpack.c.l.b16 %v314
    %v2136 = vunpack.c.h.b16 %v314
    %v2137 = vunpack.c.l.b16 %v315
    %v2138 = vunpack.c.h.b16 %v315
    %v2139 = vunpack.c.l.b16 %v316
    %v2140 = vunpack.c.h.b16 %v316
    %v2141 = vunpack.c.l.b16 %v317
    %v2142 = vunpack.c.h.b16 %v317
    %v2143 = vunpack.c.l.b16 %v318
    %v2144 = vunpack.c.h.b16 %v318
    %v2145 = vunpack.c.l.b16 %v319
    %v2146 = vunpack.c.h.b16 %v319
    %v2147 = vunpack.c.l.b16 %v320
    %v2148 = vunpack.c.h.b16 %v320
    %v2149 = vunpack.c.l.b16 %v321
    %v2150 = vunpack.c.h.b16 %v321
    %v2151 = vunpack.c.l.b16 %v322
    %v2152 = vunpack.c.h.b16 %v322
    %v2153 = vunpack.c.l.b16 %v323
    %v2154 = vunpack.c.h.b16 %v323
    %v2155 = vunpack.c.l.b16 %v324
    %v2156 = vunpack.c.h.b16 %v324
    %v2157 = vunpack.c.l.b16 %v325
    %v2158 = vunpack.c.h.b16 %v325
    %v2159 = vunpack.c.l.b16 %v326
    %v2160 = vunpack.c.h.b16 %v326
    %v2161 = vunpack.c.l.b16 %v327
    %v2162 = vunpack.c.h.b16 %v327
    %v2163 = vunpack.c.l.b16 %v328
    %v2164 = vunpack.c.h.b16 %v328
    %v2165 = vunpack.c.l.b16 %v329
    %v2166 = vunpack.c.h.b16 %v329
    %v2167 = vunpack.c.l.b16 %v330
    %v2168 = vunpack.c.h.b16 %v330
    %v2169 = vunpack.c.l.b16 %v331
    %v2170 = vunpack.c.h.b16 %v331
    %v2171 = vunpack.c.l.b16 %v332
    %v2172 = vunpack.c.h.b16 %v332
    %v2173 = vunpack.c.l.b16 %v333
    %v2174 = vunpack.c.h.b16 %v333
    %v2175 = vunpack.c.l.b16 %v334
    %v2176 = vunpack.c.h.b16 %v334
    %v2177 = vunpack.c.l.b16 %v335
    %v2178 = vunpack.c.h.b16 %v335
    %v2179 = vunpack.c.l.b16 %v336
    %v2180 = vunpack.c.h.b16 %v336
    %v2181 = vunpack.c.l.b16 %v337
    %v2182 = vunpack.c.h.b16 %v337
    %v2183 = vunpack.c.l.b16 %v338
    %v2184 = vunpack.c.h.b16 %v338
    %v2185 = vunpack.c.l.b16 %v339
    %v2186 = vunpack.c.h.b16 %v339
    %v2187 = vunpack.c.l.b16 %v340
    %v2188 = vunpack.c.h.b16 %v340
    %v2189 = vunpack.c.l.b16 %v341
    %v2190 = vunpack.c.h.b16 %v341
    %v2191 = vunpack.c.l.b16 %v342
    %v2192 = vunpack.c.h.b16 %v342
    %v2193 = vunpack.c.l.b16 %v343
    %v2194 = vunpack.c.h.b16 %v343
    %v2195 = vunpack.c.l.b16 %v344
    %v2196 = vunpack.c.h.b16 %v344
    %v2197 = vunpack.c.l.b16 %v345
    %v2198 = vunpack.c.h.b16 %v345
    %v2199 = vunpack.c.l.b16 %v346
    %v2200 = vunpack.c.h.b16 %v346
    %v2201 = vunpack.c.l.b16 %v347
    %v2202 = vunpack.c.h.b16 %v347
    %v2203 = vunpack.c.l.b16 %v348
    %v2204 = vunpack.c.h.b16 %v348
    %v2205 = vunpack.c.l.b16 %v349
    %v2206 = vunpack.c.h.b16 %v349
    %v2207 = vunpack.c.l.b16 %v350
    %v2208 = vunpack.c.h.b16 %v350
    %v2209 = vunpack.c.l.b16 %v351
    %v2210 = vunpack.c.h.b16 %v351
    %v2211 = vunpack.c.l.b16 %v352
    %v2212 = vunpack.c.h.b16 %v352
    %v2213 = vunpack.c.l.b16 %v353
    %v2214 = vunpack.c.h.b16 %v353
    %v2215 = vunpack.c.l.b16 %v354
    %v2216 = vunpack.c.h.b16 %v354
    %v2217 = vunpack.c.l.b16 %v355
    %v2218 = vunpack.c.h.b16 %v355
    %v2219 = vunpack.c.l.b16 %v356
    %v2220 = vunpack.c.h.b16 %v356
    %v2221 = vunpack.c.l.b16 %v357
    %v2222 = vunpack.c.h.b16 %v357
    %v2223 = vunpack.c.l.b16 %v358
    %v2224 = vunpack.c.h.b16 %v358
    %v2225 = vunpack.c.l.b16 %v359
    %v2226 = vunpack.c.h.b16 %v359
    %v2227 = vunpack.c.l.b16 %v360
    %v2228 = vunpack.c.h.b16 %v360
    %v2229 = vunpack.c.l.b16 %v361
    %v2230 = vunpack.c.h.b16 %v361
    %v2231 = vunpack.c.l.b16 %v362
    %v2232 = vunpack.c.h.b16 %v362
    %v2233 = vunpack.c.l.b16 %v363
    %v2234 = vunpack.c.h.b16 %v363
    %v2235 = vunpack.c.l.b16 %v364
    %v2236 = vunpack.c.h.b16 %v364
    %v2237 = vunpack.c.l.b16 %v365
    %v2238 = vunpack.c.h.b16 %v365
    %v2239 = vunpack.c.l.b16 %v366
    %v2240 = vunpack.c.h.b16 %v366
    %v2241 = vunpack.c.l.b16 %v367
    %v2242 = vunpack.c.h.b16 %v367
    %v2243 = vunpack.c.l.b16 %v368
    %v2244 = vunpack.c.h.b16 %v368
    %v2245 = vunpack.c.l.b16 %v369
    %v2246 = vunpack.c.h.b16 %v369
    %v2247 = vunpack.c.l.b16 %v370
    %v2248 = vunpack.c.h.b16 %v370
    %v2249 = vunpack.c.l.b16 %v371
    %v2250 = vunpack.c.h.b16 %v371
    %v2251 = vunpack.c.l.b16 %v372
    %v2252 = vunpack.c.h.b16 %v372
    %v2253 = vunpack.c.l.b16 %v373
    %v2254 = vunpack.c.h.b16 %v373
    %v2255 = vunpack.c.l.b16 %v374
    %v2256 = vunpack.c.h.b16 %v374
    %v2257 = vunpack.c.l.b16 %v375
    %v2258 = vunpack.c.h.b16 %v375
    %v2259 = vunpack.c.l.b16 %v376
    %v2260 = vunpack.c.h.b16 %v376
    %v2261 = vunpack.c.l.b16 %v377
    %v2262 = vunpack.c.h.b16 %v377
    %v2263 = vunpack.c.l.b16 %v378
    %v2264 = vunpack.c.h.b16 %v378
    %v2265 = vunpack.c.l.b16 %v379
    %v2266 = vunpack.c.h.b16 %v379
    %v2267 = vunpack.c.l.b16 %v380
    %v2268 = vunpack.c.h.b16 %v380
    %v2269 = vunpack.c.l.b16 %v381
    %v2270 = vunpack.c.h.b16 %v381
    %v2271 = vunpack.c.l.b16 %v382
    %v2272 = vunpack.c.h.b16 %v382
    %v2273 = vunpack.c.l.b16 %v383
    %v2274 = vunpack.c.h.b16 %v383
    %v2275 = vunpack.c.l.b16 %v384
    %v2276 = vunpack.c.h.b16 %v384
    %v2277 = vunpack.c.l.b16 %v385
    %v2278 = vunpack.c.h.b16 %v385
    %v2279 = vunpack.c.l.b16 %v386
    %v2280 = vunpack.c.h.b16 %v386
    %v2281 = vunpack.c.l.b16 %v387
    %v2282 = vunpack.c.h.b16 %v387
    %v2283 = vunpack.c.l.b16 %v388
    %v2284 = vunpack.c.h.b16 %v388
    %v2285 = vunpack.c.l.b16 %v389
    %v2286 = vunpack.c.h.b16 %v389
    %v2287 = vunpack.c.l.b16 %v390
    %v2288 = vunpack.c.h.b16 %v390
    %v2289 = vunpack.c.l.b16 %v391
    %v2290 = vunpack.c.h.b16 %v391
    %v2291 = vunpack.c.l.b16 %v392
    %v2292 = vunpack.c.h.b16 %v392
    %v2293 = vunpack.c.l.b16 %v393
    %v2294 = vunpack.c.h.b16 %v393
    %v2295 = vunpack.c.l.b16 %v394
    %v2296 = vunpack.c.h.b16 %v394
    %v2297 = vunpack.c.l.b16 %v395
    %v2298 = vunpack.c.h.b16 %v395
    %v2299 = vunpack.c.l.b16 %v396
    %v2300 = vunpack.c.h.b16 %v396
    %v2301 = vunpack.c.l.b16 %v397
    %v2302 = vunpack.c.h.b16 %v397
    %v2303 = vunpack.c.l.b16 %v398
    %v2304 = vunpack.c.h.b16 %v398
    %v2305 = vunpack.c.l.b16 %v399
    %v2306 = vunpack.c.h.b16 %v399
    %v2307 = vunpack.c.l.b16 %v400
    %v2308 = vunpack.c.h.b16 %v400
    %v2309 = vunpack.c.l.b16 %v401
    %v2310 = vunpack.c.h.b16 %v401
    %v2311 = vunpack.c.l.b16 %v402
    %v2312 = vunpack.c.h.b16 %v402
    %v2313 = vunpack.c.l.b16 %v403
    %v2314 = vunpack.c.h.b16 %v403
    %v2315 = vunpack.c.l.b16 %v404
    %v2316 = vunpack.c.h.b16 %v404
    %v2317 = vunpack.c.l.b16 %v405
    %v2318 = vunpack.c.h.b16 %v405
    %v2319 = vunpack.c.l.b16 %v406
    %v2320 = vunpack.c.h.b16 %v406
    %v2321 = vunpack.c.l.b16 %v407
    %v2322 = vunpack.c.h.b16 %v407
    %v2323 = vunpack.c.l.b16 %v408
    %v2324 = vunpack.c.h.b16 %v408
    %v2325 = vunpack.c.l.b16 %v409
    %v2326 = vunpack.c.h.b16 %v409
    %v2327 = vunpack.c.l.b16 %v410
    %v2328 = vunpack.c.h.b16 %v410
    %v2329 = vunpack.c.l.b16 %v411
    %v2330 = vunpack.c.h.b16 %v411
    %v2331 = vunpack.c.l.b16 %v412
    %v2332 = vunpack.c.h.b16 %v412
    %v2333 = vunpack.c.l.b16 %v413
    %v2334 = vunpack.c.h.b16 %v413
    %v2335 = vunpack.c.l.b16 %v414
    %v2336 = vunpack.c.h.b16 %v414
    %v2337 = vunpack.c.l.b16 %v415
    %v2338 = vunpack.c.h.b16 %v415
    %v2339 = vunpack.c.l.b16 %v416
    %v2340 = vunpack.c.h.b16 %v416
    %v2341 = vunpack.c.l.b16 %v417
    %v2342 = vunpack.c.h.b16 %v417
    %v2343 = vunpack.c.l.b16 %v418
    %v2344 = vunpack.c.h.b16 %v418
    %v2345 = vunpack.c.l.b16 %v419
    %v2346 = vunpack.c.h.b16 %v419
    %v2347 = vunpack.c.l.b16 %v420
    %v2348 = vunpack.c.h.b16 %v420
    %v2349 = vunpack.c.l.b16 %v421
    %v2350 = vunpack.c.h.b16 %v421
    %v2351 = vunpack.c.l.b16 %v422
    %v2352 = vunpack.c.h.b16 %v422
    %v2353 = vunpack.c.l.b16 %v423
    %v2354 = vunpack.c.h.b16 %v423
    %v2355 = vunpack.c.l.b16 %v424
    %v2356 = vunpack.c.h.b16 %v424
    %v2357 = vunpack.c.l.b16 %v425
    %v2358 = vunpack.c.h.b16 %v425
    %v2359 = vunpack.c.l.b16 %v426
    %v2360 = vunpack.c.h.b16 %v426
    %v2361 = vunpack.c.l.b16 %v427
    %v2362 = vunpack.c.h.b16 %v427
    %v2363 = vunpack.c.l.b16 %v428
    %v2364 = vunpack.c.h.b16 %v428
    %v2365 = vunpack.c.l.b16 %v429
    %v2366 = vunpack.c.h.b16 %v429
    %v2367 = vunpack.c.l.b16 %v430
    %v2368 = vunpack.c.h.b16 %v430
    %v2369 = vunpack.c.l.b16 %v431
    %v2370 = vunpack.c.h.b16 %v431
    %v2371 = vunpack.c.l.b16 %v432
    %v2372 = vunpack.c.h.b16 %v432
    %v2373 = vunpack.c.l.b16 %v433
    %v2374 = vunpack.c.h.b16 %v433
    %v2375 = vunpack.c.l.b16 %v434
    %v2376 = vunpack.c.h.b16 %v434
    %v2377 = vunpack.c.l.b16 %v435
    %v2378 = vunpack.c.h.b16 %v435
    %v2379 = vunpack.c.l.b16 %v436
    %v2380 = vunpack.c.h.b16 %v436
    %v2381 = vunpack.c.l.b16 %v437
    %v2382 = vunpack.c.h.b16 %v437
    %v2383 = vunpack.c.l.b16 %v438
    %v2384 = vunpack.c.h.b16 %v438
    %v2385 = vunpack.c.l.b16 %v439
    %v2386 = vunpack.c.h.b16 %v439
    %v2387 = vunpack.c.l.b16 %v440
    %v2388 = vunpack.c.h.b16 %v440
    %v2389 = vunpack.c.l.b16 %v441
    %v2390 = vunpack.c.h.b16 %v441
    %v2391 = vunpack.c.l.b16 %v442
    %v2392 = vunpack.c.h.b16 %v442
    %v2393 = vunpack.c.l.b16 %v443
    %v2394 = vunpack.c.h.b16 %v443
    %v2395 = vunpack.c.l.b16 %v444
    %v2396 = vunpack.c.h.b16 %v444
    %v2397 = vunpack.c.l.b16 %v445
    %v2398 = vunpack.c.h.b16 %v445
    %v2399 = vunpack.c.l.b16 %v446
    %v2400 = vunpack.c.h.b16 %v446
    %v2401 = vunpack.c.l.b16 %v447
    %v2402 = vunpack.c.h.b16 %v447
    %v2403 = vunpack.c.l.b16 %v448
    %v2404 = vunpack.c.h.b16 %v448
    %v2405 = vunpack.c.l.b16 %v449
    %v2406 = vunpack.c.h.b16 %v449
    %v2407 = vunpack.c.l.b16 %v450
    %v2408 = vunpack.c.h.b16 %v450
    %v2409 = vunpack.c.l.b16 %v451
    %v2410 = vunpack.c.h.b16 %v451
    %v2411 = vunpack.c.l.b16 %v452
    %v2412 = vunpack.c.h.b16 %v452
    %v2413 = vunpack.c.l.b16 %v453
    %v2414 = vunpack.c.h.b16 %v453
    %v2415 = vunpack.c.l.b16 %v454
    %v2416 = vunpack.c.h.b16 %v454
    %v2417 = vunpack.c.l.b16 %v455
    %v2418 = vunpack.c.h.b16 %v455
    %v2419 = vunpack.c.l.b16 %v456
    %v2420 = vunpack.c.h.b16 %v456
    %v2421 = vunpack.c.l.b16 %v457
    %v2422 = vunpack.c.h.b16 %v457
    %v2423 = vunpack.c.l.b16 %v458
    %v2424 = vunpack.c.h.b16 %v458
    %v2425 = vunpack.c.l.b16 %v459
    %v2426 = vunpack.c.h.b16 %v459
    %v2427 = vunpack.c.l.b16 %v460
    %v2428 = vunpack.c.h.b16 %v460
    %v2429 = vunpack.c.l.b16 %v461
    %v2430 = vunpack.c.h.b16 %v461
    %v2431 = vunpack.c.l.b16 %v462
    %v2432 = vunpack.c.h.b16 %v462
    %v2433 = vunpack.c.l.b16 %v463
    %v2434 = vunpack.c.h.b16 %v463
    %v2435 = vunpack.c.l.b16 %v464
    %v2436 = vunpack.c.h.b16 %v464
    %v2437 = vunpack.c.l.b16 %v465
    %v2438 = vunpack.c.h.b16 %v465
    %v2439 = vunpack.c.l.b16 %v466
    %v2440 = vunpack.c.h.b16 %v466
    %v2441 = vunpack.c.l.b16 %v467
    %v2442 = vunpack.c.h.b16 %v467
    %v2443 = vunpack.c.l.b16 %v468
    %v2444 = vunpack.c.h.b16 %v468
    %v2445 = vunpack.c.l.b16 %v469
    %v2446 = vunpack.c.h.b16 %v469
    %v2447 = vunpack.c.l.b16 %v470
    %v2448 = vunpack.c.h.b16 %v470
    %v2449 = vunpack.c.l.b16 %v471
    %v2450 = vunpack.c.h.b16 %v471
    %v2451 = vunpack.c.l.b16 %v472
    %v2452 = vunpack.c.h.b16 %v472
    %v2453 = vunpack.c.l.b16 %v473
    %v2454 = vunpack.c.h.b16 %v473
    %v2455 = vunpack.c.l.b16 %v474
    %v2456 = vunpack.c.h.b16 %v474
    %v2457 = vunpack.c.l.b16 %v475
    %v2458 = vunpack.c.h.b16 %v475
    %v2459 = vunpack.c.l.b16 %v476
    %v2460 = vunpack.c.h.b16 %v476
    %v2461 = vunpack.c.l.b16 %v477
    %v2462 = vunpack.c.h.b16 %v477
    %v2463 = vunpack.c.l.b16 %v478
    %v2464 = vunpack.c.h.b16 %v478
    %v2465 = vunpack.c.l.b16 %v479
    %v2466 = vunpack.c.h.b16 %v479
    %v2467 = vunpack.c.l.b16 %v480
    %v2468 = vunpack.c.h.b16 %v480
    %v2469 = vunpack.c.l.b16 %v481
    %v2470 = vunpack.c.h.b16 %v481
    %v2471 = vunpack.c.l.b16 %v482
    %v2472 = vunpack.c.h.b16 %v482
    %v2473 = vunpack.c.l.b16 %v483
    %v2474 = vunpack.c.h.b16 %v483
    %v2475 = vunpack.c.l.b16 %v484
    %v2476 = vunpack.c.h.b16 %v484
    %v2477 = vunpack.c.l.b16 %v485
    %v2478 = vunpack.c.h.b16 %v485
    %v2479 = vunpack.c.l.b16 %v486
    %v2480 = vunpack.c.h.b16 %v486
    %v2481 = vunpack.c.l.b16 %v487
    %v2482 = vunpack.c.h.b16 %v487
    %v2483 = vunpack.c.l.b16 %v488
    %v2484 = vunpack.c.h.b16 %v488
    %v2485 = vunpack.c.l.b16 %v489
    %v2486 = vunpack.c.h.b16 %v489
    %v2487 = vunpack.c.l.b16 %v490
    %v2488 = vunpack.c.h.b16 %v490
    %v2489 = vunpack.c.l.b16 %v491
    %v2490 = vunpack.c.h.b16 %v491
    %v2491 = vunpack.c.l.b16 %v492
    %v2492 = vunpack.c.h.b16 %v492
    %v2493 = vunpack.c.l.b16 %v493
    %v2494 = vunpack.c.h.b16 %v493
    %v2495 = vunpack.c.l.b16 %v494
    %v2496 = vunpack.c.h.b16 %v494
    %v2497 = vunpack.c.l.b16 %v495
    %v2498 = vunpack.c.h.b16 %v495
    %v2499 = vunpack.c.l.b16 %v496
    %v2500 = vunpack.c.h.b16 %v496
    %v2501 = vunpack.c.l.b16 %v497
    %v2502 = vunpack.c.h.b16 %v497
    %v2503 = vunpack.c.l.b16 %v498
    %v2504 = vunpack.c.h.b16 %v498
    %v2505 = vunpack.c.l.b16 %v499
    %v2506 = vunpack.c.h.b16 %v499
    %v2507 = vunpack.c.l.b16 %v500
    %v2508 = vunpack.c.h.b16 %v500
    %v2509 = vunpack.c.l.b16 %v501
    %v2510 = vunpack.c.h.b16 %v501
    %v2511 = vunpack.c.l.b16 %v502
    %v2512 = vunpack.c.h.b16 %v502
    %v2513 = vunpack.c.l.b16 %v503
    %v2514 = vunpack.c.h.b16 %v503
    %v2515 = vunpack.c.l.b16 %v504
    %v2516 = vunpack.c.h.b16 %v504
    %v2517 = vunpack.c.l.b16 %v505
    %v2518 = vunpack.c.h.b16 %v505
    %v2519 = vunpack.c.l.b16 %v506
    %v2520 = vunpack.c.h.b16 %v506
    %v2521 = vunpack.c.l.b16 %v507
    %v2522 = vunpack.c.h.b16 %v507
    %v2523 = vunpack.c.l.b16 %v508
    %v2524 = vunpack.c.h.b16 %v508
    %v2525 = vunpack.c.l.b16 %v509
    %v2526 = vunpack.c.h.b16 %v509
    %v2527 = vunpack.c.l.b16 %v510
    %v2528 = vunpack.c.h.b16 %v510
    %v2529 = vunpack.c.l.b16 %v511
    %v2530 = vunpack.c.h.b16 %v511
    %v2531 = vunpack.c.l.b16 %v512
    %v2532 = vunpack.c.h.b16 %v512
    %v2533 = vunpack.c.l.b16 %v513
    %v2534 = vunpack.c.h.b16 %v513
    %v2535 = vunpack.c.l.b16 %v514
    %v2536 = vunpack.c.h.b16 %v514
    %v2537 = vunpack.c.l.b16 %v515
    %v2538 = vunpack.c.h.b16 %v515
    %v2539 = vunpack.c.l.b16 %v516
    %v2540 = vunpack.c.h.b16 %v516
    %v2541 = vunpack.c.l.b16 %v517
    %v2542 = vunpack.c.h.b16 %v517
    %v2543 = vunpack.c.l.b16 %v518
    %v2544 = vunpack.c.h.b16 %v518
    %v2545 = vunpack.c.l.b16 %v519
    %v2546 = vunpack.c.h.b16 %v519
    %v2547 = vunpack.c.l.b16 %v520
    %v2548 = vunpack.c.h.b16 %v520
    %v2549 = vunpack.c.l.b16 %v521
    %v2550 = vunpack.c.h.b16 %v521
    %v2551 = vunpack.c.l.b16 %v522
    %v2552 = vunpack.c.h.b16 %v522
    %v2553 = vunpack.c.l.b16 %v523
    %v2554 = vunpack.c.h.b16 %v523
    %v2555 = vunpack.c.l.b16 %v524
    %v2556 = vunpack.c.h.b16 %v524
    %v2557 = vunpack.c.l.b16 %v525
    %v2558 = vunpack.c.h.b16 %v525
    %v2559 = vunpack.c.l.b16 %v526
    %v2560 = vunpack.c.h.b16 %v526
    %v2561 = vunpack.c.l.b16 %v527
    %v2562 = vunpack.c.h.b16 %v527
    %v2563 = vunpack.c.l.b16 %v528
    %v2564 = vunpack.c.h.b16 %v528
    %v2565 = vunpack.c.l.b16 %v529
    %v2566 = vunpack.c.h.b16 %v529
    %v2567 = vunpack.c.l.b16 %v530
    %v2568 = vunpack.c.h.b16 %v530
    %v2569 = vunpack.c.l.b16 %v531
    %v2570 = vunpack.c.h.b16 %v531
    %v2571 = vunpack.c.l.b16 %v532
    %v2572 = vunpack.c.h.b16 %v532
    %v2573 = vunpack.c.l.b16 %v533
    %v2574 = vunpack.c.h.b16 %v533
    %v2575 = vunpack.c.l.b16 %v534
    %v2576 = vunpack.c.h.b16 %v534
    %v2577 = vunpack.c.l.b16 %v535
    %v2578 = vunpack.c.h.b16 %v535
    %v2579 = vunpack.c.l.b16 %v536
    %v2580 = vunpack.c.h.b16 %v536
    %v2581 = vunpack.c.l.b16 %v537
    %v2582 = vunpack.c.h.b16 %v537
    %v2583 = vunpack.c.l.b16 %v538
    %v2584 = vunpack.c.h.b16 %v538
    %v2585 = vunpack.c.l.b16 %v539
    %v2586 = vunpack.c.h.b16 %v539
    %v2587 = vunpack.c.l.b16 %v540
    %v2588 = vunpack.c.h.b16 %v540
    %v2589 = vunpack.c.l.b16 %v541
    %v2590 = vunpack.c.h.b16 %v541
    %v2591 = vunpack.c.l.b16 %v542
    %v2592 = vunpack.c.h.b16 %v542
    %v2593 = vunpack.c.l.b16 %v543
    %v2594 = vunpack.c.h.b16 %v543
    %v2595 = vunpack.c.l.b16 %v544
    %v2596 = vunpack.c.h.b16 %v544
    %v2597 = vunpack.c.l.b16 %v545
    %v2598 = vunpack.c.h.b16 %v545
    %v2599 = vunpack.c.l.b16 %v546
    %v2600 = vunpack.c.h.b16 %v546
    %v2601 = vunpack.c.l.b16 %v547
    %v2602 = vunpack.c.h.b16 %v547
    %v2603 = vunpack.c.l.b16 %v548
    %v2604 = vunpack.c.h.b16 %v548
    %v2605 = vunpack.c.l.b16 %v549
    %v2606 = vunpack.c.h.b16 %v549
    %v2607 = vunpack.c.l.b16 %v550
    %v2608 = vunpack.c.h.b16 %v550
    %v2609 = vunpack.c.l.b16 %v551
    %v2610 = vunpack.c.h.b16 %v551
    %v2611 = vunpack.c.l.b16 %v552
    %v2612 = vunpack.c.h.b16 %v552
    %v2613 = vunpack.c.l.b16 %v553
    %v2614 = vunpack.c.h.b16 %v553
    %v2615 = vunpack.c.l.b16 %v554
    %v2616 = vunpack.c.h.b16 %v554
    %v2617 = vunpack.c.l.b16 %v555
    %v2618 = vunpack.c.h.b16 %v555
    %v2619 = vunpack.c.l.b16 %v556
    %v2620 = vunpack.c.h.b16 %v556
    %v2621 = vunpack.c.l.b16 %v557
    %v2622 = vunpack.c.h.b16 %v557
    %v2623 = vunpack.c.l.b16 %v558
    %v2624 = vunpack.c.h.b16 %v558
    %v2625 = vunpack.c.l.b16 %v559
    %v2626 = vunpack.c.h.b16 %v559
    %v2627 = vunpack.c.l.b16 %v560
    %v2628 = vunpack.c.h.b16 %v560
    %v2629 = vunpack.c.l.b16 %v561
    %v2630 = vunpack.c.h.b16 %v561
    %v2631 = vunpack.c.l.b16 %v562
    %v2632 = vunpack.c.h.b16 %v562
    %v2633 = vunpack.c.l.b16 %v563
    %v2634 = vunpack.c.h.b16 %v563
    %v2635 = vunpack.c.l.b16 %v564
    %v2636 = vunpack.c.h.b16 %v564
    %v2637 = vunpack.c.l.b16 %v565
    %v2638 = vunpack.c.h.b16 %v565
    %v2639 = vunpack.c.l.b16 %v566
    %v2640 = vunpack.c.h.b16 %v566
    %v2641 = vunpack.c.l.b16 %v567
    %v2642 = vunpack.c.h.b16 %v567
    %v2643 = vunpack.c.l.b16 %v568
    %v2644 = vunpack.c.h.b16 %v568
    %v2645 = vunpack.c.l.b16 %v569
    %v2646 = vunpack.c.h.b16 %v569
    %v2647 = vunpack.c.l.b16 %v570
    %v2648 = vunpack.c.h.b16 %v570
    %v2649 = vunpack.c.l.b16 %v571
    %v2650 = vunpack.c.h.b16 %v571
    %v2651 = vunpack.c.l.b16 %v572
    %v2652 = vunpack.c.h.b16 %v572
    %v2653 = vunpack.c.l.b16 %v573
    %v2654 = vunpack.c.h.b16 %v573
    %v2655 = vunpack.c.l.b16 %v574
    %v2656 = vunpack.c.h.b16 %v574
    %v2657 = vunpack.c.l.b16 %v575
    %v2658 = vunpack.c.h.b16 %v575
    %v2659 = vunpack.c.l.b16 %v576
    %v2660 = vunpack.c.h.b16 %v576
    %v2661 = vunpack.c.l.b16 %v577
    %v2662 = vunpack.c.h.b16 %v577
    %v2663 = vunpack.c.l.b16 %v578
    %v2664 = vunpack.c.h.b16 %v578
    %v2665 = vunpack.c.l.b16 %v579
    %v2666 = vunpack.c.h.b16 %v579
    %v2667 = vunpack.c.l.b16 %v580
    %v2668 = vunpack.c.h.b16 %v580
    %v2669 = vunpack.c.l.b16 %v581
    %v2670 = vunpack.c.h.b16 %v581
    %v2671 = vunpack.c.l.b16 %v582
    %v2672 = vunpack.c.h.b16 %v582
    %v2673 = vunpack.c.l.b16 %v583
    %v2674 = vunpack.c.h.b16 %v583
    %v2675 = vunpack.c.l.b16 %v584
    %v2676 = vunpack.c.h.b16 %v584
    %v2677 = vunpack.c.l.b16 %v585
    %v2678 = vunpack.c.h.b16 %v585
    %v2679 = vunpack.c.l.b16 %v586
    %v2680 = vunpack.c.h.b16 %v586
    %v2681 = vunpack.c.l.b16 %v587
    %v2682 = vunpack.c.h.b16 %v587
    %v2683 = vunpack.c.l.b16 %v588
    %v2684 = vunpack.c.h.b16 %v588
    %v2685 = vunpack.c.l.b16 %v589
    %v2686 = vunpack.c.h.b16 %v589
    %v2687 = vunpack.c.l.b16 %v590
    %v2688 = vunpack.c.h.b16 %v590
    %v2689 = vunpack.c.l.b16 %v591
    %v2690 = vunpack.c.h.b16 %v591
    %v2691 = vunpack.c.l.b16 %v592
    %v2692 = vunpack.c.h.b16 %v592
    %v2693 = vunpack.c.l.b16 %v593
    %v2694 = vunpack.c.h.b16 %v593
    %v2695 = vunpack.c.l.b16 %v594
    %v2696 = vunpack.c.h.b16 %v594
    %v2697 = vunpack.c.l.b16 %v595
    %v2698 = vunpack.c.h.b16 %v595
    %v2699 = vunpack.c.l.b16 %v596
    %v2700 = vunpack.c.h.b16 %v596
    %v2701 = vunpack.c.l.b16 %v597
    %v2702 = vunpack.c.h.b16 %v597
    %v2703 = vunpack.c.l.b16 %v598
    %v2704 = vunpack.c.h.b16 %v598
    %v2705 = vunpack.c.l.b16 %v599
    %v2706 = vunpack.c.h.b16 %v599
    %v2707 = vunpack.c.l.b16 %v600
    %v2708 = vunpack.c.h.b16 %v600
    %v2709 = vunpack.c.l.b16 %v601
    %v2710 = vunpack.c.h.b16 %v601
    %v2711 = vunpack.c.l.b16 %v602
    %v2712 = vunpack.c.h.b16 %v602
    %v2713 = vunpack.c.l.b16 %v603
    %v2714 = vunpack.c.h.b16 %v603
    %v2715 = vunpack.c.l.b16 %v604
    %v2716 = vunpack.c.h.b16 %v604
    %v2717 = vunpack.c.l.b16 %v605
    %v2718 = vunpack.c.h.b16 %v605
    %v2719 = vunpack.c.l.b16 %v606
    %v2720 = vunpack.c.h.b16 %v606
    %v2721 = vunpack.c.l.b16 %v607
    %v2722 = vunpack.c.h.b16 %v607
    %v2723 = vunpack.c.l.b16 %v608
    %v2724 = vunpack.c.h.b16 %v608
    %v2725 = vunpack.c.l.b16 %v609
    %v2726 = vunpack.c.h.b16 %v609
    %v2727 = vunpack.c.l.b16 %v610
    %v2728 = vunpack.c.h.b16 %v610
    %v2729 = vunpack.c.l.b16 %v611
    %v2730 = vunpack.c.h.b16 %v611
    %v2731 = vunpack.c.l.b16 %v612
    %v2732 = vunpack.c.h.b16 %v612
    %v2733 = vunpack.c.l.b16 %v613
    %v2734 = vunpack.c.h.b16 %v613
    %v2735 = vunpack.c.l.b16 %v614
    %v2736 = vunpack.c.h.b16 %v614
    %v2737 = vunpack.c.l.b16 %v615
    %v2738 = vunpack.c.h.b16 %v615
    %v2739 = vunpack.c.l.b16 %v616
    %v2740 = vunpack.c.h.b16 %v616
    %v2741 = vunpack.c.l.b16 %v617
    %v2742 = vunpack.c.h.b16 %v617
    %v2743 = vunpack.c.l.b16 %v618
    %v2744 = vunpack.c.h.b16 %v618
    %v2745 = vunpack.c.l.b16 %v619
    %v2746 = vunpack.c.h.b16 %v619
    %v2747 = vunpack.c.l.b16 %v620
    %v2748 = vunpack.c.h.b16 %v620
    %v2749 = vunpack.c.l.b16 %v621
    %v2750 = vunpack.c.h.b16 %v621
    %v2751 = vunpack.c.l.b16 %v622
    %v2752 = vunpack.c.h.b16 %v622
    %v2753 = vunpack.c.l.b16 %v623
    %v2754 = vunpack.c.h.b16 %v623
    %v2755 = vunpack.c.l.b16 %v624
    %v2756 = vunpack.c.h.b16 %v624
    %v2757 = vunpack.c.l.b16 %v625
    %v2758 = vunpack.c.h.b16 %v625
    %v2759 = vunpack.c.l.b16 %v626
    %v2760 = vunpack.c.h.b16 %v626
    %v2761 = vunpack.c.l.b16 %v627
    %v2762 = vunpack.c.h.b16 %v627
    %v2763 = vunpack.c.l.b16 %v628
    %v2764 = vunpack.c.h.b16 %v628
    %v2765 = vunpack.c.l.b16 %v629
    %v2766 = vunpack.c.h.b16 %v629
    %v2767 = vunpack.c.l.b16 %v630
    %v2768 = vunpack.c.h.b16 %v630
    %v2769 = vunpack.c.l.b16 %v631
    %v2770 = vunpack.c.h.b16 %v631
    %v2771 = vunpack.c.l.b16 %v632
    %v2772 = vunpack.c.h.b16 %v632
    %v2773 = vunpack.c.l.b16 %v633
    %v2774 = vunpack.c.h.b16 %v633
    %v2775 = vunpack.c.l.b16 %v634
    %v2776 = vunpack.c.h.b16 %v634
    %v2777 = vunpack.c.l.b16 %v635
    %v2778 = vunpack.c.h.b16 %v635
    %v2779 = vunpack.c.l.b16 %v636
    %v2780 = vunpack.c.h.b16 %v636
    %v2781 = vunpack.c.l.b16 %v637
    %v2782 = vunpack.c.h.b16 %v637
    %v2783 = vunpack.c.l.b16 %v638
    %v2784 = vunpack.c.h.b16 %v638
    %v2785 = vunpack.c.l.b16 %v639
    %v2786 = vunpack.c.h.b16 %v639
    %v2787 = vunpack.c.l.b16 %v640
    %v2788 = vunpack.c.h.b16 %v640
    %v2789 = vunpack.c.l.b16 %v641
    %v2790 = vunpack.c.h.b16 %v641
    %v2791 = vunpack.c.l.b16 %v642
    %v2792 = vunpack.c.h.b16 %v642
    %v2793 = vunpack.c.l.b16 %v643
    %v2794 = vunpack.c.h.b16 %v643
    %v2795 = vunpack.c.l.b16 %v644
    %v2796 = vunpack.c.h.b16 %v644
    %v2797 = vunpack.c.l.b16 %v645
    %v2798 = vunpack.c.h.b16 %v645
    %v2799 = vunpack.c.l.b16 %v646
    %v2800 = vunpack.c.h.b16 %v646
    %v2801 = vunpack.c.l.b16 %v647
    %v2802 = vunpack.c.h.b16 %v647
    %v2803 = vunpack.c.l.b16 %v648
    %v2804 = vunpack.c.h.b16 %v648
    %v2805 = vunpack.c.l.b16 %v649
    %v2806 = vunpack.c.h.b16 %v649
    %v2807 = vunpack.c.l.b16 %v650
    %v2808 = vunpack.c.h.b16 %v650
    %v2809 = vunpack.c.l.b16 %v651
    %v2810 = vunpack.c.h.b16 %v651
    %v2811 = vunpack.c.l.b16 %v652
    %v2812 = vunpack.c.h.b16 %v652
    %v2813 = vunpack.c.l.b16 %v653
    %v2814 = vunpack.c.h.b16 %v653
    %v2815 = vunpack.c.l.b16 %v654
    %v2816 = vunpack.c.h.b16 %v654
    %v2817 = vunpack.c.l.b16 %v655
    %v2818 = vunpack.c.h.b16 %v655
    %v2819 = vunpack.c.l.b16 %v656
    %v2820 = vunpack.c.h.b16 %v656
    %v2821 = vunpack.c.l.b16 %v657
    %v2822 = vunpack.c.h.b16 %v657
    %v2823 = vunpack.c.l.b16 %v658
    %v2824 = vunpack.c.h.b16 %v658
    %v2825 = vunpack.c.l.b16 %v659
    %v2826 = vunpack.c.h.b16 %v659
    %v2827 = vunpack.c.l.b16 %v660
    %v2828 = vunpack.c.h.b16 %v660
    %v2829 = vunpack.c.l.b16 %v661
    %v2830 = vunpack.c.h.b16 %v661
    %v2831 = vunpack.c.l.b16 %v662
    %v2832 = vunpack.c.h.b16 %v662
    %v2833 = vunpack.c.l.b16 %v663
    %v2834 = vunpack.c.h.b16 %v663
    %v2835 = vunpack.c.l.b16 %v664
    %v2836 = vunpack.c.h.b16 %v664
    %v2837 = vunpack.c.l.b16 %v665
    %v2838 = vunpack.c.h.b16 %v665
    %v2839 = vunpack.c.l.b16 %v666
    %v2840 = vunpack.c.h.b16 %v666
    %v2841 = vunpack.c.l.b16 %v667
    %v2842 = vunpack.c.h.b16 %v667
    %v2843 = vunpack.c.l.b16 %v668
    %v2844 = vunpack.c.h.b16 %v668
    %v2845 = vunpack.c.l.b16 %v669
    %v2846 = vunpack.c.h.b16 %v669
    %v2847 = vunpack.c.l.b16 %v670
    %v2848 = vunpack.c.h.b16 %v670
    %v2849 = vunpack.c.l.b16 %v671
    %v2850 = vunpack.c.h.b16 %v671
    %v2851 = vunpack.c.l.b16 %v672
    %v2852 = vunpack.c.h.b16 %v672
    %v2853 = vunpack.c.l.b16 %v673
    %v2854 = vunpack.c.h.b16 %v673
    %v2855 = vunpack.c.l.b16 %v674
    %v2856 = vunpack.c.h.b16 %v674
    %v2857 = vunpack.c.l.b16 %v675
    %v2858 = vunpack.c.h.b16 %v675
    %v2859 = vunpack.c.l.b16 %v676
    %v2860 = vunpack.c.h.b16 %v676
    %v2861 = vunpack.c.l.b16 %v677
    %v2862 = vunpack.c.h.b16 %v677
    %v2863 = vunpack.c.l.b16 %v678
    %v2864 = vunpack.c.h.b16 %v678
    %v2865 = vunpack.c.l.b16 %v679
    %v2866 = vunpack.c.h.b16 %v679
    %v2867 = vunpack.c.l.b16 %v680
    %v2868 = vunpack.c.h.b16 %v680
    %v2869 = vunpack.c.l.b16 %v681
    %v2870 = vunpack.c.h.b16 %v681
    %v2871 = vunpack.c.l.b16 %v682
    %v2872 = vunpack.c.h.b16 %v682
    %v2873 = vunpack.c.l.b16 %v683
    %v2874 = vunpack.c.h.b16 %v683
    %v2875 = vunpack.c.l.b16 %v684
    %v2876 = vunpack.c.h.b16 %v684
    %v2877 = vunpack.c.l.b16 %v685
    %v2878 = vunpack.c.h.b16 %v685
    %v2879 = vunpack.c.l.b16 %v686
    %v2880 = vunpack.c.h.b16 %v686
    %v2881 = vunpack.c.l.b16 %v687
    %v2882 = vunpack.c.h.b16 %v687
    %v2883 = vunpack.c.l.b16 %v688
    %v2884 = vunpack.c.h.b16 %v688
    %v2885 = vunpack.c.l.b16 %v689
    %v2886 = vunpack.c.h.b16 %v689
    %v2887 = vunpack.c.l.b16 %v690
    %v2888 = vunpack.c.h.b16 %v690
    %v2889 = vunpack.c.l.b16 %v691
    %v2890 = vunpack.c.h.b16 %v691
    %v2891 = vunpack.c.l.b16 %v692
    %v2892 = vunpack.c.h.b16 %v692
    %v2893 = vunpack.c.l.b16 %v693
    %v2894 = vunpack.c.h.b16 %v693
    %v2895 = vunpack.c.l.b16 %v694
    %v2896 = vunpack.c.h.b16 %v694
    %v2897 = vunpack.c.l.b16 %v695
    %v2898 = vunpack.c.h.b16 %v695
    %v2899 = vunpack.c.l.b16 %v696
    %v2900 = vunpack.c.h.b16 %v696
    %v2901 = vunpack.c.l.b16 %v697
    %v2902 = vunpack.c.h.b16 %v697
    %v2903 = vunpack.c.l.b16 %v698
    %v2904 = vunpack.c.h.b16 %v698
    %v2905 = vunpack.c.l.b16 %v699
    %v2906 = vunpack.c.h.b16 %v699
    %v2907 = vunpack.c.l.b16 %v700
    %v2908 = vunpack.c.h.b16 %v700
    %v2909 = vunpack.c.l.b16 %v701
    %v2910 = vunpack.c.h.b16 %v701
    %v2911 = vunpack.c.l.b16 %v702
    %v2912 = vunpack.c.h.b16 %v702
    %v2913 = vunpack.c.l.b16 %v703
    %v2914 = vunpack.c.h.b16 %v703
    %v2915 = vunpack.c.l.b16 %v704
    %v2916 = vunpack.c.h.b16 %v704
    %v2917 = vunpack.c.l.b16 %v705
    %v2918 = vunpack.c.h.b16 %v705
    %v2919 = vunpack.c.l.b16 %v706
    %v2920 = vunpack.c.h.b16 %v706
    %v2921 = vunpack.c.l.b16 %v707
    %v2922 = vunpack.c.h.b16 %v707
    %v2923 = vunpack.c.l.b16 %v708
    %v2924 = vunpack.c.h.b16 %v708
    %v2925 = vunpack.c.l.b16 %v709
    %v2926 = vunpack.c.h.b16 %v709
    %v2927 = vunpack.c.l.b16 %v710
    %v2928 = vunpack.c.h.b16 %v710
    %v2929 = vunpack.c.l.b16 %v711
    %v2930 = vunpack.c.h.b16 %v711
    %v2931 = vunpack.c.l.b16 %v712
    %v2932 = vunpack.c.h.b16 %v712
    %v2933 = vunpack.c.l.b16 %v713
    %v2934 = vunpack.c.h.b16 %v713
    %v2935 = vunpack.c.l.b16 %v714
    %v2936 = vunpack.c.h.b16 %v714
    %v2937 = vunpack.c.l.b16 %v715
    %v2938 = vunpack.c.h.b16 %v715
    %v2939 = vunpack.c.l.b16 %v716
    %v2940 = vunpack.c.h.b16 %v716
    %v2941 = vunpack.c.l.b16 %v717
    %v2942 = vunpack.c.h.b16 %v717
    %v2943 = vunpack.c.l.b16 %v718
    %v2944 = vunpack.c.h.b16 %v718
    %v2945 = vunpack.c.l.b16 %v719
    %v2946 = vunpack.c.h.b16 %v719
    %v2947 = vunpack.c.l.b16 %v720
    %v2948 = vunpack.c.h.b16 %v720
    %v2949 = vunpack.c.l.b16 %v721
    %v2950 = vunpack.c.h.b16 %v721
    %v2951 = vunpack.c.l.b16 %v722
    %v2952 = vunpack.c.h.b16 %v722
    %v2953 = vunpack.c.l.b16 %v723
    %v2954 = vunpack.c.h.b16 %v723
    %v2955 = vunpack.c.l.b16 %v724
    %v2956 = vunpack.c.h.b16 %v724
    %v2957 = vunpack.c.l.b16 %v725
    %v2958 = vunpack.c.h.b16 %v725
    %v2959 = vunpack.c.l.b16 %v726
    %v2960 = vunpack.c.h.b16 %v726
    %v2961 = vunpack.c.l.b16 %v727
    %v2962 = vunpack.c.h.b16 %v727
    %v2963 = vunpack.c.l.b16 %v728
    %v2964 = vunpack.c.h.b16 %v728
    %v2965 = vunpack.c.l.b16 %v729
    %v2966 = vunpack.c.h.b16 %v729
    %v2967 = vunpack.c.l.b16 %v730
    %v2968 = vunpack.c.h.b16 %v730
    %v2969 = vunpack.c.l.b16 %v731
    %v2970 = vunpack.c.h.b16 %v731
    %v2971 = vunpack.c.l.b16 %v732
    %v2972 = vunpack.c.h.b16 %v732
    %v2973 = vunpack.c.l.b16 %v733
    %v2974 = vunpack.c.h.b16 %v733
    %v2975 = vunpack.c.l.b16 %v734
    %v2976 = vunpack.c.h.b16 %v734
    %v2977 = vunpack.c.l.b16 %v735
    %v2978 = vunpack.c.h.b16 %v735
    %v2979 = vunpack.c.l.b16 %v736
    %v2980 = vunpack.c.h.b16 %v736
    %v2981 = vunpack.c.l.b16 %v737
    %v2982 = vunpack.c.h.b16 %v737
    %v2983 = vunpack.c.l.b16 %v738
    %v2984 = vunpack.c.h.b16 %v738
    %v2985 = vunpack.c.l.b16 %v739
    %v2986 = vunpack.c.h.b16 %v739
    %v2987 = vunpack.c.l.b16 %v740
    %v2988 = vunpack.c.h.b16 %v740
    %v2989 = vunpack.c.l.b16 %v741
    %v2990 = vunpack.c.h.b16 %v741
    %v2991 = vunpack.c.l.b16 %v742
    %v2992 = vunpack.c.h.b16 %v742
    %v2993 = vunpack.c.l.b16 %v743
    %v2994 = vunpack.c.h.b16 %v743
    %v2995 = vunpack.c.l.b16 %v744
    %v2996 = vunpack.c.h.b16 %v744
    %v2997 = vunpack.c.l.b16 %v745
    %v2998 = vunpack.c.h.b16 %v745
    %v2999 = vunpack.c.l.b16 %v746
    %v3000 = vunpack.c.h.b16 %v746
    %v3001 = vunpack.c.l.b16 %v747
    %v3002 = vunpack.c.h.b16 %v747
    %v3003 = vunpack.c.l.b16 %v748
    %v3004 = vunpack.c.h.b16 %v748
    %v3005 = vunpack.c.l.b16 %v749
    %v3006 = vunpack.c.h.b16 %v749
    %v3007 = vunpack.c.l.b16 %v750
    %v3008 = vunpack.c.h.b16 %v750
    %v3009 = vunpack.c.l.b16 %v751
    %v3010 = vunpack.c.h.b16 %v751
    %v3011 = vunpack.c.l.b16 %v752
    %v3012 = vunpack.c.h.b16 %v752
    %v3013 = vunpack.c.l.b16 %v753
    %v3014 = vunpack.c.h.b16 %v753
    %v3015 = vunpack.c.l.b16 %v754
    %v3016 = vunpack.c.h.b16 %v754
    %v3017 = vunpack.c.l.b16 %v755
    %v3018 = vunpack.c.h.b16 %v755
    %v3019 = vunpack.c.l.b16 %v756
    %v3020 = vunpack.c.h.b16 %v756
    %v3021 = vunpack.c.l.b16 %v757
    %v3022 = vunpack.c.h.b16 %v757
    %v3023 = vunpack.c.l.b16 %v758
    %v3024 = vunpack.c.h.b16 %v758
    %v3025 = vunpack.c.l.b16 %v759
    %v3026 = vunpack.c.h.b16 %v759
    %v3027 = vunpack.c.l.b16 %v760
    %v3028 = vunpack.c.h.b16 %v760
    %v3029 = vunpack.c.l.b16 %v761
    %v3030 = vunpack.c.h.b16 %v761
    %v3031 = vunpack.c.l.b16 %v762
    %v3032 = vunpack.c.h.b16 %v762
    %v3033 = vunpack.c.l.b16 %v763
    %v3034 = vunpack.c.h.b16 %v763
    %v3035 = vunpack.c.l.b16 %v764
    %v3036 = vunpack.c.h.b16 %v764
    %v3037 = vunpack.c.l.b16 %v765
    %v3038 = vunpack.c.h.b16 %v765
    %v3039 = vunpack.c.l.b16 %v766
    %v3040 = vunpack.c.h.b16 %v766
    %v3041 = vunpack.c.l.b16 %v767
    %v3042 = vunpack.c.h.b16 %v767
    %v3043 = vunpack.c.l.b16 %v768
    %v3044 = vunpack.c.h.b16 %v768
    %v3045 = vunpack.c.l.b16 %v769
    %v3046 = vunpack.c.h.b16 %v769
    %v3047 = vunpack.c.l.b16 %v770
    %v3048 = vunpack.c.h.b16 %v770
    %v3049 = vunpack.c.l.b16 %v771
    %v3050 = vunpack.c.h.b16 %v771
    %v3051 = vunpack.c.l.b16 %v772
    %v3052 = vunpack.c.h.b16 %v772
    %v3053 = vunpack.c.l.b16 %v773
    %v3054 = vunpack.c.h.b16 %v773
    %v3055 = vunpack.c.l.b16 %v774
    %v3056 = vunpack.c.h.b16 %v774
    %v3057 = vunpack.c.l.b16 %v775
    %v3058 = vunpack.c.h.b16 %v775
    %v3059 = vunpack.c.l.b16 %v776
    %v3060 = vunpack.c.h.b16 %v776
    %v3061 = vunpack.c.l.b16 %v777
    %v3062 = vunpack.c.h.b16 %v777
    %v3063 = vunpack.c.l.b16 %v778
    %v3064 = vunpack.c.h.b16 %v778
    %v3065 = vunpack.c.l.b16 %v779
    %v3066 = vunpack.c.h.b16 %v779
    %v3067 = vunpack.c.l.b16 %v780
    %v3068 = vunpack.c.h.b16 %v780
    %v3069 = vunpack.c.l.b16 %v781
    %v3070 = vunpack.c.h.b16 %v781
    %v3071 = vunpack.c.l.b16 %v782
    %v3072 = vunpack.c.h.b16 %v782
    %v3073 = vunpack.c.l.b16 %v783
    %v3074 = vunpack.c.h.b16 %v783
    %v3075 = vunpack.c.l.b16 %v784
    %v3076 = vunpack.c.h.b16 %v784
    %v3077 = vunpack.c.l.b16 %v785
    %v3078 = vunpack.c.h.b16 %v785
    %v3079 = vunpack.c.l.b16 %v786
    %v3080 = vunpack.c.h.b16 %v786
    %v3081 = vunpack.c.l.b16 %v787
    %v3082 = vunpack.c.h.b16 %v787
    %v3083 = vunpack.c.l.b16 %v788
    %v3084 = vunpack.c.h.b16 %v788
    %v3085 = vunpack.c.l.b16 %v789
    %v3086 = vunpack.c.h.b16 %v789
    %v3087 = vunpack.c.l.b16 %v790
    %v3088 = vunpack.c.h.b16 %v790
    %v3089 = vunpack.c.l.b16 %v791
    %v3090 = vunpack.c.h.b16 %v791
    %v3091 = vunpack.c.l.b16 %v792
    %v3092 = vunpack.c.h.b16 %v792
    %v3093 = vunpack.c.l.b16 %v793
    %v3094 = vunpack.c.h.b16 %v793
    %v3095 = vunpack.c.l.b16 %v794
    %v3096 = vunpack.c.h.b16 %v794
    %v3097 = vunpack.c.l.b16 %v795
    %v3098 = vunpack.c.h.b16 %v795
    %v3099 = vunpack.c.l.b16 %v796
    %v3100 = vunpack.c.h.b16 %v796
    %v3101 = vunpack.c.l.b16 %v797
    %v3102 = vunpack.c.h.b16 %v797
    %v3103 = vunpack.c.l.b16 %v798
    %v3104 = vunpack.c.h.b16 %v798
    %v3105 = vunpack.c.l.b16 %v799
    %v3106 = vunpack.c.h.b16 %v799
    %v3107 = vunpack.c.l.b16 %v800
    %v3108 = vunpack.c.h.b16 %v800
    %v3109 = vunpack.c.l.b16 %v801
    %v3110 = vunpack.c.h.b16 %v801
    %v3111 = vunpack.c.l.b16 %v802
    %v3112 = vunpack.c.h.b16 %v802
    %v3113 = vunpack.c.l.b16 %v803
    %v3114 = vunpack.c.h.b16 %v803
    %v3115 = vunpack.c.l.b16 %v804
    %v3116 = vunpack.c.h.b16 %v804
    %v3117 = vunpack.c.l.b16 %v805
    %v3118 = vunpack.c.h.b16 %v805
    %v3119 = vunpack.c.l.b16 %v806
    %v3120 = vunpack.c.h.b16 %v806
    %v3121 = vunpack.c.l.b16 %v807
    %v3122 = vunpack.c.h.b16 %v807
    %v3123 = vunpack.c.l.b16 %v808
    %v3124 = vunpack.c.h.b16 %v808
    %v3125 = vunpack.c.l.b16 %v809
    %v3126 = vunpack.c.h.b16 %v809
    %v3127 = vunpack.c.l.b16 %v810
    %v3128 = vunpack.c.h.b16 %v810
    %v3129 = vunpack.c.l.b16 %v811
    %v3130 = vunpack.c.h.b16 %v811
    %v3131 = vunpack.c.l.b16 %v812
    %v3132 = vunpack.c.h.b16 %v812
    %v3133 = vunpack.c.l.b16 %v813
    %v3134 = vunpack.c.h.b16 %v813
    %v3135 = vunpack.c.l.b16 %v814
    %v3136 = vunpack.c.h.b16 %v814
    %v3137 = vunpack.c.l.b16 %v815
    %v3138 = vunpack.c.h.b16 %v815
    %v3139 = vunpack.c.l.b16 %v816
    %v3140 = vunpack.c.h.b16 %v816
    %v3141 = vunpack.c.l.b16 %v817
    %v3142 = vunpack.c.h.b16 %v817
    %v3143 = vunpack.c.l.b16 %v818
    %v3144 = vunpack.c.h.b16 %v818
    %v3145 = vunpack.c.l.b16 %v819
    %v3146 = vunpack.c.h.b16 %v819
    %v3147 = vunpack.c.l.b16 %v820
    %v3148 = vunpack.c.h.b16 %v820
    %v3149 = vunpack.c.l.b16 %v821
    %v3150 = vunpack.c.h.b16 %v821
    %v3151 = vunpack.c.l.b16 %v822
    %v3152 = vunpack.c.h.b16 %v822
    %v3153 = vunpack.c.l.b16 %v823
    %v3154 = vunpack.c.h.b16 %v823
    %v3155 = vunpack.c.l.b16 %v824
    %v3156 = vunpack.c.h.b16 %v824
    %v3157 = vunpack.c.l.b16 %v825
    %v3158 = vunpack.c.h.b16 %v825
    %v3159 = vunpack.c.l.b16 %v826
    %v3160 = vunpack.c.h.b16 %v826
    %v3161 = vunpack.c.l.b16 %v827
    %v3162 = vunpack.c.h.b16 %v827
    %v3163 = vunpack.c.l.b16 %v828
    %v3164 = vunpack.c.h.b16 %v828
    %v3165 = vunpack.c.l.b16 %v829
    %v3166 = vunpack.c.h.b16 %v829
    %v3167 = vunpack.c.l.b16 %v830
    %v3168 = vunpack.c.h.b16 %v830
    %v3169 = vunpack.c.l.b16 %v831
    %v3170 = vunpack.c.h.b16 %v831
    %v3171 = vunpack.c.l.b16 %v832
    %v3172 = vunpack.c.h.b16 %v832
    %v3173 = vunpack.c.l.b16 %v833
    %v3174 = vunpack.c.h.b16 %v833
    %v3175 = vunpack.c.l.b16 %v834
    %v3176 = vunpack.c.h.b16 %v834
    %v3177 = vunpack.c.l.b16 %v835
    %v3178 = vunpack.c.h.b16 %v835
    %v3179 = vunpack.c.l.b16 %v836
    %v3180 = vunpack.c.h.b16 %v836
    %v3181 = vunpack.c.l.b16 %v837
    %v3182 = vunpack.c.h.b16 %v837
    %v3183 = vunpack.c.l.b16 %v838
    %v3184 = vunpack.c.h.b16 %v838
    %v3185 = vunpack.c.l.b16 %v839
    %v3186 = vunpack.c.h.b16 %v839
    %v3187 = vunpack.c.l.b16 %v840
    %v3188 = vunpack.c.h.b16 %v840
    %v3189 = vunpack.c.l.b16 %v841
    %v3190 = vunpack.c.h.b16 %v841
    %v3191 = vunpack.c.l.b16 %v842
    %v3192 = vunpack.c.h.b16 %v842
    %v3193 = vunpack.c.l.b16 %v843
    %v3194 = vunpack.c.h.b16 %v843
    %v3195 = vunpack.c.l.b16 %v844
    %v3196 = vunpack.c.h.b16 %v844
    %v3197 = vunpack.c.l.b16 %v845
    %v3198 = vunpack.c.h.b16 %v845
    %v3199 = vunpack.c.l.b16 %v846
    %v3200 = vunpack.c.h.b16 %v846
    %v3201 = vunpack.c.l.b16 %v847
    %v3202 = vunpack.c.h.b16 %v847
    %v3203 = vunpack.c.l.b16 %v848
    %v3204 = vunpack.c.h.b16 %v848
    %v3205 = vunpack.c.l.b16 %v849
    %v3206 = vunpack.c.h.b16 %v849
    %v3207 = vunpack.c.l.b16 %v850
    %v3208 = vunpack.c.h.b16 %v850
    %v3209 = vunpack.c.l.b16 %v851
    %v3210 = vunpack.c.h.b16 %v851
    %v3211 = vunpack.c.l.b16 %v852
    %v3212 = vunpack.c.h.b16 %v852
    %v3213 = vunpack.c.l.b16 %v853
    %v3214 = vunpack.c.h.b16 %v853
    %v3215 = vunpack.c.l.b16 %v854
    %v3216 = vunpack.c.h.b16 %v854
    %v3217 = vunpack.c.l.b16 %v855
    %v3218 = vunpack.c.h.b16 %v855
    %v3219 = vunpack.c.l.b16 %v856
    %v3220 = vunpack.c.h.b16 %v856
    %v3221 = vunpack.c.l.b16 %v857
    %v3222 = vunpack.c.h.b16 %v857
    %v3223 = vunpack.c.l.b16 %v858
    %v3224 = vunpack.c.h.b16 %v858
    %v3225 = vunpack.c.l.b16 %v859
    %v3226 = vunpack.c.h.b16 %v859
    %v3227 = vunpack.c.l.b16 %v860
    %v3228 = vunpack.c.h.b16 %v860
    %v3229 = vunpack.c.l.b16 %v861
    %v3230 = vunpack.c.h.b16 %v861
    %v3231 = vunpack.c.l.b16 %v862
    %v3232 = vunpack.c.h.b16 %v862
    %v3233 = vunpack.c.l.b16 %v863
    %v3234 = vunpack.c.h.b16 %v863
    %v3235 = vunpack.c.l.b16 %v864
    %v3236 = vunpack.c.h.b16 %v864
    %v3237 = vunpack.c.l.b16 %v865
    %v3238 = vunpack.c.h.b16 %v865
    %v3239 = vunpack.c.l.b16 %v866
    %v3240 = vunpack.c.h.b16 %v866
    %v3241 = vunpack.c.l.b16 %v867
    %v3242 = vunpack.c.h.b16 %v867
    %v3243 = vunpack.c.l.b16 %v868
    %v3244 = vunpack.c.h.b16 %v868
    %v3245 = vunpack.c.l.b16 %v869
    %v3246 = vunpack.c.h.b16 %v869
    %v3247 = vunpack.c.l.b16 %v870
    %v3248 = vunpack.c.h.b16 %v870
    %v3249 = vunpack.c.l.b16 %v871
    %v3250 = vunpack.c.h.b16 %v871
    %v3251 = vunpack.c.l.b16 %v872
    %v3252 = vunpack.c.h.b16 %v872
    %v3253 = vunpack.c.l.b16 %v873
    %v3254 = vunpack.c.h.b16 %v873
    %v3255 = vunpack.c.l.b16 %v874
    %v3256 = vunpack.c.h.b16 %v874
    %v3257 = vunpack.c.l.b16 %v875
    %v3258 = vunpack.c.h.b16 %v875
    %v3259 = vunpack.c.l.b16 %v876
    %v3260 = vunpack.c.h.b16 %v876
    %v3261 = vunpack.c.l.b16 %v877
    %v3262 = vunpack.c.h.b16 %v877
    %v3263 = vunpack.c.l.b16 %v878
    %v3264 = vunpack.c.h.b16 %v878
    %v3265 = vunpack.c.l.b16 %v879
    %v3266 = vunpack.c.h.b16 %v879
    %v3267 = vunpack.c.l.b16 %v880
    %v3268 = vunpack.c.h.b16 %v880
    %v3269 = vunpack.c.l.b16 %v881
    %v3270 = vunpack.c.h.b16 %v881
    %v3271 = vunpack.c.l.b16 %v882
    %v3272 = vunpack.c.h.b16 %v882
    %v3273 = vunpack.c.l.b16 %v883
    %v3274 = vunpack.c.h.b16 %v883
    %v3275 = vunpack.c.l.b16 %v884
    %v3276 = vunpack.c.h.b16 %v884
    %v3277 = vunpack.c.l.b16 %v885
    %v3278 = vunpack.c.h.b16 %v885
    %v3279 = vunpack.c.l.b16 %v886
    %v3280 = vunpack.c.h.b16 %v886
    %v3281 = vunpack.c.l.b16 %v887
    %v3282 = vunpack.c.h.b16 %v887
    %v3283 = vunpack.c.l.b16 %v888
    %v3284 = vunpack.c.h.b16 %v888
    %v3285 = vunpack.c.l.b16 %v889
    %v3286 = vunpack.c.h.b16 %v889
    %v3287 = vunpack.c.l.b16 %v890
    %v3288 = vunpack.c.h.b16 %v890
    %v3289 = vunpack.c.l.b16 %v891
    %v3290 = vunpack.c.h.b16 %v891
    %v3291 = vunpack.c.l.b16 %v892
    %v3292 = vunpack.c.h.b16 %v892
    %v3293 = vunpack.c.l.b16 %v893
    %v3294 = vunpack.c.h.b16 %v893
    %v3295 = vunpack.c.l.b16 %v894
    %v3296 = vunpack.c.h.b16 %v894
    %v3297 = vunpack.c.l.b16 %v895
    %v3298 = vunpack.c.h.b16 %v895
    %v3299 = vunpack.c.l.b16 %v896
    %v3300 = vunpack.c.h.b16 %v896
    %v3301 = vunpack.c.l.b16 %v897
    %v3302 = vunpack.c.h.b16 %v897
    %v3303 = vunpack.c.l.b16 %v898
    %v3304 = vunpack.c.h.b16 %v898
    %v3305 = vunpack.c.l.b16 %v899
    %v3306 = vunpack.c.h.b16 %v899
    %v3307 = vunpack.c.l.b16 %v900
    %v3308 = vunpack.c.h.b16 %v900
    %v3309 = vunpack.c.l.b16 %v901
    %v3310 = vunpack.c.h.b16 %v901
    %v3311 = vunpack.c.l.b16 %v902
    %v3312 = vunpack.c.h.b16 %v902
    %v3313 = vunpack.c.l.b16 %v903
    %v3314 = vunpack.c.h.b16 %v903
    %v3315 = vunpack.c.l.b16 %v904
    %v3316 = vunpack.c.h.b16 %v904
    %v3317 = vunpack.c.l.b16 %v905
    %v3318 = vunpack.c.h.b16 %v905
    %v3319 = vunpack.c.l.b16 %v906
    %v3320 = vunpack.c.h.b16 %v906
    %v3321 = vunpack.c.l.b16 %v907
    %v3322 = vunpack.c.h.b16 %v907
    %v3323 = vunpack.c.l.b16 %v908
    %v3324 = vunpack.c.h.b16 %v908
    %v3325 = vunpack.c.l.b16 %v909
    %v3326 = vunpack.c.h.b16 %v909
    %v3327 = vunpack.c.l.b16 %v910
    %v3328 = vunpack.c.h.b16 %v910
    %v3329 = vunpack.c.l.b16 %v911
    %v3330 = vunpack.c.h.b16 %v911
    %v3331 = vunpack.c.l.b16 %v912
    %v3332 = vunpack.c.h.b16 %v912
    %v3333 = vunpack.c.l.b16 %v913
    %v3334 = vunpack.c.h.b16 %v913
    %v3335 = vunpack.c.l.b16 %v914
    %v3336 = vunpack.c.h.b16 %v914
    %v3337 = vunpack.c.l.b16 %v915
    %v3338 = vunpack.c.h.b16 %v915
    %v3339 = vunpack.c.l.b16 %v916
    %v3340 = vunpack.c.h.b16 %v916
    %v3341 = vunpack.c.l.b16 %v917
    %v3342 = vunpack.c.h.b16 %v917
    %v3343 = vunpack.c.l.b16 %v918
    %v3344 = vunpack.c.h.b16 %v918
    %v3345 = vunpack.c.l.b16 %v919
    %v3346 = vunpack.c.h.b16 %v919
    %v3347 = vunpack.c.l.b16 %v920
    %v3348 = vunpack.c.h.b16 %v920
    %v3349 = vunpack.c.l.b16 %v921
    %v3350 = vunpack.c.h.b16 %v921
    %v3351 = vunpack.c.l.b16 %v922
    %v3352 = vunpack.c.h.b16 %v922
    %v3353 = vunpack.c.l.b16 %v923
    %v3354 = vunpack.c.h.b16 %v923
    %v3355 = vunpack.c.l.b16 %v924
    %v3356 = vunpack.c.h.b16 %v924
    %v3357 = vunpack.c.l.b16 %v925
    %v3358 = vunpack.c.h.b16 %v925
    %v3359 = vunpack.c.l.b16 %v926
    %v3360 = vunpack.c.h.b16 %v926
    %v3361 = vunpack.c.l.b16 %v927
    %v3362 = vunpack.c.h.b16 %v927
    %v3363 = vunpack.c.l.b16 %v928
    %v3364 = vunpack.c.h.b16 %v928
    %v3365 = vpack.c.b16 %v1813, %v1797
    %v3366 = vpack.c.b16 %v1814, %v1798
    %v3367 = vpack.c.b16 %v1815, %v1799
    %v3368 = vpack.c.b16 %v1816, %v1800
    %v3369 = vpack.c.b16 %v1817, %v1801
    %v3370 = vpack.c.b16 %v1818, %v1802
    %v3371 = vpack.c.b16 %v1819, %v1803
    %v3372 = vpack.c.b16 %v1820, %v1804
    %v3373 = vpack.c.b16 %v1821, %v1805
    %v3374 = vpack.c.b16 %v1822, %v1806
    %v3375 = vpack.c.b16 %v1823, %v1807
    %v3376 = vpack.c.b16 %v1824, %v1808
    %v3377 = vpack.c.b16 %v1825, %v1809
    %v3378 = vpack.c.b16 %v1826, %v1810
    %v3379 = vpack.c.b16 %v1827, %v1811
    %v3380 = vpack.c.b16 %v1828, %v1812
    %v3381 = vpack.c.b16 %v1845, %v1829
    %v3382 = vpack.c.b16 %v1846, %v1830
    %v3383 = vpack.c.b16 %v1847, %v1831
    %v3384 = vpack.c.b16 %v1848, %v1832
    %v3385 = vpack.c.b16 %v1849, %v1833
    %v3386 = vpack.c.b16 %v1850, %v1834
    %v3387 = vpack.c.b16 %v1851, %v1835
    %v3388 = vpack.c.b16 %v1852, %v1836
    %v3389 = vpack.c.b16 %v1853, %v1837
    %v3390 = vpack.c.b16 %v1854, %v1838
    %v3391 = vpack.c.b16 %v1855, %v1839
    %v3392 = vpack.c.b16 %v1856, %v1840
    %v3393 = vpack.c.b16 %v1857, %v1841
    %v3394 = vpack.c.b16 %v1858, %v1842
    %v3395 = vpack.c.b16 %v1859, %v1843
    %v3396 = vpack.c.b16 %v1860, %v1844
    %v3397 = vpack.c.b16 %v1877, %v1861
    %v3398 = vpack.c.b16 %v1878, %v1862
    %v3399 = vpack.c.b16 %v1879, %v1863
    %v3400 = vpack.c.b16 %v1880, %v1864
    %v3401 = vpack.c.b16 %v1881, %v1865
    %v3402 = vpack.c.b16 %v1882, %v1866
    %v3403 = vpack.c.b16 %v1883, %v1867
    %v3404 = vpack.c.b16 %v1884, %v1868
    %v3405 = vpack.c.b16 %v1885, %v1869
    %v3406 = vpack.c.b16 %v1886, %v1870
    %v3407 = vpack.c.b16 %v1887, %v1871
    %v3408 = vpack.c.b16 %v1888, %v1872
    %v3409 = vpack.c.b16 %v1889, %v1873
    %v3410 = vpack.c.b16 %v1890, %v1874
    %v3411 = vpack.c.b16 %v1891, %v1875
    %v3412 = vpack.c.b16 %v1892, %v1876
    %v3413 = vpack.c.b16 %v1909, %v1893
    %v3414 = vpack.c.b16 %v1910, %v1894
    %v3415 = vpack.c.b16 %v1911, %v1895
    %v3416 = vpack.c.b16 %v1912, %v1896
    %v3417 = vpack.c.b16 %v1913, %v1897
    %v3418 = vpack.c.b16 %v1914, %v1898
    %v3419 = vpack.c.b16 %v1915, %v1899
    %v3420 = vpack.c.b16 %v1916, %v1900
    %v3421 = vpack.c.b16 %v1917, %v1901
    %v3422 = vpack.c.b16 %v1918, %v1902
    %v3423 = vpack.c.b16 %v1919, %v1903
    %v3424 = vpack.c.b16 %v1920, %v1904
    %v3425 = vpack.c.b16 %v1921, %v1905
    %v3426 = vpack.c.b16 %v1922, %v1906
    %v3427 = vpack.c.b16 %v1923, %v1907
    %v3428 = vpack.c.b16 %v1924, %v1908
    %v3429 = vpack.c.b16 %v1941, %v1925
    %v3430 = vpack.c.b16 %v1942, %v1926
    %v3431 = vpack.c.b16 %v1943, %v1927
    %v3432 = vpack.c.b16 %v1944, %v1928
    %v3433 = vpack.c.b16 %v1945, %v1929
    %v3434 = vpack.c.b16 %v1946, %v1930
    %v3435 = vpack.c.b16 %v1947, %v1931
    %v3436 = vpack.c.b16 %v1948, %v1932
    %v3437 = vpack.c.b16 %v1949, %v1933
    %v3438 = vpack.c.b16 %v1950, %v1934
    %v3439 = vpack.c.b16 %v1951, %v1935
    %v3440 = vpack.c.b16 %v1952, %v1936
    %v3441 = vpack.c.b16 %v1953, %v1937
    %v3442 = vpack.c.b16 %v1954, %v1938
    %v3443 = vpack.c.b16 %v1955, %v1939
    %v3444 = vpack.c.b16 %v1956, %v1940
    %v3445 = vpack.c.b16 %v1973, %v1957
    %v3446 = vpack.c.b16 %v1974, %v1958
    %v3447 = vpack.c.b16 %v1975, %v1959
    %v3448 = vpack.c.b16 %v1976, %v1960
    %v3449 = vpack.c.b16 %v1977, %v1961
    %v3450 = vpack.c.b16 %v1978, %v1962
    %v3451 = vpack.c.b16 %v1979, %v1963
    %v3452 = vpack.c.b16 %v1980, %v1964
    %v3453 = vpack.c.b16 %v1981, %v1965
    %v3454 = vpack.c.b16 %v1982, %v1966
    %v3455 = vpack.c.b16 %v1983, %v1967
    %v3456 = vpack.c.b16 %v1984, %v1968
    %v3457 = vpack.c.b16 %v1985, %v1969
    %v3458 = vpack.c.b16 %v1986, %v1970
    %v3459 = vpack.c.b16 %v1987, %v1971
    %v3460 = vpack.c.b16 %v1988, %v1972
    %v3461 = vpack.c.b16 %v2005, %v1989
    %v3462 = vpack.c.b16 %v2006, %v1990
    %v3463 = vpack.c.b16 %v2007, %v1991
    %v3464 = vpack.c.b16 %v2008, %v1992
    %v3465 = vpack.c.b16 %v2009, %v1993
    %v3466 = vpack.c.b16 %v2010, %v1994
    %v3467 = vpack.c.b16 %v2011, %v1995
    %v3468 = vpack.c.b16 %v2012, %v1996
    %v3469 = vpack.c.b16 %v2013, %v1997
    %v3470 = vpack.c.b16 %v2014, %v1998
    %v3471 = vpack.c.b16 %v2015, %v1999
    %v3472 = vpack.c.b16 %v2016, %v2000
    %v3473 = vpack.c.b16 %v2017, %v2001
    %v3474 = vpack.c.b16 %v2018, %v2002
    %v3475 = vpack.c.b16 %v2019, %v2003
    %v3476 = vpack.c.b16 %v2020, %v2004
    %v3477 = vpack.c.b16 %v2037, %v2021
    %v3478 = vpack.c.b16 %v2038, %v2022
    %v3479 = vpack.c.b16 %v2039, %v2023
    %v3480 = vpack.c.b16 %v2040, %v2024
    %v3481 = vpack.c.b16 %v2041, %v2025
    %v3482 = vpack.c.b16 %v2042, %v2026
    %v3483 = vpack.c.b16 %v2043, %v2027
    %v3484 = vpack.c.b16 %v2044, %v2028
    %v3485 = vpack.c.b16 %v2045, %v2029
    %v3486 = vpack.c.b16 %v2046, %v2030
    %v3487 = vpack.c.b16 %v2047, %v2031
    %v3488 = vpack.c.b16 %v2048, %v2032
    %v3489 = vpack.c.b16 %v2049, %v2033
    %v3490 = vpack.c.b16 %v2050, %v2034
    %v3491 = vpack.c.b16 %v2051, %v2035
    %v3492 = vpack.c.b16 %v2052, %v2036
    %v3493 = vpack.c.b16 %v2069, %v2053
    %v3494 = vpack.c.b16 %v2070, %v2054
    %v3495 = vpack.c.b16 %v2071, %v2055
    %v3496 = vpack.c.b16 %v2072, %v2056
    %v3497 = vpack.c.b16 %v2073, %v2057
    %v3498 = vpack.c.b16 %v2074, %v2058
    %v3499 = vpack.c.b16 %v2075, %v2059
    %v3500 = vpack.c.b16 %v2076, %v2060
    %v3501 = vpack.c.b16 %v2077, %v2061
    %v3502 = vpack.c.b16 %v2078, %v2062
    %v3503 = vpack.c.b16 %v2079, %v2063
    %v3504 = vpack.c.b16 %v2080, %v2064
    %v3505 = vpack.c.b16 %v2081, %v2065
    %v3506 = vpack.c.b16 %v2082, %v2066
    %v3507 = vpack.c.b16 %v2083, %v2067
    %v3508 = vpack.c.b16 %v2084, %v2068
    %v3509 = vpack.c.b16 %v2101, %v2085
    %v3510 = vpack.c.b16 %v2102, %v2086
    %v3511 = vpack.c.b16 %v2103, %v2087
    %v3512 = vpack.c.b16 %v2104, %v2088
    %v3513 = vpack.c.b16 %v2105, %v2089
    %v3514 = vpack.c.b16 %v2106, %v2090
    %v3515 = vpack.c.b16 %v2107, %v2091
    %v3516 = vpack.c.b16 %v2108, %v2092
    %v3517 = vpack.c.b16 %v2109, %v2093
    %v3518 = vpack.c.b16 %v2110, %v2094
    %v3519 = vpack.c.b16 %v2111, %v2095
    %v3520 = vpack.c.b16 %v2112, %v2096
    %v3521 = vpack.c.b16 %v2113, %v2097
    %v3522 = vpack.c.b16 %v2114, %v2098
    %v3523 = vpack.c.b16 %v2115, %v2099
    %v3524 = vpack.c.b16 %v2116, %v2100
    %v3525 = vpack.c.b16 %v2133, %v2117
    %v3526 = vpack.c.b16 %v2134, %v2118
    %v3527 = vpack.c.b16 %v2135, %v2119
    %v3528 = vpack.c.b16 %v2136, %v2120
    %v3529 = vpack.c.b16 %v2137, %v2121
    %v3530 = vpack.c.b16 %v2138, %v2122
    %v3531 = vpack.c.b16 %v2139, %v2123
    %v3532 = vpack.c.b16 %v2140, %v2124
    %v3533 = vpack.c.b16 %v2141, %v2125
    %v3534 = vpack.c.b16 %v2142, %v2126
    %v3535 = vpack.c.b16 %v2143, %v2127
    %v3536 = vpack.c.b16 %v2144, %v2128
    %v3537 = vpack.c.b16 %v2145, %v2129
    %v3538 = vpack.c.b16 %v2146, %v2130
    %v3539 = vpack.c.b16 %v2147, %v2131
    %v3540 = vpack.c.b16 %v2148, %v2132
    %v3541 = vpack.c.b16 %v2165, %v2149
    %v3542 = vpack.c.b16 %v2166, %v2150
    %v3543 = vpack.c.b16 %v2167, %v2151
    %v3544 = vpack.c.b16 %v2168, %v2152
    %v3545 = vpack.c.b16 %v2169, %v2153
    %v3546 = vpack.c.b16 %v2170, %v2154
    %v3547 = vpack.c.b16 %v2171, %v2155
    %v3548 = vpack.c.b16 %v2172, %v2156
    %v3549 = vpack.c.b16 %v2173, %v2157
    %v3550 = vpack.c.b16 %v2174, %v2158
    %v3551 = vpack.c.b16 %v2175, %v2159
    %v3552 = vpack.c.b16 %v2176, %v2160
    %v3553 = vpack.c.b16 %v2177, %v2161
    %v3554 = vpack.c.b16 %v2178, %v2162
    %v3555 = vpack.c.b16 %v2179, %v2163
    %v3556 = vpack.c.b16 %v2180, %v2164
    %v3557 = vpack.c.b16 %v2197, %v2181
    %v3558 = vpack.c.b16 %v2198, %v2182
    %v3559 = vpack.c.b16 %v2199, %v2183
    %v3560 = vpack.c.b16 %v2200, %v2184
    %v3561 = vpack.c.b16 %v2201, %v2185
    %v3562 = vpack.c.b16 %v2202, %v2186
    %v3563 = vpack.c.b16 %v2203, %v2187
    %v3564 = vpack.c.b16 %v2204, %v2188
    %v3565 = vpack.c.b16 %v2205, %v2189
    %v3566 = vpack.c.b16 %v2206, %v2190
    %v3567 = vpack.c.b16 %v2207, %v2191
    %v3568 = vpack.c.b16 %v2208, %v2192
    %v3569 = vpack.c.b16 %v2209, %v2193
    %v3570 = vpack.c.b16 %v2210, %v2194
    %v3571 = vpack.c.b16 %v2211, %v2195
    %v3572 = vpack.c.b16 %v2212, %v2196
    %v3573 = vpack.c.b16 %v2229, %v2213
    %v3574 = vpack.c.b16 %v2230, %v2214
    %v3575 = vpack.c.b16 %v2231, %v2215
    %v3576 = vpack.c.b16 %v2232, %v2216
    %v3577 = vpack.c.b16 %v2233, %v2217
    %v3578 = vpack.c.b16 %v2234, %v2218
    %v3579 = vpack.c.b16 %v2235, %v2219
    %v3580 = vpack.c.b16 %v2236, %v2220
    %v3581 = vpack.c.b16 %v2237, %v2221
    %v3582 = vpack.c.b16 %v2238, %v2222
    %v3583 = vpack.c.b16 %v2239, %v2223
    %v3584 = vpack.c.b16 %v2240, %v2224
    %v3585 = vpack.c.b16 %v2241, %v2225
    %v3586 = vpack.c.b16 %v2242, %v2226
    %v3587 = vpack.c.b16 %v2243, %v2227
    %v3588 = vpack.c.b16 %v2244, %v2228
    %v3589 = vpack.c.b16 %v2261, %v2245
    %v3590 = vpack.c.b16 %v2262, %v2246
    %v3591 = vpack.c.b16 %v2263, %v2247
    %v3592 = vpack.c.b16 %v2264, %v2248
    %v3593 = vpack.c.b16 %v2265, %v2249
    %v3594 = vpack.c.b16 %v2266, %v2250
    %v3595 = vpack.c.b16 %v2267, %v2251
    %v3596 = vpack.c.b16 %v2268, %v2252
    %v3597 = vpack.c.b16 %v2269, %v2253
    %v3598 = vpack.c.b16 %v2270, %v2254
    %v3599 = vpack.c.b16 %v2271, %v2255
    %v3600 = vpack.c.b16 %v2272, %v2256
    %v3601 = vpack.c.b16 %v2273, %v2257
    %v3602 = vpack.c.b16 %v2274, %v2258
    %v3603 = vpack.c.b16 %v2275, %v2259
    %v3604 = vpack.c.b16 %v2276, %v2260
    %v3605 = vpack.c.b16 %v2293, %v2277
    %v3606 = vpack.c.b16 %v2294, %v2278
    %v3607 = vpack.c.b16 %v2295, %v2279
    %v3608 = vpack.c.b16 %v2296, %v2280
    %v3609 = vpack.c.b16 %v2297, %v2281
    %v3610 = vpack.c.b16 %v2298, %v2282
    %v3611 = vpack.c.b16 %v2299, %v2283
    %v3612 = vpack.c.b16 %v2300, %v2284
    %v3613 = vpack.c.b16 %v2301, %v2285
    %v3614 = vpack.c.b16 %v2302, %v2286
    %v3615 = vpack.c.b16 %v2303, %v2287
    %v3616 = vpack.c.b16 %v2304, %v2288
    %v3617 = vpack.c.b16 %v2305, %v2289
    %v3618 = vpack.c.b16 %v2306, %v2290
    %v3619 = vpack.c.b16 %v2307, %v2291
    %v3620 = vpack.c.b16 %v2308, %v2292
    %v3621 = vpack.c.b16 %v2325, %v2309
    %v3622 = vpack.c.b16 %v2326, %v2310
    %v3623 = vpack.c.b16 %v2327, %v2311
    %v3624 = vpack.c.b16 %v2328, %v2312
    %v3625 = vpack.c.b16 %v2329, %v2313
    %v3626 = vpack.c.b16 %v2330, %v2314
    %v3627 = vpack.c.b16 %v2331, %v2315
    %v3628 = vpack.c.b16 %v2332, %v2316
    %v3629 = vpack.c.b16 %v2333, %v2317
    %v3630 = vpack.c.b16 %v2334, %v2318
    %v3631 = vpack.c.b16 %v2335, %v2319
    %v3632 = vpack.c.b16 %v2336, %v2320
    %v3633 = vpack.c.b16 %v2337, %v2321
    %v3634 = vpack.c.b16 %v2338, %v2322
    %v3635 = vpack.c.b16 %v2339, %v2323
    %v3636 = vpack.c.b16 %v2340, %v2324
    %v3637 = vpack.c.b16 %v2357, %v2341
    %v3638 = vpack.c.b16 %v2358, %v2342
    %v3639 = vpack.c.b16 %v2359, %v2343
    %v3640 = vpack.c.b16 %v2360, %v2344
    %v3641 = vpack.c.b16 %v2361, %v2345
    %v3642 = vpack.c.b16 %v2362, %v2346
    %v3643 = vpack.c.b16 %v2363, %v2347
    %v3644 = vpack.c.b16 %v2364, %v2348
    %v3645 = vpack.c.b16 %v2365, %v2349
    %v3646 = vpack.c.b16 %v2366, %v2350
    %v3647 = vpack.c.b16 %v2367, %v2351
    %v3648 = vpack.c.b16 %v2368, %v2352
    %v3649 = vpack.c.b16 %v2369, %v2353
    %v3650 = vpack.c.b16 %v2370, %v2354
    %v3651 = vpack.c.b16 %v2371, %v2355
    %v3652 = vpack.c.b16 %v2372, %v2356
    %v3653 = vpack.c.b16 %v2389, %v2373
    %v3654 = vpack.c.b16 %v2390, %v2374
    %v3655 = vpack.c.b16 %v2391, %v2375
    %v3656 = vpack.c.b16 %v2392, %v2376
    %v3657 = vpack.c.b16 %v2393, %v2377
    %v3658 = vpack.c.b16 %v2394, %v2378
    %v3659 = vpack.c.b16 %v2395, %v2379
    %v3660 = vpack.c.b16 %v2396, %v2380
    %v3661 = vpack.c.b16 %v2397, %v2381
    %v3662 = vpack.c.b16 %v2398, %v2382
    %v3663 = vpack.c.b16 %v2399, %v2383
    %v3664 = vpack.c.b16 %v2400, %v2384
    %v3665 = vpack.c.b16 %v2401, %v2385
    %v3666 = vpack.c.b16 %v2402, %v2386
    %v3667 = vpack.c.b16 %v2403, %v2387
    %v3668 = vpack.c.b16 %v2404, %v2388
    %v3669 = vpack.c.b16 %v2421, %v2405
    %v3670 = vpack.c.b16 %v2422, %v2406
    %v3671 = vpack.c.b16 %v2423, %v2407
    %v3672 = vpack.c.b16 %v2424, %v2408
    %v3673 = vpack.c.b16 %v2425, %v2409
    %v3674 = vpack.c.b16 %v2426, %v2410
    %v3675 = vpack.c.b16 %v2427, %v2411
    %v3676 = vpack.c.b16 %v2428, %v2412
    %v3677 = vpack.c.b16 %v2429, %v2413
    %v3678 = vpack.c.b16 %v2430, %v2414
    %v3679 = vpack.c.b16 %v2431, %v2415
    %v3680 = vpack.c.b16 %v2432, %v2416
    %v3681 = vpack.c.b16 %v2433, %v2417
    %v3682 = vpack.c.b16 %v2434, %v2418
    %v3683 = vpack.c.b16 %v2435, %v2419
    %v3684 = vpack.c.b16 %v2436, %v2420
    %v3685 = vpack.c.b16 %v2453, %v2437
    %v3686 = vpack.c.b16 %v2454, %v2438
    %v3687 = vpack.c.b16 %v2455, %v2439
    %v3688 = vpack.c.b16 %v2456, %v2440
    %v3689 = vpack.c.b16 %v2457, %v2441
    %v3690 = vpack.c.b16 %v2458, %v2442
    %v3691 = vpack.c.b16 %v2459, %v2443
    %v3692 = vpack.c.b16 %v2460, %v2444
    %v3693 = vpack.c.b16 %v2461, %v2445
    %v3694 = vpack.c.b16 %v2462, %v2446
    %v3695 = vpack.c.b16 %v2463, %v2447
    %v3696 = vpack.c.b16 %v2464, %v2448
    %v3697 = vpack.c.b16 %v2465, %v2449
    %v3698 = vpack.c.b16 %v2466, %v2450
    %v3699 = vpack.c.b16 %v2467, %v2451
    %v3700 = vpack.c.b16 %v2468, %v2452
    %v3701 = vpack.c.b16 %v2485, %v2469
    %v3702 = vpack.c.b16 %v2486, %v2470
    %v3703 = vpack.c.b16 %v2487, %v2471
    %v3704 = vpack.c.b16 %v2488, %v2472
    %v3705 = vpack.c.b16 %v2489, %v2473
    %v3706 = vpack.c.b16 %v2490, %v2474
    %v3707 = vpack.c.b16 %v2491, %v2475
    %v3708 = vpack.c.b16 %v2492, %v2476
    %v3709 = vpack.c.b16 %v2493, %v2477
    %v3710 = vpack.c.b16 %v2494, %v2478
    %v3711 = vpack.c.b16 %v2495, %v2479
    %v3712 = vpack.c.b16 %v2496, %v2480
    %v3713 = vpack.c.b16 %v2497, %v2481
    %v3714 = vpack.c.b16 %v2498, %v2482
    %v3715 = vpack.c.b16 %v2499, %v2483
    %v3716 = vpack.c.b16 %v2500, %v2484
    %v3717 = vpack.c.b16 %v2517, %v2501
    %v3718 = vpack.c.b16 %v2518, %v2502
    %v3719 = vpack.c.b16 %v2519, %v2503
    %v3720 = vpack.c.b16 %v2520, %v2504
    %v3721 = vpack.c.b16 %v2521, %v2505
    %v3722 = vpack.c.b16 %v2522, %v2506
    %v3723 = vpack.c.b16 %v2523, %v2507
    %v3724 = vpack.c.b16 %v2524, %v2508
    %v3725 = vpack.c.b16 %v2525, %v2509
    %v3726 = vpack.c.b16 %v2526, %v2510
    %v3727 = vpack.c.b16 %v2527, %v2511
    %v3728 = vpack.c.b16 %v2528, %v2512
    %v3729 = vpack.c.b16 %v2529, %v2513
    %v3730 = vpack.c.b16 %v2530, %v2514
    %v3731 = vpack.c.b16 %v2531, %v2515
    %v3732 = vpack.c.b16 %v2532, %v2516
    %v3733 = vpack.c.b16 %v2549, %v2533
    %v3734 = vpack.c.b16 %v2550, %v2534
    %v3735 = vpack.c.b16 %v2551, %v2535
    %v3736 = vpack.c.b16 %v2552, %v2536
    %v3737 = vpack.c.b16 %v2553, %v2537
    %v3738 = vpack.c.b16 %v2554, %v2538
    %v3739 = vpack.c.b16 %v2555, %v2539
    %v3740 = vpack.c.b16 %v2556, %v2540
    %v3741 = vpack.c.b16 %v2557, %v2541
    %v3742 = vpack.c.b16 %v2558, %v2542
    %v3743 = vpack.c.b16 %v2559, %v2543
    %v3744 = vpack.c.b16 %v2560, %v2544
    %v3745 = vpack.c.b16 %v2561, %v2545
    %v3746 = vpack.c.b16 %v2562, %v2546
    %v3747 = vpack.c.b16 %v2563, %v2547
    %v3748 = vpack.c.b16 %v2564, %v2548
    %v3749 = vpack.c.b16 %v2581, %v2565
    %v3750 = vpack.c.b16 %v2582, %v2566
    %v3751 = vpack.c.b16 %v2583, %v2567
    %v3752 = vpack.c.b16 %v2584, %v2568
    %v3753 = vpack.c.b16 %v2585, %v2569
    %v3754 = vpack.c.b16 %v2586, %v2570
    %v3755 = vpack.c.b16 %v2587, %v2571
    %v3756 = vpack.c.b16 %v2588, %v2572
    %v3757 = vpack.c.b16 %v2589, %v2573
    %v3758 = vpack.c.b16 %v2590, %v2574
    %v3759 = vpack.c.b16 %v2591, %v2575
    %v3760 = vpack.c.b16 %v2592, %v2576
    %v3761 = vpack.c.b16 %v2593, %v2577
    %v3762 = vpack.c.b16 %v2594, %v2578
    %v3763 = vpack.c.b16 %v2595, %v2579
    %v3764 = vpack.c.b16 %v2596, %v2580
    %v3765 = vpack.c.b16 %v2613, %v2597
    %v3766 = vpack.c.b16 %v2614, %v2598
    %v3767 = vpack.c.b16 %v2615, %v2599
    %v3768 = vpack.c.b16 %v2616, %v2600
    %v3769 = vpack.c.b16 %v2617, %v2601
    %v3770 = vpack.c.b16 %v2618, %v2602
    %v3771 = vpack.c.b16 %v2619, %v2603
    %v3772 = vpack.c.b16 %v2620, %v2604
    %v3773 = vpack.c.b16 %v2621, %v2605
    %v3774 = vpack.c.b16 %v2622, %v2606
    %v3775 = vpack.c.b16 %v2623, %v2607
    %v3776 = vpack.c.b16 %v2624, %v2608
    %v3777 = vpack.c.b16 %v2625, %v2609
    %v3778 = vpack.c.b16 %v2626, %v2610
    %v3779 = vpack.c.b16 %v2627, %v2611
    %v3780 = vpack.c.b16 %v2628, %v2612
    %v3781 = vpack.c.b16 %v2645, %v2629
    %v3782 = vpack.c.b16 %v2646, %v2630
    %v3783 = vpack.c.b16 %v2647, %v2631
    %v3784 = vpack.c.b16 %v2648, %v2632
    %v3785 = vpack.c.b16 %v2649, %v2633
    %v3786 = vpack.c.b16 %v2650, %v2634
    %v3787 = vpack.c.b16 %v2651, %v2635
    %v3788 = vpack.c.b16 %v2652, %v2636
    %v3789 = vpack.c.b16 %v2653, %v2637
    %v3790 = vpack.c.b16 %v2654, %v2638
    %v3791 = vpack.c.b16 %v2655, %v2639
    %v3792 = vpack.c.b16 %v2656, %v2640
    %v3793 = vpack.c.b16 %v2657, %v2641
    %v3794 = vpack.c.b16 %v2658, %v2642
    %v3795 = vpack.c.b16 %v2659, %v2643
    %v3796 = vpack.c.b16 %v2660, %v2644
    %v3797 = vpack.c.b16 %v2677, %v2661
    %v3798 = vpack.c.b16 %v2678, %v2662
    %v3799 = vpack.c.b16 %v2679, %v2663
    %v3800 = vpack.c.b16 %v2680, %v2664
    %v3801 = vpack.c.b16 %v2681, %v2665
    %v3802 = vpack.c.b16 %v2682, %v2666
    %v3803 = vpack.c.b16 %v2683, %v2667
    %v3804 = vpack.c.b16 %v2684, %v2668
    %v3805 = vpack.c.b16 %v2685, %v2669
    %v3806 = vpack.c.b16 %v2686, %v2670
    %v3807 = vpack.c.b16 %v2687, %v2671
    %v3808 = vpack.c.b16 %v2688, %v2672
    %v3809 = vpack.c.b16 %v2689, %v2673
    %v3810 = vpack.c.b16 %v2690, %v2674
    %v3811 = vpack.c.b16 %v2691, %v2675
    %v3812 = vpack.c.b16 %v2692, %v2676
    %v3813 = vpack.c.b16 %v2709, %v2693
    %v3814 = vpack.c.b16 %v2710, %v2694
    %v3815 = vpack.c.b16 %v2711, %v2695
    %v3816 = vpack.c.b16 %v2712, %v2696
    %v3817 = vpack.c.b16 %v2713, %v2697
    %v3818 = vpack.c.b16 %v2714, %v2698
    %v3819 = vpack.c.b16 %v2715, %v2699
    %v3820 = vpack.c.b16 %v2716, %v2700
    %v3821 = vpack.c.b16 %v2717, %v2701
    %v3822 = vpack.c.b16 %v2718, %v2702
    %v3823 = vpack.c.b16 %v2719, %v2703
    %v3824 = vpack.c.b16 %v2720, %v2704
    %v3825 = vpack.c.b16 %v2721, %v2705
    %v3826 = vpack.c.b16 %v2722, %v2706
    %v3827 = vpack.c.b16 %v2723, %v2707
    %v3828 = vpack.c.b16 %v2724, %v2708
    %v3829 = vpack.c.b16 %v2741, %v2725
    %v3830 = vpack.c.b16 %v2742, %v2726
    %v3831 = vpack.c.b16 %v2743, %v2727
    %v3832 = vpack.c.b16 %v2744, %v2728
    %v3833 = vpack.c.b16 %v2745, %v2729
    %v3834 = vpack.c.b16 %v2746, %v2730
    %v3835 = vpack.c.b16 %v2747, %v2731
    %v3836 = vpack.c.b16 %v2748, %v2732
    %v3837 = vpack.c.b16 %v2749, %v2733
    %v3838 = vpack.c.b16 %v2750, %v2734
    %v3839 = vpack.c.b16 %v2751, %v2735
    %v3840 = vpack.c.b16 %v2752, %v2736
    %v3841 = vpack.c.b16 %v2753, %v2737
    %v3842 = vpack.c.b16 %v2754, %v2738
    %v3843 = vpack.c.b16 %v2755, %v2739
    %v3844 = vpack.c.b16 %v2756, %v2740
    %v3845 = vpack.c.b16 %v2773, %v2757
    %v3846 = vpack.c.b16 %v2774, %v2758
    %v3847 = vpack.c.b16 %v2775, %v2759
    %v3848 = vpack.c.b16 %v2776, %v2760
    %v3849 = vpack.c.b16 %v2777, %v2761
    %v3850 = vpack.c.b16 %v2778, %v2762
    %v3851 = vpack.c.b16 %v2779, %v2763
    %v3852 = vpack.c.b16 %v2780, %v2764
    %v3853 = vpack.c.b16 %v2781, %v2765
    %v3854 = vpack.c.b16 %v2782, %v2766
    %v3855 = vpack.c.b16 %v2783, %v2767
    %v3856 = vpack.c.b16 %v2784, %v2768
    %v3857 = vpack.c.b16 %v2785, %v2769
    %v3858 = vpack.c.b16 %v2786, %v2770
    %v3859 = vpack.c.b16 %v2787, %v2771
    %v3860 = vpack.c.b16 %v2788, %v2772
    %v3861 = vpack.c.b16 %v2805, %v2789
    %v3862 = vpack.c.b16 %v2806, %v2790
    %v3863 = vpack.c.b16 %v2807, %v2791
    %v3864 = vpack.c.b16 %v2808, %v2792
    %v3865 = vpack.c.b16 %v2809, %v2793
    %v3866 = vpack.c.b16 %v2810, %v2794
    %v3867 = vpack.c.b16 %v2811, %v2795
    %v3868 = vpack.c.b16 %v2812, %v2796
    %v3869 = vpack.c.b16 %v2813, %v2797
    %v3870 = vpack.c.b16 %v2814, %v2798
    %v3871 = vpack.c.b16 %v2815, %v2799
    %v3872 = vpack.c.b16 %v2816, %v2800
    %v3873 = vpack.c.b16 %v2817, %v2801
    %v3874 = vpack.c.b16 %v2818, %v2802
    %v3875 = vpack.c.b16 %v2819, %v2803
    %v3876 = vpack.c.b16 %v2820, %v2804
    %v3877 = vpack.c.b16 %v2837, %v2821
    %v3878 = vpack.c.b16 %v2838, %v2822
    %v3879 = vpack.c.b16 %v2839, %v2823
    %v3880 = vpack.c.b16 %v2840, %v2824
    %v3881 = vpack.c.b16 %v2841, %v2825
    %v3882 = vpack.c.b16 %v2842, %v2826
    %v3883 = vpack.c.b16 %v2843, %v2827
    %v3884 = vpack.c.b16 %v2844, %v2828
    %v3885 = vpack.c.b16 %v2845, %v2829
    %v3886 = vpack.c.b16 %v2846, %v2830
    %v3887 = vpack.c.b16 %v2847, %v2831
    %v3888 = vpack.c.b16 %v2848, %v2832
    %v3889 = vpack.c.b16 %v2849, %v2833
    %v3890 = vpack.c.b16 %v2850, %v2834
    %v3891 = vpack.c.b16 %v2851, %v2835
    %v3892 = vpack.c.b16 %v2852, %v2836
    %v3893 = vpack.c.b16 %v2869, %v2853
    %v3894 = vpack.c.b16 %v2870, %v2854
    %v3895 = vpack.c.b16 %v2871, %v2855
    %v3896 = vpack.c.b16 %v2872, %v2856
    %v3897 = vpack.c.b16 %v2873, %v2857
    %v3898 = vpack.c.b16 %v2874, %v2858
    %v3899 = vpack.c.b16 %v2875, %v2859
    %v3900 = vpack.c.b16 %v2876, %v2860
    %v3901 = vpack.c.b16 %v2877, %v2861
    %v3902 = vpack.c.b16 %v2878, %v2862
    %v3903 = vpack.c.b16 %v2879, %v2863
    %v3904 = vpack.c.b16 %v2880, %v2864
    %v3905 = vpack.c.b16 %v2881, %v2865
    %v3906 = vpack.c.b16 %v2882, %v2866
    %v3907 = vpack.c.b16 %v2883, %v2867
    %v3908 = vpack.c.b16 %v2884, %v2868
    %v3909 = vpack.c.b16 %v2901, %v2885
    %v3910 = vpack.c.b16 %v2902, %v2886
    %v3911 = vpack.c.b16 %v2903, %v2887
    %v3912 = vpack.c.b16 %v2904, %v2888
    %v3913 = vpack.c.b16 %v2905, %v2889
    %v3914 = vpack.c.b16 %v2906, %v2890
    %v3915 = vpack.c.b16 %v2907, %v2891
    %v3916 = vpack.c.b16 %v2908, %v2892
    %v3917 = vpack.c.b16 %v2909, %v2893
    %v3918 = vpack.c.b16 %v2910, %v2894
    %v3919 = vpack.c.b16 %v2911, %v2895
    %v3920 = vpack.c.b16 %v2912, %v2896
    %v3921 = vpack.c.b16 %v2913, %v2897
    %v3922 = vpack.c.b16 %v2914, %v2898
    %v3923 = vpack.c.b16 %v2915, %v2899
    %v3924 = vpack.c.b16 %v2916, %v2900
    %v3925 = vpack.c.b16 %v2933, %v2917
    %v3926 = vpack.c.b16 %v2934, %v2918
    %v3927 = vpack.c.b16 %v2935, %v2919
    %v3928 = vpack.c.b16 %v2936, %v2920
    %v3929 = vpack.c.b16 %v2937, %v2921
    %v3930 = vpack.c.b16 %v2938, %v2922
    %v3931 = vpack.c.b16 %v2939, %v2923
    %v3932 = vpack.c.b16 %v2940, %v2924
    %v3933 = vpack.c.b16 %v2941, %v2925
    %v3934 = vpack.c.b16 %v2942, %v2926
    %v3935 = vpack.c.b16 %v2943, %v2927
    %v3936 = vpack.c.b16 %v2944, %v2928
    %v3937 = vpack.c.b16 %v2945, %v2929
    %v3938 = vpack.c.b16 %v2946, %v2930
    %v3939 = vpack.c.b16 %v2947, %v2931
    %v3940 = vpack.c.b16 %v2948, %v2932
    %v3941 = vpack.c.b16 %v2965, %v2949
    %v3942 = vpack.c.b16 %v2966, %v2950
    %v3943 = vpack.c.b16 %v2967, %v2951
    %v3944 = vpack.c.b16 %v2968, %v2952
    %v3945 = vpack.c.b16 %v2969, %v2953
    %v3946 = vpack.c.b16 %v2970, %v2954
    %v3947 = vpack.c.b16 %v2971, %v2955
    %v3948 = vpack.c.b16 %v2972, %v2956
    %v3949 = vpack.c.b16 %v2973, %v2957
    %v3950 = vpack.c.b16 %v2974, %v2958
    %v3951 = vpack.c.b16 %v2975, %v2959
    %v3952 = vpack.c.b16 %v2976, %v2960
    %v3953 = vpack.c.b16 %v2977, %v2961
    %v3954 = vpack.c.b16 %v2978, %v2962
    %v3955 = vpack.c.b16 %v2979, %v2963
    %v3956 = vpack.c.b16 %v2980, %v2964
    %v3957 = vpack.c.b16 %v2997, %v2981
    %v3958 = vpack.c.b16 %v2998, %v2982
    %v3959 = vpack.c.b16 %v2999, %v2983
    %v3960 = vpack.c.b16 %v3000, %v2984
    %v3961 = vpack.c.b16 %v3001, %v2985
    %v3962 = vpack.c.b16 %v3002, %v2986
    %v3963 = vpack.c.b16 %v3003, %v2987
    %v3964 = vpack.c.b16 %v3004, %v2988
    %v3965 = vpack.c.b16 %v3005, %v2989
    %v3966 = vpack.c.b16 %v3006, %v2990
    %v3967 = vpack.c.b16 %v3007, %v2991
    %v3968 = vpack.c.b16 %v3008, %v2992
    %v3969 = vpack.c.b16 %v3009, %v2993
    %v3970 = vpack.c.b16 %v3010, %v2994
    %v3971 = vpack.c.b16 %v3011, %v2995
    %v3972 = vpack.c.b16 %v3012, %v2996
    %v3973 = vpack.c.b16 %v3029, %v3013
    %v3974 = vpack.c.b16 %v3030, %v3014
    %v3975 = vpack.c.b16 %v3031, %v3015
    %v3976 = vpack.c.b16 %v3032, %v3016
    %v3977 = vpack.c.b16 %v3033, %v3017
    %v3978 = vpack.c.b16 %v3034, %v3018
    %v3979 = vpack.c.b16 %v3035, %v3019
    %v3980 = vpack.c.b16 %v3036, %v3020
    %v3981 = vpack.c.b16 %v3037, %v3021
    %v3982 = vpack.c.b16 %v3038, %v3022
    %v3983 = vpack.c.b16 %v3039, %v3023
    %v3984 = vpack.c.b16 %v3040, %v3024
    %v3985 = vpack.c.b16 %v3041, %v3025
    %v3986 = vpack.c.b16 %v3042, %v3026
    %v3987 = vpack.c.b16 %v3043, %v3027
    %v3988 = vpack.c.b16 %v3044, %v3028
    %v3989 = vpack.c.b16 %v3061, %v3045
    %v3990 = vpack.c.b16 %v3062, %v3046
    %v3991 = vpack.c.b16 %v3063, %v3047
    %v3992 = vpack.c.b16 %v3064, %v3048
    %v3993 = vpack.c.b16 %v3065, %v3049
    %v3994 = vpack.c.b16 %v3066, %v3050
    %v3995 = vpack.c.b16 %v3067, %v3051
    %v3996 = vpack.c.b16 %v3068, %v3052
    %v3997 = vpack.c.b16 %v3069, %v3053
    %v3998 = vpack.c.b16 %v3070, %v3054
    %v3999 = vpack.c.b16 %v3071, %v3055
    %v4000 = vpack.c.b16 %v3072, %v3056
    %v4001 = vpack.c.b16 %v3073, %v3057
    %v4002 = vpack.c.b16 %v3074, %v3058
    %v4003 = vpack.c.b16 %v3075, %v3059
    %v4004 = vpack.c.b16 %v3076, %v3060
    %v4005 = vpack.c.b16 %v3093, %v3077
    %v4006 = vpack.c.b16 %v3094, %v3078
    %v4007 = vpack.c.b16 %v3095, %v3079
    %v4008 = vpack.c.b16 %v3096, %v3080
    %v4009 = vpack.c.b16 %v3097, %v3081
    %v4010 = vpack.c.b16 %v3098, %v3082
    %v4011 = vpack.c.b16 %v3099, %v3083
    %v4012 = vpack.c.b16 %v3100, %v3084
    %v4013 = vpack.c.b16 %v3101, %v3085
    %v4014 = vpack.c.b16 %v3102, %v3086
    %v4015 = vpack.c.b16 %v3103, %v3087
    %v4016 = vpack.c.b16 %v3104, %v3088
    %v4017 = vpack.c.b16 %v3105, %v3089
    %v4018 = vpack.c.b16 %v3106, %v3090
    %v4019 = vpack.c.b16 %v3107, %v3091
    %v4020 = vpack.c.b16 %v3108, %v3092
    %v4021 = vpack.c.b16 %v3125, %v3109
    %v4022 = vpack.c.b16 %v3126, %v3110
    %v4023 = vpack.c.b16 %v3127, %v3111
    %v4024 = vpack.c.b16 %v3128, %v3112
    %v4025 = vpack.c.b16 %v3129, %v3113
    %v4026 = vpack.c.b16 %v3130, %v3114
    %v4027 = vpack.c.b16 %v3131, %v3115
    %v4028 = vpack.c.b16 %v3132, %v3116
    %v4029 = vpack.c.b16 %v3133, %v3117
    %v4030 = vpack.c.b16 %v3134, %v3118
    %v4031 = vpack.c.b16 %v3135, %v3119
    %v4032 = vpack.c.b16 %v3136, %v3120
    %v4033 = vpack.c.b16 %v3137, %v3121
    %v4034 = vpack.c.b16 %v3138, %v3122
    %v4035 = vpack.c.b16 %v3139, %v3123
    %v4036 = vpack.c.b16 %v3140, %v3124
    %v4037 = vpack.c.b16 %v3157, %v3141
    %v4038 = vpack.c.b16 %v3158, %v3142
    %v4039 = vpack.c.b16 %v3159, %v3143
    %v4040 = vpack.c.b16 %v3160, %v3144
    %v4041 = vpack.c.b16 %v3161, %v3145
    %v4042 = vpack.c.b16 %v3162, %v3146
    %v4043 = vpack.c.b16 %v3163, %v3147
    %v4044 = vpack.c.b16 %v3164, %v3148
    %v4045 = vpack.c.b16 %v3165, %v3149
    %v4046 = vpack.c.b16 %v3166, %v3150
    %v4047 = vpack.c.b16 %v3167, %v3151
    %v4048 = vpack.c.b16 %v3168, %v3152
    %v4049 = vpack.c.b16 %v3169, %v3153
    %v4050 = vpack.c.b16 %v3170, %v3154
    %v4051 = vpack.c.b16 %v3171, %v3155
    %v4052 = vpack.c.b16 %v3172, %v3156
    %v4053 = vpack.c.b16 %v3189, %v3173
    %v4054 = vpack.c.b16 %v3190, %v3174
    %v4055 = vpack.c.b16 %v3191, %v3175
    %v4056 = vpack.c.b16 %v3192, %v3176
    %v4057 = vpack.c.b16 %v3193, %v3177
    %v4058 = vpack.c.b16 %v3194, %v3178
    %v4059 = vpack.c.b16 %v3195, %v3179
    %v4060 = vpack.c.b16 %v3196, %v3180
    %v4061 = vpack.c.b16 %v3197, %v3181
    %v4062 = vpack.c.b16 %v3198, %v3182
    %v4063 = vpack.c.b16 %v3199, %v3183
    %v4064 = vpack.c.b16 %v3200, %v3184
    %v4065 = vpack.c.b16 %v3201, %v3185
    %v4066 = vpack.c.b16 %v3202, %v3186
    %v4067 = vpack.c.b16 %v3203, %v3187
    %v4068 = vpack.c.b16 %v3204, %v3188
    %v4069 = vpack.c.b16 %v3221, %v3205
    %v4070 = vpack.c.b16 %v3222, %v3206
    %v4071 = vpack.c.b16 %v3223, %v3207
    %v4072 = vpack.c.b16 %v3224, %v3208
    %v4073 = vpack.c.b16 %v3225, %v3209
    %v4074 = vpack.c.b16 %v3226, %v3210
    %v4075 = vpack.c.b16 %v3227, %v3211
    %v4076 = vpack.c.b16 %v3228, %v3212
    %v4077 = vpack.c.b16 %v3229, %v3213
    %v4078 = vpack.c.b16 %v3230, %v3214
    %v4079 = vpack.c.b16 %v3231, %v3215
    %v4080 = vpack.c.b16 %v3232, %v3216
    %v4081 = vpack.c.b16 %v3233, %v3217
    %v4082 = vpack.c.b16 %v3234, %v3218
    %v4083 = vpack.c.b16 %v3235, %v3219
    %v4084 = vpack.c.b16 %v3236, %v3220
    %v4085 = vpack.c.b16 %v3253, %v3237
    %v4086 = vpack.c.b16 %v3254, %v3238
    %v4087 = vpack.c.b16 %v3255, %v3239
    %v4088 = vpack.c.b16 %v3256, %v3240
    %v4089 = vpack.c.b16 %v3257, %v3241
    %v4090 = vpack.c.b16 %v3258, %v3242
    %v4091 = vpack.c.b16 %v3259, %v3243
    %v4092 = vpack.c.b16 %v3260, %v3244
    %v4093 = vpack.c.b16 %v3261, %v3245
    %v4094 = vpack.c.b16 %v3262, %v3246
    %v4095 = vpack.c.b16 %v3263, %v3247
    %v4096 = vpack.c.b16 %v3264, %v3248
    %v4097 = vpack.c.b16 %v3265, %v3249
    %v4098 = vpack.c.b16 %v3266, %v3250
    %v4099 = vpack.c.b16 %v3267, %v3251
    %v4100 = vpack.c.b16 %v3268, %v3252
    %v4101 = vpack.c.b16 %v3285, %v3269
    %v4102 = vpack.c.b16 %v3286, %v3270
    %v4103 = vpack.c.b16 %v3287, %v3271
    %v4104 = vpack.c.b16 %v3288, %v3272
    %v4105 = vpack.c.b16 %v3289, %v3273
    %v4106 = vpack.c.b16 %v3290, %v3274
    %v4107 = vpack.c.b16 %v3291, %v3275
    %v4108 = vpack.c.b16 %v3292, %v3276
    %v4109 = vpack.c.b16 %v3293, %v3277
    %v4110 = vpack.c.b16 %v3294, %v3278
    %v4111 = vpack.c.b16 %v3295, %v3279
    %v4112 = vpack.c.b16 %v3296, %v3280
    %v4113 = vpack.c.b16 %v3297, %v3281
    %v4114 = vpack.c.b16 %v3298, %v3282
    %v4115 = vpack.c.b16 %v3299, %v3283
    %v4116 = vpack.c.b16 %v3300, %v3284
    %v4117 = vpack.c.b16 %v3317, %v3301
    %v4118 = vpack.c.b16 %v3318, %v3302
    %v4119 = vpack.c.b16 %v3319, %v3303
    %v4120 = vpack.c.b16 %v3320, %v3304
    %v4121 = vpack.c.b16 %v3321, %v3305
    %v4122 = vpack.c.b16 %v3322, %v3306
    %v4123 = vpack.c.b16 %v3323, %v3307
    %v4124 = vpack.c.b16 %v3324, %v3308
    %v4125 = vpack.c.b16 %v3325, %v3309
    %v4126 = vpack.c.b16 %v3326, %v3310
    %v4127 = vpack.c.b16 %v3327, %v3311
    %v4128 = vpack.c.b16 %v3328, %v3312
    %v4129 = vpack.c.b16 %v3329, %v3313
    %v4130 = vpack.c.b16 %v3330, %v3314
    %v4131 = vpack.c.b16 %v3331, %v3315
    %v4132 = vpack.c.b16 %v3332, %v3316
    %v4133 = vpack.c.b16 %v3349, %v3333
    %v4134 = vpack.c.b16 %v3350, %v3334
    %v4135 = vpack.c.b16 %v3351, %v3335
    %v4136 = vpack.c.b16 %v3352, %v3336
    %v4137 = vpack.c.b16 %v3353, %v3337
    %v4138 = vpack.c.b16 %v3354, %v3338
    %v4139 = vpack.c.b16 %v3355, %v3339
    %v4140 = vpack.c.b16 %v3356, %v3340
    %v4141 = vpack.c.b16 %v3357, %v3341
    %v4142 = vpack.c.b16 %v3358, %v3342
    %v4143 = vpack.c.b16 %v3359, %v3343
    %v4144 = vpack.c.b16 %v3360, %v3344
    %v4145 = vpack.c.b16 %v3361, %v3345
    %v4146 = vpack.c.b16 %v3362, %v3346
    %v4147 = vpack.c.b16 %v3363, %v3347
    %v4148 = vpack.c.b16 %v3364, %v3348
    %vm4933 = vcmask 130048
    %v4935 = vsel %vm4933, %v144, 0
    %4937 = vmatprep.subr.bf16.mxu0 %v3366
    %4938 = vmatpush1.bf16.msra.mxu0 %v3365
    %4939 = vmatprep.subr.bf16.mxu0 %v3382
    %4940 = vmatpush1.bf16.msra.mxu0 %v3381
    %4941 = vmatprep.subr.bf16.mxu0 %v3398
    %4942 = vmatpush1.bf16.msra.mxu0 %v3397
    %4943 = vmatprep.subr.bf16.mxu0 %v3414
    %4944 = vmatpush1.bf16.msra.mxu0 %v3413
    %4945 = vmatprep.subr.bf16.mxu0 %v3430
    %4946 = vmatpush1.bf16.msra.mxu0 %v3429
    %4947 = vmatprep.subr.bf16.mxu0 %v3446
    %4948 = vmatpush1.bf16.msra.mxu0 %v3445
    %4949 = vmatprep.subr.bf16.mxu0 %v3462
    %4950 = vmatpush1.bf16.msra.mxu0 %v3461
    %4951 = vmatprep.subr.bf16.mxu0 %v3478
    %4952 = vmatpush1.bf16.msra.mxu0 %v3477
    %4953 = vmatprep.subr.bf16.mxu0 %v3494
    %4954 = vmatpush1.bf16.msra.mxu0 %v3493
    %4955 = vmatprep.subr.bf16.mxu0 %v3510
    %4956 = vmatpush1.bf16.msra.mxu0 %v3509
    %4957 = vmatprep.subr.bf16.mxu0 %v3526
    %4958 = vmatpush1.bf16.msra.mxu0 %v3525
    %4959 = vmatprep.subr.bf16.mxu0 %v3542
    %4960 = vmatpush1.bf16.msra.mxu0 %v3541
    %4961 = vmatprep.subr.bf16.mxu0 %v3558
    %4962 = vmatpush1.bf16.msra.mxu0 %v3557
    %4963 = vmatprep.subr.bf16.mxu0 %v3574
    %4964 = vmatpush1.bf16.msra.mxu0 %v3573
    %4965 = vmatprep.subr.bf16.mxu0 %v3590
    %4966 = vmatpush1.bf16.msra.mxu0 %v3589
    %4967 = vmatprep.subr.bf16.mxu0 %v3606
    %4968 = vmatpush1.bf16.msra.mxu0 %v3605
    %4969 = vmatprep.mubr.bf16.mxu0 %v139
    %4970 = vmatmul.mubr.bf16.gmra.mrb[0].mxu0 %v138
    %v4971 = vpop.f32.mrb[0].mxu0
    %v4972 = vadd.f32 %v936, %v4971
    %v4973 = vpop.f32.mrb[0].mxu0
    %v4974 = vadd.f32 %v940, %v4973
    %v4975 = vpop.f32.mrb[0].mxu0
    %v4976 = vpop.f32.mrb[0].mxu0
    %4977 = vdwg.mxu0
    %4978 = vmatprep.subr.bf16.mxu0 %v3622
    %4979 = vmatpush1.bf16.msra.mxu0 %v3621
    %4980 = vmatprep.subr.bf16.mxu0 %v3638
    %4981 = vmatpush1.bf16.msra.mxu0 %v3637
    %4982 = vmatprep.subr.bf16.mxu0 %v3654
    %4983 = vmatpush1.bf16.msra.mxu0 %v3653
    %4984 = vmatprep.subr.bf16.mxu0 %v3670
    %4985 = vmatpush1.bf16.msra.mxu0 %v3669
    %4986 = vmatprep.subr.bf16.mxu0 %v3686
    %4987 = vmatpush1.bf16.msra.mxu0 %v3685
    %4988 = vmatprep.subr.bf16.mxu0 %v3702
    %4989 = vmatpush1.bf16.msra.mxu0 %v3701
    %4990 = vmatprep.subr.bf16.mxu0 %v3718
    %4991 = vmatpush1.bf16.msra.mxu0 %v3717
    %4992 = vmatprep.subr.bf16.mxu0 %v3734
    %4993 = vmatpush1.bf16.msra.mxu0 %v3733
    %4994 = vmatprep.subr.bf16.mxu0 %v3750
    %4995 = vmatpush1.bf16.msra.mxu0 %v3749
    %4996 = vmatprep.subr.bf16.mxu0 %v3766
    %4997 = vmatpush1.bf16.msra.mxu0 %v3765
    %4998 = vmatprep.subr.bf16.mxu0 %v3782
    %4999 = vmatpush1.bf16.msra.mxu0 %v3781
    %5000 = vmatprep.subr.bf16.mxu0 %v3798
    %5001 = vmatpush1.bf16.msra.mxu0 %v3797
    %5002 = vmatprep.subr.bf16.mxu0 %v3814
    %5003 = vmatpush1.bf16.msra.mxu0 %v3813
    %5004 = vmatprep.subr.bf16.mxu0 %v3830
    %5005 = vmatpush1.bf16.msra.mxu0 %v3829
    %5006 = vmatprep.subr.bf16.mxu0 %v3846
    %5007 = vmatpush1.bf16.msra.mxu0 %v3845
    %5008 = vmatprep.subr.bf16.mxu0 %v3862
    %5009 = vmatpush1.bf16.msra.mxu0 %v3861
    %5010 = vmatprep.mubr.bf16.mxu0 %v141
    %5011 = vmatmul.mubr.bf16.gmra.mrb[0].mxu0 %v140
    %v5012 = vpop.f32.mrb[0].mxu0
    %v5013 = vadd.f32 %v4972, %v5012
    %v5014 = vpop.f32.mrb[0].mxu0
    %v5015 = vadd.f32 %v4974, %v5014
    %v5016 = vpop.f32.mrb[0].mxu0
    %v5017 = vpop.f32.mrb[0].mxu0
    %5018 = vdwg.mxu0
    %5019 = vmatprep.subr.bf16.mxu0 %v3878
    %5020 = vmatpush1.bf16.msra.mxu0 %v3877
    %5021 = vmatprep.subr.bf16.mxu0 %v3894
    %5022 = vmatpush1.bf16.msra.mxu0 %v3893
    %5023 = vmatprep.subr.bf16.mxu0 %v3910
    %5024 = vmatpush1.bf16.msra.mxu0 %v3909
    %5025 = vmatprep.subr.bf16.mxu0 %v3926
    %5026 = vmatpush1.bf16.msra.mxu0 %v3925
    %5027 = vmatprep.subr.bf16.mxu0 %v3942
    %5028 = vmatpush1.bf16.msra.mxu0 %v3941
    %5029 = vmatprep.subr.bf16.mxu0 %v3958
    %5030 = vmatpush1.bf16.msra.mxu0 %v3957
    %5031 = vmatprep.subr.bf16.mxu0 %v3974
    %5032 = vmatpush1.bf16.msra.mxu0 %v3973
    %5033 = vmatprep.subr.bf16.mxu0 %v3990
    %5034 = vmatpush1.bf16.msra.mxu0 %v3989
    %5035 = vmatprep.subr.bf16.mxu0 %v4006
    %5036 = vmatpush1.bf16.msra.mxu0 %v4005
    %5037 = vmatprep.subr.bf16.mxu0 %v4022
    %5038 = vmatpush1.bf16.msra.mxu0 %v4021
    %5039 = vmatprep.subr.bf16.mxu0 %v4038
    %5040 = vmatpush1.bf16.msra.mxu0 %v4037
    %5041 = vmatprep.subr.bf16.mxu0 %v4054
    %5042 = vmatpush1.bf16.msra.mxu0 %v4053
    %5043 = vmatprep.subr.bf16.mxu0 %v4070
    %5044 = vmatpush1.bf16.msra.mxu0 %v4069
    %5045 = vmatprep.subr.bf16.mxu0 %v4086
    %5046 = vmatpush1.bf16.msra.mxu0 %v4085
    %5047 = vmatprep.subr.bf16.mxu0 %v4102
    %5048 = vmatpush1.bf16.msra.mxu0 %v4101
    %5049 = vmatprep.subr.bf16.mxu0 %v4118
    %5050 = vmatpush1.bf16.msra.mxu0 %v4117
    %5051 = vmatprep.mubr.bf16.mxu0 %v143
    %5052 = vmatmul.mubr.bf16.gmra.mrb[0].mxu0 %v142
    %v5053 = vpop.f32.mrb[0].mxu0
    %v5054 = vadd.f32 %v5013, %v5053
    %v5055 = vpop.f32.mrb[0].mxu0
    %v5056 = vadd.f32 %v5015, %v5055
    %v5057 = vpop.f32.mrb[0].mxu0
    %v5058 = vpop.f32.mrb[0].mxu0
    %5059 = vdwg.mxu0
    %5060 = vmatprep.subr.bf16.mxu0 %v4134
    %5061 = vmatpush1.bf16.msra.mxu0 %v4133
    %5062 = vmatprep.subr.bf16.mxu0 0
    %5063 = vmatpush1.bf16.msra.mxu0 0
    %5064 = vmatprep.subr.bf16.mxu0 0
    %5065 = vmatpush1.bf16.msra.mxu0 0
    %5066 = vmatprep.subr.bf16.mxu0 0
    %5067 = vmatpush1.bf16.msra.mxu0 0
    %5068 = vmatprep.subr.bf16.mxu0 0
    %5069 = vmatpush1.bf16.msra.mxu0 0
    %5070 = vmatprep.subr.bf16.mxu0 0
    %5071 = vmatpush1.bf16.msra.mxu0 0
    %5072 = vmatprep.subr.bf16.mxu0 0
    %5073 = vmatpush1.bf16.msra.mxu0 0
    %5074 = vmatprep.subr.bf16.mxu0 0
    %5075 = vmatpush1.bf16.msra.mxu0 0
    %5076 = vmatprep.subr.bf16.mxu0 0
    %5077 = vmatpush1.bf16.msra.mxu0 0
    %5078 = vmatprep.subr.bf16.mxu0 0
    %5079 = vmatpush1.bf16.msra.mxu0 0
    %5080 = vmatprep.subr.bf16.mxu0 0
    %5081 = vmatpush1.bf16.msra.mxu0 0
    %5082 = vmatprep.subr.bf16.mxu0 0
    %5083 = vmatpush1.bf16.msra.mxu0 0
    %5084 = vmatprep.subr.bf16.mxu0 0
    %5085 = vmatpush1.bf16.msra.mxu0 0
    %5086 = vmatprep.subr.bf16.mxu0 0
    %5087 = vmatpush1.bf16.msra.mxu0 0
    %5088 = vmatprep.subr.bf16.mxu0 0
    %5089 = vmatpush1.bf16.msra.mxu0 0
    %5090 = vmatprep.subr.bf16.mxu0 0
    %5091 = vmatpush1.bf16.msra.mxu0 0
    %5092 = vmatprep.mubr.bf16.mxu0 0
    %5093 = vmatmul.mubr.bf16.gmra.mrb[0].mxu0 %v4935
    %v5094 = vpop.f32.mrb[0].mxu0
    %v5095 = vadd.f32 %v5054, %v5094
    %v5096 = vpop.f32.mrb[0].mxu0
    %v5097 = vadd.f32 %v5056, %v5096
    %v5098 = vpop.f32.mrb[0].mxu0
    %v5099 = vpop.f32.mrb[0].mxu0
    %5100 = vdwg.mxu0
    %5101 = vmatprep.subr.bf16.mxu0 %v3368
    %5102 = vmatpush1.bf16.msra.mxu0 %v3367
    %5103 = vmatprep.subr.bf16.mxu0 %v3384
    %5104 = vmatpush1.bf16.msra.mxu0 %v3383
    %5105 = vmatprep.subr.bf16.mxu0 %v3400
    %5106 = vmatpush1.bf16.msra.mxu0 %v3399
    %5107 = vmatprep.subr.bf16.mxu0 %v3416
    %5108 = vmatpush1.bf16.msra.mxu0 %v3415
    %5109 = vmatprep.subr.bf16.mxu0 %v3432
    %5110 = vmatpush1.bf16.msra.mxu0 %v3431
    %5111 = vmatprep.subr.bf16.mxu0 %v3448
    %5112 = vmatpush1.bf16.msra.mxu0 %v3447
    %5113 = vmatprep.subr.bf16.mxu0 %v3464
    %5114 = vmatpush1.bf16.msra.mxu0 %v3463
    %5115 = vmatprep.subr.bf16.mxu0 %v3480
    %5116 = vmatpush1.bf16.msra.mxu0 %v3479
    %5117 = vmatprep.subr.bf16.mxu0 %v3496
    %5118 = vmatpush1.bf16.msra.mxu0 %v3495
    %5119 = vmatprep.subr.bf16.mxu0 %v3512
    %5120 = vmatpush1.bf16.msra.mxu0 %v3511
    %5121 = vmatprep.subr.bf16.mxu0 %v3528
    %5122 = vmatpush1.bf16.msra.mxu0 %v3527
    %5123 = vmatprep.subr.bf16.mxu0 %v3544
    %5124 = vmatpush1.bf16.msra.mxu0 %v3543
    %5125 = vmatprep.subr.bf16.mxu0 %v3560
    %5126 = vmatpush1.bf16.msra.mxu0 %v3559
    %5127 = vmatprep.subr.bf16.mxu0 %v3576
    %5128 = vmatpush1.bf16.msra.mxu0 %v3575
    %5129 = vmatprep.subr.bf16.mxu0 %v3592
    %5130 = vmatpush1.bf16.msra.mxu0 %v3591
    %5131 = vmatprep.subr.bf16.mxu0 %v3608
    %5132 = vmatpush1.bf16.msra.mxu0 %v3607
    %5133 = vmatprep.mubr.bf16.mxu0 %v139
    %5134 = vmatmul.mubr.bf16.gmra.mrb[0].mxu0 %v138
    %v5135 = vpop.f32.mrb[0].mxu0
    %v5136 = vadd.f32 %v944, %v5135
    %v5137 = vpop.f32.mrb[0].mxu0
    %v5138 = vadd.f32 %v948, %v5137
    %v5139 = vpop.f32.mrb[0].mxu0
    %v5140 = vpop.f32.mrb[0].mxu0
    %5141 = vdwg.mxu0
    %5142 = vmatprep.subr.bf16.mxu0 %v3624
    %5143 = vmatpush1.bf16.msra.mxu0 %v3623
    %5144 = vmatprep.subr.bf16.mxu0 %v3640
    %5145 = vmatpush1.bf16.msra.mxu0 %v3639
    %5146 = vmatprep.subr.bf16.mxu0 %v3656
    %5147 = vmatpush1.bf16.msra.mxu0 %v3655
    %5148 = vmatprep.subr.bf16.mxu0 %v3672
    %5149 = vmatpush1.bf16.msra.mxu0 %v3671
    %5150 = vmatprep.subr.bf16.mxu0 %v3688
    %5151 = vmatpush1.bf16.msra.mxu0 %v3687
    %5152 = vmatprep.subr.bf16.mxu0 %v3704
    %5153 = vmatpush1.bf16.msra.mxu0 %v3703
    %5154 = vmatprep.subr.bf16.mxu0 %v3720
    %5155 = vmatpush1.bf16.msra.mxu0 %v3719
    %5156 = vmatprep.subr.bf16.mxu0 %v3736
    %5157 = vmatpush1.bf16.msra.mxu0 %v3735
    %5158 = vmatprep.subr.bf16.mxu0 %v3752
    %5159 = vmatpush1.bf16.msra.mxu0 %v3751
    %5160 = vmatprep.subr.bf16.mxu0 %v3768
    %5161 = vmatpush1.bf16.msra.mxu0 %v3767
    %5162 = vmatprep.subr.bf16.mxu0 %v3784
    %5163 = vmatpush1.bf16.msra.mxu0 %v3783
    %5164 = vmatprep.subr.bf16.mxu0 %v3800
    %5165 = vmatpush1.bf16.msra.mxu0 %v3799
    %5166 = vmatprep.subr.bf16.mxu0 %v3816
    %5167 = vmatpush1.bf16.msra.mxu0 %v3815
    %5168 = vmatprep.subr.bf16.mxu0 %v3832
    %5169 = vmatpush1.bf16.msra.mxu0 %v3831
    %5170 = vmatprep.subr.bf16.mxu0 %v3848
    %5171 = vmatpush1.bf16.msra.mxu0 %v3847
    %5172 = vmatprep.subr.bf16.mxu0 %v3864
    %5173 = vmatpush1.bf16.msra.mxu0 %v3863
    %5174 = vmatprep.mubr.bf16.mxu0 %v141
    %5175 = vmatmul.mubr.bf16.gmra.mrb[0].mxu0 %v140
    %v5176 = vpop.f32.mrb[0].mxu0
    %v5177 = vadd.f32 %v5136, %v5176
    %v5178 = vpop.f32.mrb[0].mxu0
    %v5179 = vadd.f32 %v5138, %v5178
    %v5180 = vpop.f32.mrb[0].mxu0
    %v5181 = vpop.f32.mrb[0].mxu0
    %5182 = vdwg.mxu0
    %5183 = vmatprep.subr.bf16.mxu0 %v3880
    %5184 = vmatpush1.bf16.msra.mxu0 %v3879
    %5185 = vmatprep.subr.bf16.mxu0 %v3896
    %5186 = vmatpush1.bf16.msra.mxu0 %v3895
    %5187 = vmatprep.subr.bf16.mxu0 %v3912
    %5188 = vmatpush1.bf16.msra.mxu0 %v3911
    %5189 = vmatprep.subr.bf16.mxu0 %v3928
    %5190 = vmatpush1.bf16.msra.mxu0 %v3927
    %5191 = vmatprep.subr.bf16.mxu0 %v3944
    %5192 = vmatpush1.bf16.msra.mxu0 %v3943
    %5193 = vmatprep.subr.bf16.mxu0 %v3960
    %5194 = vmatpush1.bf16.msra.mxu0 %v3959
    %5195 = vmatprep.subr.bf16.mxu0 %v3976
    %5196 = vmatpush1.bf16.msra.mxu0 %v3975
    %5197 = vmatprep.subr.bf16.mxu0 %v3992
    %5198 = vmatpush1.bf16.msra.mxu0 %v3991
    %5199 = vmatprep.subr.bf16.mxu0 %v4008
    %5200 = vmatpush1.bf16.msra.mxu0 %v4007
    %5201 = vmatprep.subr.bf16.mxu0 %v4024
    %5202 = vmatpush1.bf16.msra.mxu0 %v4023
    %5203 = vmatprep.subr.bf16.mxu0 %v4040
    %5204 = vmatpush1.bf16.msra.mxu0 %v4039
    %5205 = vmatprep.subr.bf16.mxu0 %v4056
    %5206 = vmatpush1.bf16.msra.mxu0 %v4055
    %5207 = vmatprep.subr.bf16.mxu0 %v4072
    %5208 = vmatpush1.bf16.msra.mxu0 %v4071
    %5209 = vmatprep.subr.bf16.mxu0 %v4088
    %5210 = vmatpush1.bf16.msra.mxu0 %v4087
    %5211 = vmatprep.subr.bf16.mxu0 %v4104
    %5212 = vmatpush1.bf16.msra.mxu0 %v4103
    %5213 = vmatprep.subr.bf16.mxu0 %v4120
    %5214 = vmatpush1.bf16.msra.mxu0 %v4119
    %5215 = vmatprep.mubr.bf16.mxu0 %v143
    %5216 = vmatmul.mubr.bf16.gmra.mrb[0].mxu0 %v142
    %v5217 = vpop.f32.mrb[0].mxu0
    %v5218 = vadd.f32 %v5177, %v5217
    %v5219 = vpop.f32.mrb[0].mxu0
    %v5220 = vadd.f32 %v5179, %v5219
    %v5221 = vpop.f32.mrb[0].mxu0
    %v5222 = vpop.f32.mrb[0].mxu0
    %5223 = vdwg.mxu0
    %5224 = vmatprep.subr.bf16.mxu0 %v4136
    %5225 = vmatpush1.bf16.msra.mxu0 %v4135
    %5226 = vmatprep.subr.bf16.mxu0 0
    %5227 = vmatpush1.bf16.msra.mxu0 0
    %5228 = vmatprep.subr.bf16.mxu0 0
    %5229 = vmatpush1.bf16.msra.mxu0 0
    %5230 = vmatprep.subr.bf16.mxu0 0
    %5231 = vmatpush1.bf16.msra.mxu0 0
    %5232 = vmatprep.subr.bf16.mxu0 0
    %5233 = vmatpush1.bf16.msra.mxu0 0
    %5234 = vmatprep.subr.bf16.mxu0 0
    %5235 = vmatpush1.bf16.msra.mxu0 0
    %5236 = vmatprep.subr.bf16.mxu0 0
    %5237 = vmatpush1.bf16.msra.mxu0 0
    %5238 = vmatprep.subr.bf16.mxu0 0
    %5239 = vmatpush1.bf16.msra.mxu0 0
    %5240 = vmatprep.subr.bf16.mxu0 0
    %5241 = vmatpush1.bf16.msra.mxu0 0
    %5242 = vmatprep.subr.bf16.mxu0 0
    %5243 = vmatpush1.bf16.msra.mxu0 0
    %5244 = vmatprep.subr.bf16.mxu0 0
    %5245 = vmatpush1.bf16.msra.mxu0 0
    %5246 = vmatprep.subr.bf16.mxu0 0
    %5247 = vmatpush1.bf16.msra.mxu0 0
    %5248 = vmatprep.subr.bf16.mxu0 0
    %5249 = vmatpush1.bf16.msra.mxu0 0
    %5250 = vmatprep.subr.bf16.mxu0 0
    %5251 = vmatpush1.bf16.msra.mxu0 0
    %5252 = vmatprep.subr.bf16.mxu0 0
    %5253 = vmatpush1.bf16.msra.mxu0 0
    %5254 = vmatprep.subr.bf16.mxu0 0
    %5255 = vmatpush1.bf16.msra.mxu0 0
    %5256 = vmatprep.mubr.bf16.mxu0 0
    %5257 = vmatmul.mubr.bf16.gmra.mrb[0].mxu0 %v4935
    %v5258 = vpop.f32.mrb[0].mxu0
    %v5259 = vadd.f32 %v5218, %v5258
    %v5260 = vpop.f32.mrb[0].mxu0
    %v5261 = vadd.f32 %v5220, %v5260
    %v5262 = vpop.f32.mrb[0].mxu0
    %v5263 = vpop.f32.mrb[0].mxu0
    %5264 = vdwg.mxu0
    %5265 = vmatprep.subr.bf16.mxu0 %v3370
    %5266 = vmatpush1.bf16.msra.mxu0 %v3369
    %5267 = vmatprep.subr.bf16.mxu0 %v3386
    %5268 = vmatpush1.bf16.msra.mxu0 %v3385
    %5269 = vmatprep.subr.bf16.mxu0 %v3402
    %5270 = vmatpush1.bf16.msra.mxu0 %v3401
    %5271 = vmatprep.subr.bf16.mxu0 %v3418
    %5272 = vmatpush1.bf16.msra.mxu0 %v3417
    %5273 = vmatprep.subr.bf16.mxu0 %v3434
    %5274 = vmatpush1.bf16.msra.mxu0 %v3433
    %5275 = vmatprep.subr.bf16.mxu0 %v3450
    %5276 = vmatpush1.bf16.msra.mxu0 %v3449
    %5277 = vmatprep.subr.bf16.mxu0 %v3466
    %5278 = vmatpush1.bf16.msra.mxu0 %v3465
    %5279 = vmatprep.subr.bf16.mxu0 %v3482
    %5280 = vmatpush1.bf16.msra.mxu0 %v3481
    %5281 = vmatprep.subr.bf16.mxu0 %v3498
    %5282 = vmatpush1.bf16.msra.mxu0 %v3497
    %5283 = vmatprep.subr.bf16.mxu0 %v3514
    %5284 = vmatpush1.bf16.msra.mxu0 %v3513
    %5285 = vmatprep.subr.bf16.mxu0 %v3530
    %5286 = vmatpush1.bf16.msra.mxu0 %v3529
    %5287 = vmatprep.subr.bf16.mxu0 %v3546
    %5288 = vmatpush1.bf16.msra.mxu0 %v3545
    %5289 = vmatprep.subr.bf16.mxu0 %v3562
    %5290 = vmatpush1.bf16.msra.mxu0 %v3561
    %5291 = vmatprep.subr.bf16.mxu0 %v3578
    %5292 = vmatpush1.bf16.msra.mxu0 %v3577
    %5293 = vmatprep.subr.bf16.mxu0 %v3594
    %5294 = vmatpush1.bf16.msra.mxu0 %v3593
    %5295 = vmatprep.subr.bf16.mxu0 %v3610
    %5296 = vmatpush1.bf16.msra.mxu0 %v3609
    %5297 = vmatprep.mubr.bf16.mxu0 %v139
    %5298 = vmatmul.mubr.bf16.gmra.mrb[0].mxu0 %v138
    %v5299 = vpop.f32.mrb[0].mxu0
    %v5300 = vadd.f32 %v952, %v5299
    %v5301 = vpop.f32.mrb[0].mxu0
    %v5302 = vadd.f32 %v956, %v5301
    %v5303 = vpop.f32.mrb[0].mxu0
    %v5304 = vpop.f32.mrb[0].mxu0
    %5305 = vdwg.mxu0
    %5306 = vmatprep.subr.bf16.mxu0 %v3626
    %5307 = vmatpush1.bf16.msra.mxu0 %v3625
    %5308 = vmatprep.subr.bf16.mxu0 %v3642
    %5309 = vmatpush1.bf16.msra.mxu0 %v3641
    %5310 = vmatprep.subr.bf16.mxu0 %v3658
    %5311 = vmatpush1.bf16.msra.mxu0 %v3657
    %5312 = vmatprep.subr.bf16.mxu0 %v3674
    %5313 = vmatpush1.bf16.msra.mxu0 %v3673
    %5314 = vmatprep.subr.bf16.mxu0 %v3690
    %5315 = vmatpush1.bf16.msra.mxu0 %v3689
    %5316 = vmatprep.subr.bf16.mxu0 %v3706
    %5317 = vmatpush1.bf16.msra.mxu0 %v3705
    %5318 = vmatprep.subr.bf16.mxu0 %v3722
    %5319 = vmatpush1.bf16.msra.mxu0 %v3721
    %5320 = vmatprep.subr.bf16.mxu0 %v3738
    %5321 = vmatpush1.bf16.msra.mxu0 %v3737
    %5322 = vmatprep.subr.bf16.mxu0 %v3754
    %5323 = vmatpush1.bf16.msra.mxu0 %v3753
    %5324 = vmatprep.subr.bf16.mxu0 %v3770
    %5325 = vmatpush1.bf16.msra.mxu0 %v3769
    %5326 = vmatprep.subr.bf16.mxu0 %v3786
    %5327 = vmatpush1.bf16.msra.mxu0 %v3785
    %5328 = vmatprep.subr.bf16.mxu0 %v3802
    %5329 = vmatpush1.bf16.msra.mxu0 %v3801
    %5330 = vmatprep.subr.bf16.mxu0 %v3818
    %5331 = vmatpush1.bf16.msra.mxu0 %v3817
    %5332 = vmatprep.subr.bf16.mxu0 %v3834
    %5333 = vmatpush1.bf16.msra.mxu0 %v3833
    %5334 = vmatprep.subr.bf16.mxu0 %v3850
    %5335 = vmatpush1.bf16.msra.mxu0 %v3849
    %5336 = vmatprep.subr.bf16.mxu0 %v3866
    %5337 = vmatpush1.bf16.msra.mxu0 %v3865
    %5338 = vmatprep.mubr.bf16.mxu0 %v141
    %5339 = vmatmul.mubr.bf16.gmra.mrb[0].mxu0 %v140
    %v5340 = vpop.f32.mrb[0].mxu0
    %v5341 = vadd.f32 %v5300, %v5340
    %v5342 = vpop.f32.mrb[0].mxu0
    %v5343 = vadd.f32 %v5302, %v5342
    %v5344 = vpop.f32.mrb[0].mxu0
    %v5345 = vpop.f32.mrb[0].mxu0
    %5346 = vdwg.mxu0
    %5347 = vmatprep.subr.bf16.mxu0 %v3882
    %5348 = vmatpush1.bf16.msra.mxu0 %v3881
    %5349 = vmatprep.subr.bf16.mxu0 %v3898
    %5350 = vmatpush1.bf16.msra.mxu0 %v3897
    %5351 = vmatprep.subr.bf16.mxu0 %v3914
    %5352 = vmatpush1.bf16.msra.mxu0 %v3913
    %5353 = vmatprep.subr.bf16.mxu0 %v3930
    %5354 = vmatpush1.bf16.msra.mxu0 %v3929
    %5355 = vmatprep.subr.bf16.mxu0 %v3946
    %5356 = vmatpush1.bf16.msra.mxu0 %v3945
    %5357 = vmatprep.subr.bf16.mxu0 %v3962
    %5358 = vmatpush1.bf16.msra.mxu0 %v3961
    %5359 = vmatprep.subr.bf16.mxu0 %v3978
    %5360 = vmatpush1.bf16.msra.mxu0 %v3977
    %5361 = vmatprep.subr.bf16.mxu0 %v3994
    %5362 = vmatpush1.bf16.msra.mxu0 %v3993
    %5363 = vmatprep.subr.bf16.mxu0 %v4010
    %5364 = vmatpush1.bf16.msra.mxu0 %v4009
    %5365 = vmatprep.subr.bf16.mxu0 %v4026
    %5366 = vmatpush1.bf16.msra.mxu0 %v4025
    %5367 = vmatprep.subr.bf16.mxu0 %v4042
    %5368 = vmatpush1.bf16.msra.mxu0 %v4041
    %5369 = vmatprep.subr.bf16.mxu0 %v4058
    %5370 = vmatpush1.bf16.msra.mxu0 %v4057
    %5371 = vmatprep.subr.bf16.mxu0 %v4074
    %5372 = vmatpush1.bf16.msra.mxu0 %v4073
    %5373 = vmatprep.subr.bf16.mxu0 %v4090
    %5374 = vmatpush1.bf16.msra.mxu0 %v4089
    %5375 = vmatprep.subr.bf16.mxu0 %v4106
    %5376 = vmatpush1.bf16.msra.mxu0 %v4105
    %5377 = vmatprep.subr.bf16.mxu0 %v4122
    %5378 = vmatpush1.bf16.msra.mxu0 %v4121
    %5379 = vmatprep.mubr.bf16.mxu0 %v143
    %5380 = vmatmul.mubr.bf16.gmra.mrb[0].mxu0 %v142
    %v5381 = vpop.f32.mrb[0].mxu0
    %v5382 = vadd.f32 %v5341, %v5381
    %v5383 = vpop.f32.mrb[0].mxu0
    %v5384 = vadd.f32 %v5343, %v5383
    %v5385 = vpop.f32.mrb[0].mxu0
    %v5386 = vpop.f32.mrb[0].mxu0
    %5387 = vdwg.mxu0
    %5388 = vmatprep.subr.bf16.mxu0 %v4138
    %5389 = vmatpush1.bf16.msra.mxu0 %v4137
    %5390 = vmatprep.subr.bf16.mxu0 0
    %5391 = vmatpush1.bf16.msra.mxu0 0
    %5392 = vmatprep.subr.bf16.mxu0 0
    %5393 = vmatpush1.bf16.msra.mxu0 0
    %5394 = vmatprep.subr.bf16.mxu0 0
    %5395 = vmatpush1.bf16.msra.mxu0 0
    %5396 = vmatprep.subr.bf16.mxu0 0
    %5397 = vmatpush1.bf16.msra.mxu0 0
    %5398 = vmatprep.subr.bf16.mxu0 0
    %5399 = vmatpush1.bf16.msra.mxu0 0
    %5400 = vmatprep.subr.bf16.mxu0 0
    %5401 = vmatpush1.bf16.msra.mxu0 0
    %5402 = vmatprep.subr.bf16.mxu0 0
    %5403 = vmatpush1.bf16.msra.mxu0 0
    %5404 = vmatprep.subr.bf16.mxu0 0
    %5405 = vmatpush1.bf16.msra.mxu0 0
    %5406 = vmatprep.subr.bf16.mxu0 0
    %5407 = vmatpush1.bf16.msra.mxu0 0
    %5408 = vmatprep.subr.bf16.mxu0 0
    %5409 = vmatpush1.bf16.msra.mxu0 0
    %5410 = vmatprep.subr.bf16.mxu0 0
    %5411 = vmatpush1.bf16.msra.mxu0 0
    %5412 = vmatprep.subr.bf16.mxu0 0
    %5413 = vmatpush1.bf16.msra.mxu0 0
    %5414 = vmatprep.subr.bf16.mxu0 0
    %5415 = vmatpush1.bf16.msra.mxu0 0
    %5416 = vmatprep.subr.bf16.mxu0 0
    %5417 = vmatpush1.bf16.msra.mxu0 0
    %5418 = vmatprep.subr.bf16.mxu0 0
    %5419 = vmatpush1.bf16.msra.mxu0 0
    %5420 = vmatprep.mubr.bf16.mxu0 0
    %5421 = vmatmul.mubr.bf16.gmra.mrb[0].mxu0 %v4935
    %v5422 = vpop.f32.mrb[0].mxu0
    %v5423 = vadd.f32 %v5382, %v5422
    %v5424 = vpop.f32.mrb[0].mxu0
    %v5425 = vadd.f32 %v5384, %v5424
    %v5426 = vpop.f32.mrb[0].mxu0
    %v5427 = vpop.f32.mrb[0].mxu0
    %5428 = vdwg.mxu0
    %5429 = vmatprep.subr.bf16.mxu0 %v3372
    %5430 = vmatpush1.bf16.msra.mxu0 %v3371
    %5431 = vmatprep.subr.bf16.mxu0 %v3388
    %5432 = vmatpush1.bf16.msra.mxu0 %v3387
    %5433 = vmatprep.subr.bf16.mxu0 %v3404
    %5434 = vmatpush1.bf16.msra.mxu0 %v3403
    %5435 = vmatprep.subr.bf16.mxu0 %v3420
    %5436 = vmatpush1.bf16.msra.mxu0 %v3419
    %5437 = vmatprep.subr.bf16.mxu0 %v3436
    %5438 = vmatpush1.bf16.msra.mxu0 %v3435
    %5439 = vmatprep.subr.bf16.mxu0 %v3452
    %5440 = vmatpush1.bf16.msra.mxu0 %v3451
    %5441 = vmatprep.subr.bf16.mxu0 %v3468
    %5442 = vmatpush1.bf16.msra.mxu0 %v3467
    %5443 = vmatprep.subr.bf16.mxu0 %v3484
    %5444 = vmatpush1.bf16.msra.mxu0 %v3483
    %5445 = vmatprep.subr.bf16.mxu0 %v3500
    %5446 = vmatpush1.bf16.msra.mxu0 %v3499
    %5447 = vmatprep.subr.bf16.mxu0 %v3516
    %5448 = vmatpush1.bf16.msra.mxu0 %v3515
    %5449 = vmatprep.subr.bf16.mxu0 %v3532
    %5450 = vmatpush1.bf16.msra.mxu0 %v3531
    %5451 = vmatprep.subr.bf16.mxu0 %v3548
    %5452 = vmatpush1.bf16.msra.mxu0 %v3547
    %5453 = vmatprep.subr.bf16.mxu0 %v3564
    %5454 = vmatpush1.bf16.msra.mxu0 %v3563
    %5455 = vmatprep.subr.bf16.mxu0 %v3580
    %5456 = vmatpush1.bf16.msra.mxu0 %v3579
    %5457 = vmatprep.subr.bf16.mxu0 %v3596
    %5458 = vmatpush1.bf16.msra.mxu0 %v3595
    %5459 = vmatprep.subr.bf16.mxu0 %v3612
    %5460 = vmatpush1.bf16.msra.mxu0 %v3611
    %5461 = vmatprep.mubr.bf16.mxu0 %v139
    %5462 = vmatmul.mubr.bf16.gmra.mrb[0].mxu0 %v138
    %v5463 = vpop.f32.mrb[0].mxu0
    %v5464 = vadd.f32 %v960, %v5463
    %v5465 = vpop.f32.mrb[0].mxu0
    %v5466 = vadd.f32 %v964, %v5465
    %v5467 = vpop.f32.mrb[0].mxu0
    %v5468 = vpop.f32.mrb[0].mxu0
    %5469 = vdwg.mxu0
    %5470 = vmatprep.subr.bf16.mxu0 %v3628
    %5471 = vmatpush1.bf16.msra.mxu0 %v3627
    %5472 = vmatprep.subr.bf16.mxu0 %v3644
    %5473 = vmatpush1.bf16.msra.mxu0 %v3643
    %5474 = vmatprep.subr.bf16.mxu0 %v3660
    %5475 = vmatpush1.bf16.msra.mxu0 %v3659
    %5476 = vmatprep.subr.bf16.mxu0 %v3676
    %5477 = vmatpush1.bf16.msra.mxu0 %v3675
    %5478 = vmatprep.subr.bf16.mxu0 %v3692
    %5479 = vmatpush1.bf16.msra.mxu0 %v3691
    %5480 = vmatprep.subr.bf16.mxu0 %v3708
    %5481 = vmatpush1.bf16.msra.mxu0 %v3707
    %5482 = vmatprep.subr.bf16.mxu0 %v3724
    %5483 = vmatpush1.bf16.msra.mxu0 %v3723
    %5484 = vmatprep.subr.bf16.mxu0 %v3740
    %5485 = vmatpush1.bf16.msra.mxu0 %v3739
    %5486 = vmatprep.subr.bf16.mxu0 %v3756
    %5487 = vmatpush1.bf16.msra.mxu0 %v3755
    %5488 = vmatprep.subr.bf16.mxu0 %v3772
    %5489 = vmatpush1.bf16.msra.mxu0 %v3771
    %5490 = vmatprep.subr.bf16.mxu0 %v3788
    %5491 = vmatpush1.bf16.msra.mxu0 %v3787
    %5492 = vmatprep.subr.bf16.mxu0 %v3804
    %5493 = vmatpush1.bf16.msra.mxu0 %v3803
    %5494 = vmatprep.subr.bf16.mxu0 %v3820
    %5495 = vmatpush1.bf16.msra.mxu0 %v3819
    %5496 = vmatprep.subr.bf16.mxu0 %v3836
    %5497 = vmatpush1.bf16.msra.mxu0 %v3835
    %5498 = vmatprep.subr.bf16.mxu0 %v3852
    %5499 = vmatpush1.bf16.msra.mxu0 %v3851
    %5500 = vmatprep.subr.bf16.mxu0 %v3868
    %5501 = vmatpush1.bf16.msra.mxu0 %v3867
    %5502 = vmatprep.mubr.bf16.mxu0 %v141
    %5503 = vmatmul.mubr.bf16.gmra.mrb[0].mxu0 %v140
    %v5504 = vpop.f32.mrb[0].mxu0
    %v5505 = vadd.f32 %v5464, %v5504
    %v5506 = vpop.f32.mrb[0].mxu0
    %v5507 = vadd.f32 %v5466, %v5506
    %v5508 = vpop.f32.mrb[0].mxu0
    %v5509 = vpop.f32.mrb[0].mxu0
    %5510 = vdwg.mxu0
    %5511 = vmatprep.subr.bf16.mxu0 %v3884
    %5512 = vmatpush1.bf16.msra.mxu0 %v3883
    %5513 = vmatprep.subr.bf16.mxu0 %v3900
    %5514 = vmatpush1.bf16.msra.mxu0 %v3899
    %5515 = vmatprep.subr.bf16.mxu0 %v3916
    %5516 = vmatpush1.bf16.msra.mxu0 %v3915
    %5517 = vmatprep.subr.bf16.mxu0 %v3932
    %5518 = vmatpush1.bf16.msra.mxu0 %v3931
    %5519 = vmatprep.subr.bf16.mxu0 %v3948
    %5520 = vmatpush1.bf16.msra.mxu0 %v3947
    %5521 = vmatprep.subr.bf16.mxu0 %v3964
    %5522 = vmatpush1.bf16.msra.mxu0 %v3963
    %5523 = vmatprep.subr.bf16.mxu0 %v3980
    %5524 = vmatpush1.bf16.msra.mxu0 %v3979
    %5525 = vmatprep.subr.bf16.mxu0 %v3996
    %5526 = vmatpush1.bf16.msra.mxu0 %v3995
    %5527 = vmatprep.subr.bf16.mxu0 %v4012
    %5528 = vmatpush1.bf16.msra.mxu0 %v4011
    %5529 = vmatprep.subr.bf16.mxu0 %v4028
    %5530 = vmatpush1.bf16.msra.mxu0 %v4027
    %5531 = vmatprep.subr.bf16.mxu0 %v4044
    %5532 = vmatpush1.bf16.msra.mxu0 %v4043
    %5533 = vmatprep.subr.bf16.mxu0 %v4060
    %5534 = vmatpush1.bf16.msra.mxu0 %v4059
    %5535 = vmatprep.subr.bf16.mxu0 %v4076
    %5536 = vmatpush1.bf16.msra.mxu0 %v4075
    %5537 = vmatprep.subr.bf16.mxu0 %v4092
    %5538 = vmatpush1.bf16.msra.mxu0 %v4091
    %5539 = vmatprep.subr.bf16.mxu0 %v4108
    %5540 = vmatpush1.bf16.msra.mxu0 %v4107
    %5541 = vmatprep.subr.bf16.mxu0 %v4124
    %5542 = vmatpush1.bf16.msra.mxu0 %v4123
    %5543 = vmatprep.mubr.bf16.mxu0 %v143
    %5544 = vmatmul.mubr.bf16.gmra.mrb[0].mxu0 %v142
    %v5545 = vpop.f32.mrb[0].mxu0
    %v5546 = vadd.f32 %v5505, %v5545
    %v5547 = vpop.f32.mrb[0].mxu0
    %v5548 = vadd.f32 %v5507, %v5547
    %v5549 = vpop.f32.mrb[0].mxu0
    %v5550 = vpop.f32.mrb[0].mxu0
    %5551 = vdwg.mxu0
    %5552 = vmatprep.subr.bf16.mxu0 %v4140
    %5553 = vmatpush1.bf16.msra.mxu0 %v4139
    %5554 = vmatprep.subr.bf16.mxu0 0
    %5555 = vmatpush1.bf16.msra.mxu0 0
    %5556 = vmatprep.subr.bf16.mxu0 0
    %5557 = vmatpush1.bf16.msra.mxu0 0
    %5558 = vmatprep.subr.bf16.mxu0 0
    %5559 = vmatpush1.bf16.msra.mxu0 0
    %5560 = vmatprep.subr.bf16.mxu0 0
    %5561 = vmatpush1.bf16.msra.mxu0 0
    %5562 = vmatprep.subr.bf16.mxu0 0
    %5563 = vmatpush1.bf16.msra.mxu0 0
    %5564 = vmatprep.subr.bf16.mxu0 0
    %5565 = vmatpush1.bf16.msra.mxu0 0
    %5566 = vmatprep.subr.bf16.mxu0 0
    %5567 = vmatpush1.bf16.msra.mxu0 0
    %5568 = vmatprep.subr.bf16.mxu0 0
    %5569 = vmatpush1.bf16.msra.mxu0 0
    %5570 = vmatprep.subr.bf16.mxu0 0
    %5571 = vmatpush1.bf16.msra.mxu0 0
    %5572 = vmatprep.subr.bf16.mxu0 0
    %5573 = vmatpush1.bf16.msra.mxu0 0
    %5574 = vmatprep.subr.bf16.mxu0 0
    %5575 = vmatpush1.bf16.msra.mxu0 0
    %5576 = vmatprep.subr.bf16.mxu0 0
    %5577 = vmatpush1.bf16.msra.mxu0 0
    %5578 = vmatprep.subr.bf16.mxu0 0
    %5579 = vmatpush1.bf16.msra.mxu0 0
    %5580 = vmatprep.subr.bf16.mxu0 0
    %5581 = vmatpush1.bf16.msra.mxu0 0
    %5582 = vmatprep.subr.bf16.mxu0 0
    %5583 = vmatpush1.bf16.msra.mxu0 0
    %5584 = vmatprep.mubr.bf16.mxu0 0
    %5585 = vmatmul.mubr.bf16.gmra.mrb[0].mxu0 %v4935
    %v5586 = vpop.f32.mrb[0].mxu0
    %v5587 = vadd.f32 %v5546, %v5586
    %v5588 = vpop.f32.mrb[0].mxu0
    %v5589 = vadd.f32 %v5548, %v5588
    %v5590 = vpop.f32.mrb[0].mxu0
    %v5591 = vpop.f32.mrb[0].mxu0
    %5592 = vdwg.mxu0
    %5593 = vmatprep.subr.bf16.mxu0 %v3374
    %5594 = vmatpush1.bf16.msra.mxu0 %v3373
    %5595 = vmatprep.subr.bf16.mxu0 %v3390
    %5596 = vmatpush1.bf16.msra.mxu0 %v3389
    %5597 = vmatprep.subr.bf16.mxu0 %v3406
    %5598 = vmatpush1.bf16.msra.mxu0 %v3405
    %5599 = vmatprep.subr.bf16.mxu0 %v3422
    %5600 = vmatpush1.bf16.msra.mxu0 %v3421
    %5601 = vmatprep.subr.bf16.mxu0 %v3438
    %5602 = vmatpush1.bf16.msra.mxu0 %v3437
    %5603 = vmatprep.subr.bf16.mxu0 %v3454
    %5604 = vmatpush1.bf16.msra.mxu0 %v3453
    %5605 = vmatprep.subr.bf16.mxu0 %v3470
    %5606 = vmatpush1.bf16.msra.mxu0 %v3469
    %5607 = vmatprep.subr.bf16.mxu0 %v3486
    %5608 = vmatpush1.bf16.msra.mxu0 %v3485
    %5609 = vmatprep.subr.bf16.mxu0 %v3502
    %5610 = vmatpush1.bf16.msra.mxu0 %v3501
    %5611 = vmatprep.subr.bf16.mxu0 %v3518
    %5612 = vmatpush1.bf16.msra.mxu0 %v3517
    %5613 = vmatprep.subr.bf16.mxu0 %v3534
    %5614 = vmatpush1.bf16.msra.mxu0 %v3533
    %5615 = vmatprep.subr.bf16.mxu0 %v3550
    %5616 = vmatpush1.bf16.msra.mxu0 %v3549
    %5617 = vmatprep.subr.bf16.mxu0 %v3566
    %5618 = vmatpush1.bf16.msra.mxu0 %v3565
    %5619 = vmatprep.subr.bf16.mxu0 %v3582
    %5620 = vmatpush1.bf16.msra.mxu0 %v3581
    %5621 = vmatprep.subr.bf16.mxu0 %v3598
    %5622 = vmatpush1.bf16.msra.mxu0 %v3597
    %5623 = vmatprep.subr.bf16.mxu0 %v3614
    %5624 = vmatpush1.bf16.msra.mxu0 %v3613
    %5625 = vmatprep.mubr.bf16.mxu0 %v139
    %5626 = vmatmul.mubr.bf16.gmra.mrb[0].mxu0 %v138
    %v5627 = vpop.f32.mrb[0].mxu0
    %v5628 = vadd.f32 %v968, %v5627
    %v5629 = vpop.f32.mrb[0].mxu0
    %v5630 = vadd.f32 %v972, %v5629
    %v5631 = vpop.f32.mrb[0].mxu0
    %v5632 = vpop.f32.mrb[0].mxu0
    %5633 = vdwg.mxu0
    %5634 = vmatprep.subr.bf16.mxu0 %v3630
    %5635 = vmatpush1.bf16.msra.mxu0 %v3629
    %5636 = vmatprep.subr.bf16.mxu0 %v3646
    %5637 = vmatpush1.bf16.msra.mxu0 %v3645
    %5638 = vmatprep.subr.bf16.mxu0 %v3662
    %5639 = vmatpush1.bf16.msra.mxu0 %v3661
    %5640 = vmatprep.subr.bf16.mxu0 %v3678
    %5641 = vmatpush1.bf16.msra.mxu0 %v3677
    %5642 = vmatprep.subr.bf16.mxu0 %v3694
    %5643 = vmatpush1.bf16.msra.mxu0 %v3693
    %5644 = vmatprep.subr.bf16.mxu0 %v3710
    %5645 = vmatpush1.bf16.msra.mxu0 %v3709
    %5646 = vmatprep.subr.bf16.mxu0 %v3726
    %5647 = vmatpush1.bf16.msra.mxu0 %v3725
    %5648 = vmatprep.subr.bf16.mxu0 %v3742
    %5649 = vmatpush1.bf16.msra.mxu0 %v3741
    %5650 = vmatprep.subr.bf16.mxu0 %v3758
    %5651 = vmatpush1.bf16.msra.mxu0 %v3757
    %5652 = vmatprep.subr.bf16.mxu0 %v3774
    %5653 = vmatpush1.bf16.msra.mxu0 %v3773
    %5654 = vmatprep.subr.bf16.mxu0 %v3790
    %5655 = vmatpush1.bf16.msra.mxu0 %v3789
    %5656 = vmatprep.subr.bf16.mxu0 %v3806
    %5657 = vmatpush1.bf16.msra.mxu0 %v3805
    %5658 = vmatprep.subr.bf16.mxu0 %v3822
    %5659 = vmatpush1.bf16.msra.mxu0 %v3821
    %5660 = vmatprep.subr.bf16.mxu0 %v3838
    %5661 = vmatpush1.bf16.msra.mxu0 %v3837
    %5662 = vmatprep.subr.bf16.mxu0 %v3854
    %5663 = vmatpush1.bf16.msra.mxu0 %v3853
    %5664 = vmatprep.subr.bf16.mxu0 %v3870
    %5665 = vmatpush1.bf16.msra.mxu0 %v3869
    %5666 = vmatprep.mubr.bf16.mxu0 %v141
    %5667 = vmatmul.mubr.bf16.gmra.mrb[0].mxu0 %v140
    %v5668 = vpop.f32.mrb[0].mxu0
    %v5669 = vadd.f32 %v5628, %v5668
    %v5670 = vpop.f32.mrb[0].mxu0
    %v5671 = vadd.f32 %v5630, %v5670
    %v5672 = vpop.f32.mrb[0].mxu0
    %v5673 = vpop.f32.mrb[0].mxu0
    %5674 = vdwg.mxu0
    %5675 = vmatprep.subr.bf16.mxu0 %v3886
    %5676 = vmatpush1.bf16.msra.mxu0 %v3885
    %5677 = vmatprep.subr.bf16.mxu0 %v3902
    %5678 = vmatpush1.bf16.msra.mxu0 %v3901
    %5679 = vmatprep.subr.bf16.mxu0 %v3918
    %5680 = vmatpush1.bf16.msra.mxu0 %v3917
    %5681 = vmatprep.subr.bf16.mxu0 %v3934
    %5682 = vmatpush1.bf16.msra.mxu0 %v3933
    %5683 = vmatprep.subr.bf16.mxu0 %v3950
    %5684 = vmatpush1.bf16.msra.mxu0 %v3949
    %5685 = vmatprep.subr.bf16.mxu0 %v3966
    %5686 = vmatpush1.bf16.msra.mxu0 %v3965
    %5687 = vmatprep.subr.bf16.mxu0 %v3982
    %5688 = vmatpush1.bf16.msra.mxu0 %v3981
    %5689 = vmatprep.subr.bf16.mxu0 %v3998
    %5690 = vmatpush1.bf16.msra.mxu0 %v3997
    %5691 = vmatprep.subr.bf16.mxu0 %v4014
    %5692 = vmatpush1.bf16.msra.mxu0 %v4013
    %5693 = vmatprep.subr.bf16.mxu0 %v4030
    %5694 = vmatpush1.bf16.msra.mxu0 %v4029
    %5695 = vmatprep.subr.bf16.mxu0 %v4046
    %5696 = vmatpush1.bf16.msra.mxu0 %v4045
    %5697 = vmatprep.subr.bf16.mxu0 %v4062
    %5698 = vmatpush1.bf16.msra.mxu0 %v4061
    %5699 = vmatprep.subr.bf16.mxu0 %v4078
    %5700 = vmatpush1.bf16.msra.mxu0 %v4077
    %5701 = vmatprep.subr.bf16.mxu0 %v4094
    %5702 = vmatpush1.bf16.msra.mxu0 %v4093
    %5703 = vmatprep.subr.bf16.mxu0 %v4110
    %5704 = vmatpush1.bf16.msra.mxu0 %v4109
    %5705 = vmatprep.subr.bf16.mxu0 %v4126
    %5706 = vmatpush1.bf16.msra.mxu0 %v4125
    %5707 = vmatprep.mubr.bf16.mxu0 %v143
    %5708 = vmatmul.mubr.bf16.gmra.mrb[0].mxu0 %v142
    %v5709 = vpop.f32.mrb[0].mxu0
    %v5710 = vadd.f32 %v5669, %v5709
    %v5711 = vpop.f32.mrb[0].mxu0
    %v5712 = vadd.f32 %v5671, %v5711
    %v5713 = vpop.f32.mrb[0].mxu0
    %v5714 = vpop.f32.mrb[0].mxu0
    %5715 = vdwg.mxu0
    %5716 = vmatprep.subr.bf16.mxu0 %v4142
    %5717 = vmatpush1.bf16.msra.mxu0 %v4141
    %5718 = vmatprep.subr.bf16.mxu0 0
    %5719 = vmatpush1.bf16.msra.mxu0 0
    %5720 = vmatprep.subr.bf16.mxu0 0
    %5721 = vmatpush1.bf16.msra.mxu0 0
    %5722 = vmatprep.subr.bf16.mxu0 0
    %5723 = vmatpush1.bf16.msra.mxu0 0
    %5724 = vmatprep.subr.bf16.mxu0 0
    %5725 = vmatpush1.bf16.msra.mxu0 0
    %5726 = vmatprep.subr.bf16.mxu0 0
    %5727 = vmatpush1.bf16.msra.mxu0 0
    %5728 = vmatprep.subr.bf16.mxu0 0
    %5729 = vmatpush1.bf16.msra.mxu0 0
    %5730 = vmatprep.subr.bf16.mxu0 0
    %5731 = vmatpush1.bf16.msra.mxu0 0
    %5732 = vmatprep.subr.bf16.mxu0 0
    %5733 = vmatpush1.bf16.msra.mxu0 0
    %5734 = vmatprep.subr.bf16.mxu0 0
    %5735 = vmatpush1.bf16.msra.mxu0 0
    %5736 = vmatprep.subr.bf16.mxu0 0
    %5737 = vmatpush1.bf16.msra.mxu0 0
    %5738 = vmatprep.subr.bf16.mxu0 0
    %5739 = vmatpush1.bf16.msra.mxu0 0
    %5740 = vmatprep.subr.bf16.mxu0 0
    %5741 = vmatpush1.bf16.msra.mxu0 0
    %5742 = vmatprep.subr.bf16.mxu0 0
    %5743 = vmatpush1.bf16.msra.mxu0 0
    %5744 = vmatprep.subr.bf16.mxu0 0
    %5745 = vmatpush1.bf16.msra.mxu0 0
    %5746 = vmatprep.subr.bf16.mxu0 0
    %5747 = vmatpush1.bf16.msra.mxu0 0
    %5748 = vmatprep.mubr.bf16.mxu0 0
    %5749 = vmatmul.mubr.bf16.gmra.mrb[0].mxu0 %v4935
    %v5750 = vpop.f32.mrb[0].mxu0
    %v5751 = vadd.f32 %v5710, %v5750
    %v5752 = vpop.f32.mrb[0].mxu0
    %v5753 = vadd.f32 %v5712, %v5752
    %v5754 = vpop.f32.mrb[0].mxu0
    %v5755 = vpop.f32.mrb[0].mxu0
    %5756 = vdwg.mxu0
    %5757 = vmatprep.subr.bf16.mxu0 %v3376
    %5758 = vmatpush1.bf16.msra.mxu0 %v3375
    %5759 = vmatprep.subr.bf16.mxu0 %v3392
    %5760 = vmatpush1.bf16.msra.mxu0 %v3391
    %5761 = vmatprep.subr.bf16.mxu0 %v3408
    %5762 = vmatpush1.bf16.msra.mxu0 %v3407
    %5763 = vmatprep.subr.bf16.mxu0 %v3424
    %5764 = vmatpush1.bf16.msra.mxu0 %v3423
    %5765 = vmatprep.subr.bf16.mxu0 %v3440
    %5766 = vmatpush1.bf16.msra.mxu0 %v3439
    %5767 = vmatprep.subr.bf16.mxu0 %v3456
    %5768 = vmatpush1.bf16.msra.mxu0 %v3455
    %5769 = vmatprep.subr.bf16.mxu0 %v3472
    %5770 = vmatpush1.bf16.msra.mxu0 %v3471
    %5771 = vmatprep.subr.bf16.mxu0 %v3488
    %5772 = vmatpush1.bf16.msra.mxu0 %v3487
    %5773 = vmatprep.subr.bf16.mxu0 %v3504
    %5774 = vmatpush1.bf16.msra.mxu0 %v3503
    %5775 = vmatprep.subr.bf16.mxu0 %v3520
    %5776 = vmatpush1.bf16.msra.mxu0 %v3519
    %5777 = vmatprep.subr.bf16.mxu0 %v3536
    %5778 = vmatpush1.bf16.msra.mxu0 %v3535
    %5779 = vmatprep.subr.bf16.mxu0 %v3552
    %5780 = vmatpush1.bf16.msra.mxu0 %v3551
    %5781 = vmatprep.subr.bf16.mxu0 %v3568
    %5782 = vmatpush1.bf16.msra.mxu0 %v3567
    %5783 = vmatprep.subr.bf16.mxu0 %v3584
    %5784 = vmatpush1.bf16.msra.mxu0 %v3583
    %5785 = vmatprep.subr.bf16.mxu0 %v3600
    %5786 = vmatpush1.bf16.msra.mxu0 %v3599
    %5787 = vmatprep.subr.bf16.mxu0 %v3616
    %5788 = vmatpush1.bf16.msra.mxu0 %v3615
    %5789 = vmatprep.mubr.bf16.mxu0 %v139
    %5790 = vmatmul.mubr.bf16.gmra.mrb[0].mxu0 %v138
    %v5791 = vpop.f32.mrb[0].mxu0
    %v5792 = vadd.f32 %v976, %v5791
    %v5793 = vpop.f32.mrb[0].mxu0
    %v5794 = vadd.f32 %v980, %v5793
    %v5795 = vpop.f32.mrb[0].mxu0
    %v5796 = vpop.f32.mrb[0].mxu0
    %5797 = vdwg.mxu0
    %5798 = vmatprep.subr.bf16.mxu0 %v3632
    %5799 = vmatpush1.bf16.msra.mxu0 %v3631
    %5800 = vmatprep.subr.bf16.mxu0 %v3648
    %5801 = vmatpush1.bf16.msra.mxu0 %v3647
    %5802 = vmatprep.subr.bf16.mxu0 %v3664
    %5803 = vmatpush1.bf16.msra.mxu0 %v3663
    %5804 = vmatprep.subr.bf16.mxu0 %v3680
    %5805 = vmatpush1.bf16.msra.mxu0 %v3679
    %5806 = vmatprep.subr.bf16.mxu0 %v3696
    %5807 = vmatpush1.bf16.msra.mxu0 %v3695
    %5808 = vmatprep.subr.bf16.mxu0 %v3712
    %5809 = vmatpush1.bf16.msra.mxu0 %v3711
    %5810 = vmatprep.subr.bf16.mxu0 %v3728
    %5811 = vmatpush1.bf16.msra.mxu0 %v3727
    %5812 = vmatprep.subr.bf16.mxu0 %v3744
    %5813 = vmatpush1.bf16.msra.mxu0 %v3743
    %5814 = vmatprep.subr.bf16.mxu0 %v3760
    %5815 = vmatpush1.bf16.msra.mxu0 %v3759
    %5816 = vmatprep.subr.bf16.mxu0 %v3776
    %5817 = vmatpush1.bf16.msra.mxu0 %v3775
    %5818 = vmatprep.subr.bf16.mxu0 %v3792
    %5819 = vmatpush1.bf16.msra.mxu0 %v3791
    %5820 = vmatprep.subr.bf16.mxu0 %v3808
    %5821 = vmatpush1.bf16.msra.mxu0 %v3807
    %5822 = vmatprep.subr.bf16.mxu0 %v3824
    %5823 = vmatpush1.bf16.msra.mxu0 %v3823
    %5824 = vmatprep.subr.bf16.mxu0 %v3840
    %5825 = vmatpush1.bf16.msra.mxu0 %v3839
    %5826 = vmatprep.subr.bf16.mxu0 %v3856
    %5827 = vmatpush1.bf16.msra.mxu0 %v3855
    %5828 = vmatprep.subr.bf16.mxu0 %v3872
    %5829 = vmatpush1.bf16.msra.mxu0 %v3871
    %5830 = vmatprep.mubr.bf16.mxu0 %v141
    %5831 = vmatmul.mubr.bf16.gmra.mrb[0].mxu0 %v140
    %v5832 = vpop.f32.mrb[0].mxu0
    %v5833 = vadd.f32 %v5792, %v5832
    %v5834 = vpop.f32.mrb[0].mxu0
    %v5835 = vadd.f32 %v5794, %v5834
    %v5836 = vpop.f32.mrb[0].mxu0
    %v5837 = vpop.f32.mrb[0].mxu0
    %5838 = vdwg.mxu0
    %5839 = vmatprep.subr.bf16.mxu0 %v3888
    %5840 = vmatpush1.bf16.msra.mxu0 %v3887
    %5841 = vmatprep.subr.bf16.mxu0 %v3904
    %5842 = vmatpush1.bf16.msra.mxu0 %v3903
    %5843 = vmatprep.subr.bf16.mxu0 %v3920
    %5844 = vmatpush1.bf16.msra.mxu0 %v3919
    %5845 = vmatprep.subr.bf16.mxu0 %v3936
    %5846 = vmatpush1.bf16.msra.mxu0 %v3935
    %5847 = vmatprep.subr.bf16.mxu0 %v3952
    %5848 = vmatpush1.bf16.msra.mxu0 %v3951
    %5849 = vmatprep.subr.bf16.mxu0 %v3968
    %5850 = vmatpush1.bf16.msra.mxu0 %v3967
    %5851 = vmatprep.subr.bf16.mxu0 %v3984
    %5852 = vmatpush1.bf16.msra.mxu0 %v3983
    %5853 = vmatprep.subr.bf16.mxu0 %v4000
    %5854 = vmatpush1.bf16.msra.mxu0 %v3999
    %5855 = vmatprep.subr.bf16.mxu0 %v4016
    %5856 = vmatpush1.bf16.msra.mxu0 %v4015
    %5857 = vmatprep.subr.bf16.mxu0 %v4032
    %5858 = vmatpush1.bf16.msra.mxu0 %v4031
    %5859 = vmatprep.subr.bf16.mxu0 %v4048
    %5860 = vmatpush1.bf16.msra.mxu0 %v4047
    %5861 = vmatprep.subr.bf16.mxu0 %v4064
    %5862 = vmatpush1.bf16.msra.mxu0 %v4063
    %5863 = vmatprep.subr.bf16.mxu0 %v4080
    %5864 = vmatpush1.bf16.msra.mxu0 %v4079
    %5865 = vmatprep.subr.bf16.mxu0 %v4096
    %5866 = vmatpush1.bf16.msra.mxu0 %v4095
    %5867 = vmatprep.subr.bf16.mxu0 %v4112
    %5868 = vmatpush1.bf16.msra.mxu0 %v4111
    %5869 = vmatprep.subr.bf16.mxu0 %v4128
    %5870 = vmatpush1.bf16.msra.mxu0 %v4127
    %5871 = vmatprep.mubr.bf16.mxu0 %v143
    %5872 = vmatmul.mubr.bf16.gmra.mrb[0].mxu0 %v142
    %v5873 = vpop.f32.mrb[0].mxu0
    %v5874 = vadd.f32 %v5833, %v5873
    %v5875 = vpop.f32.mrb[0].mxu0
    %v5876 = vadd.f32 %v5835, %v5875
    %v5877 = vpop.f32.mrb[0].mxu0
    %v5878 = vpop.f32.mrb[0].mxu0
    %5879 = vdwg.mxu0
    %5880 = vmatprep.subr.bf16.mxu0 %v4144
    %5881 = vmatpush1.bf16.msra.mxu0 %v4143
    %5882 = vmatprep.subr.bf16.mxu0 0
    %5883 = vmatpush1.bf16.msra.mxu0 0
    %5884 = vmatprep.subr.bf16.mxu0 0
    %5885 = vmatpush1.bf16.msra.mxu0 0
    %5886 = vmatprep.subr.bf16.mxu0 0
    %5887 = vmatpush1.bf16.msra.mxu0 0
    %5888 = vmatprep.subr.bf16.mxu0 0
    %5889 = vmatpush1.bf16.msra.mxu0 0
    %5890 = vmatprep.subr.bf16.mxu0 0
    %5891 = vmatpush1.bf16.msra.mxu0 0
    %5892 = vmatprep.subr.bf16.mxu0 0
    %5893 = vmatpush1.bf16.msra.mxu0 0
    %5894 = vmatprep.subr.bf16.mxu0 0
    %5895 = vmatpush1.bf16.msra.mxu0 0
    %5896 = vmatprep.subr.bf16.mxu0 0
    %5897 = vmatpush1.bf16.msra.mxu0 0
    %5898 = vmatprep.subr.bf16.mxu0 0
    %5899 = vmatpush1.bf16.msra.mxu0 0
    %5900 = vmatprep.subr.bf16.mxu0 0
    %5901 = vmatpush1.bf16.msra.mxu0 0
    %5902 = vmatprep.subr.bf16.mxu0 0
    %5903 = vmatpush1.bf16.msra.mxu0 0
    %5904 = vmatprep.subr.bf16.mxu0 0
    %5905 = vmatpush1.bf16.msra.mxu0 0
    %5906 = vmatprep.subr.bf16.mxu0 0
    %5907 = vmatpush1.bf16.msra.mxu0 0
    %5908 = vmatprep.subr.bf16.mxu0 0
    %5909 = vmatpush1.bf16.msra.mxu0 0
    %5910 = vmatprep.subr.bf16.mxu0 0
    %5911 = vmatpush1.bf16.msra.mxu0 0
    %5912 = vmatprep.mubr.bf16.mxu0 0
    %5913 = vmatmul.mubr.bf16.gmra.mrb[0].mxu0 %v4935
    %v5914 = vpop.f32.mrb[0].mxu0
    %v5915 = vadd.f32 %v5874, %v5914
    %v5916 = vpop.f32.mrb[0].mxu0
    %v5917 = vadd.f32 %v5876, %v5916
    %v5918 = vpop.f32.mrb[0].mxu0
    %v5919 = vpop.f32.mrb[0].mxu0
    %5920 = vdwg.mxu0
    %5921 = vmatprep.subr.bf16.mxu0 %v3378
    %5922 = vmatpush1.bf16.msra.mxu0 %v3377
    %5923 = vmatprep.subr.bf16.mxu0 %v3394
    %5924 = vmatpush1.bf16.msra.mxu0 %v3393
    %5925 = vmatprep.subr.bf16.mxu0 %v3410
    %5926 = vmatpush1.bf16.msra.mxu0 %v3409
    %5927 = vmatprep.subr.bf16.mxu0 %v3426
    %5928 = vmatpush1.bf16.msra.mxu0 %v3425
    %5929 = vmatprep.subr.bf16.mxu0 %v3442
    %5930 = vmatpush1.bf16.msra.mxu0 %v3441
    %5931 = vmatprep.subr.bf16.mxu0 %v3458
    %5932 = vmatpush1.bf16.msra.mxu0 %v3457
    %5933 = vmatprep.subr.bf16.mxu0 %v3474
    %5934 = vmatpush1.bf16.msra.mxu0 %v3473
    %5935 = vmatprep.subr.bf16.mxu0 %v3490
    %5936 = vmatpush1.bf16.msra.mxu0 %v3489
    %5937 = vmatprep.subr.bf16.mxu0 %v3506
    %5938 = vmatpush1.bf16.msra.mxu0 %v3505
    %5939 = vmatprep.subr.bf16.mxu0 %v3522
    %5940 = vmatpush1.bf16.msra.mxu0 %v3521
    %5941 = vmatprep.subr.bf16.mxu0 %v3538
    %5942 = vmatpush1.bf16.msra.mxu0 %v3537
    %5943 = vmatprep.subr.bf16.mxu0 %v3554
    %5944 = vmatpush1.bf16.msra.mxu0 %v3553
    %5945 = vmatprep.subr.bf16.mxu0 %v3570
    %5946 = vmatpush1.bf16.msra.mxu0 %v3569
    %5947 = vmatprep.subr.bf16.mxu0 %v3586
    %5948 = vmatpush1.bf16.msra.mxu0 %v3585
    %5949 = vmatprep.subr.bf16.mxu0 %v3602
    %5950 = vmatpush1.bf16.msra.mxu0 %v3601
    %5951 = vmatprep.subr.bf16.mxu0 %v3618
    %5952 = vmatpush1.bf16.msra.mxu0 %v3617
    %5953 = vmatprep.mubr.bf16.mxu0 %v139
    %5954 = vmatmul.mubr.bf16.gmra.mrb[0].mxu0 %v138
    %v5955 = vpop.f32.mrb[0].mxu0
    %v5956 = vadd.f32 %v984, %v5955
    %v5957 = vpop.f32.mrb[0].mxu0
    %v5958 = vadd.f32 %v988, %v5957
    %v5959 = vpop.f32.mrb[0].mxu0
    %v5960 = vpop.f32.mrb[0].mxu0
    %5961 = vdwg.mxu0
    %5962 = vmatprep.subr.bf16.mxu0 %v3634
    %5963 = vmatpush1.bf16.msra.mxu0 %v3633
    %5964 = vmatprep.subr.bf16.mxu0 %v3650
    %5965 = vmatpush1.bf16.msra.mxu0 %v3649
    %5966 = vmatprep.subr.bf16.mxu0 %v3666
    %5967 = vmatpush1.bf16.msra.mxu0 %v3665
    %5968 = vmatprep.subr.bf16.mxu0 %v3682
    %5969 = vmatpush1.bf16.msra.mxu0 %v3681
    %5970 = vmatprep.subr.bf16.mxu0 %v3698
    %5971 = vmatpush1.bf16.msra.mxu0 %v3697
    %5972 = vmatprep.subr.bf16.mxu0 %v3714
    %5973 = vmatpush1.bf16.msra.mxu0 %v3713
    %5974 = vmatprep.subr.bf16.mxu0 %v3730
    %5975 = vmatpush1.bf16.msra.mxu0 %v3729
    %5976 = vmatprep.subr.bf16.mxu0 %v3746
    %5977 = vmatpush1.bf16.msra.mxu0 %v3745
    %5978 = vmatprep.subr.bf16.mxu0 %v3762
    %5979 = vmatpush1.bf16.msra.mxu0 %v3761
    %5980 = vmatprep.subr.bf16.mxu0 %v3778
    %5981 = vmatpush1.bf16.msra.mxu0 %v3777
    %5982 = vmatprep.subr.bf16.mxu0 %v3794
    %5983 = vmatpush1.bf16.msra.mxu0 %v3793
    %5984 = vmatprep.subr.bf16.mxu0 %v3810
    %5985 = vmatpush1.bf16.msra.mxu0 %v3809
    %5986 = vmatprep.subr.bf16.mxu0 %v3826
    %5987 = vmatpush1.bf16.msra.mxu0 %v3825
    %5988 = vmatprep.subr.bf16.mxu0 %v3842
    %5989 = vmatpush1.bf16.msra.mxu0 %v3841
    %5990 = vmatprep.subr.bf16.mxu0 %v3858
    %5991 = vmatpush1.bf16.msra.mxu0 %v3857
    %5992 = vmatprep.subr.bf16.mxu0 %v3874
    %5993 = vmatpush1.bf16.msra.mxu0 %v3873
    %5994 = vmatprep.mubr.bf16.mxu0 %v141
    %5995 = vmatmul.mubr.bf16.gmra.mrb[0].mxu0 %v140
    %v5996 = vpop.f32.mrb[0].mxu0
    %v5997 = vadd.f32 %v5956, %v5996
    %v5998 = vpop.f32.mrb[0].mxu0
    %v5999 = vadd.f32 %v5958, %v5998
    %v6000 = vpop.f32.mrb[0].mxu0
    %v6001 = vpop.f32.mrb[0].mxu0
    %6002 = vdwg.mxu0
    %6003 = vmatprep.subr.bf16.mxu0 %v3890
    %6004 = vmatpush1.bf16.msra.mxu0 %v3889
    %6005 = vmatprep.subr.bf16.mxu0 %v3906
    %6006 = vmatpush1.bf16.msra.mxu0 %v3905
    %6007 = vmatprep.subr.bf16.mxu0 %v3922
    %6008 = vmatpush1.bf16.msra.mxu0 %v3921
    %6009 = vmatprep.subr.bf16.mxu0 %v3938
    %6010 = vmatpush1.bf16.msra.mxu0 %v3937
    %6011 = vmatprep.subr.bf16.mxu0 %v3954
    %6012 = vmatpush1.bf16.msra.mxu0 %v3953
    %6013 = vmatprep.subr.bf16.mxu0 %v3970
    %6014 = vmatpush1.bf16.msra.mxu0 %v3969
    %6015 = vmatprep.subr.bf16.mxu0 %v3986
    %6016 = vmatpush1.bf16.msra.mxu0 %v3985
    %6017 = vmatprep.subr.bf16.mxu0 %v4002
    %6018 = vmatpush1.bf16.msra.mxu0 %v4001
    %6019 = vmatprep.subr.bf16.mxu0 %v4018
    %6020 = vmatpush1.bf16.msra.mxu0 %v4017
    %6021 = vmatprep.subr.bf16.mxu0 %v4034
    %6022 = vmatpush1.bf16.msra.mxu0 %v4033
    %6023 = vmatprep.subr.bf16.mxu0 %v4050
    %6024 = vmatpush1.bf16.msra.mxu0 %v4049
    %6025 = vmatprep.subr.bf16.mxu0 %v4066
    %6026 = vmatpush1.bf16.msra.mxu0 %v4065
    %6027 = vmatprep.subr.bf16.mxu0 %v4082
    %6028 = vmatpush1.bf16.msra.mxu0 %v4081
    %6029 = vmatprep.subr.bf16.mxu0 %v4098
    %6030 = vmatpush1.bf16.msra.mxu0 %v4097
    %6031 = vmatprep.subr.bf16.mxu0 %v4114
    %6032 = vmatpush1.bf16.msra.mxu0 %v4113
    %6033 = vmatprep.subr.bf16.mxu0 %v4130
    %6034 = vmatpush1.bf16.msra.mxu0 %v4129
    %6035 = vmatprep.mubr.bf16.mxu0 %v143
    %6036 = vmatmul.mubr.bf16.gmra.mrb[0].mxu0 %v142
    %v6037 = vpop.f32.mrb[0].mxu0
    %v6038 = vadd.f32 %v5997, %v6037
    %v6039 = vpop.f32.mrb[0].mxu0
    %v6040 = vadd.f32 %v5999, %v6039
    %v6041 = vpop.f32.mrb[0].mxu0
    %v6042 = vpop.f32.mrb[0].mxu0
    %6043 = vdwg.mxu0
    %6044 = vmatprep.subr.bf16.mxu0 %v4146
    %6045 = vmatpush1.bf16.msra.mxu0 %v4145
    %6046 = vmatprep.subr.bf16.mxu0 0
    %6047 = vmatpush1.bf16.msra.mxu0 0
    %6048 = vmatprep.subr.bf16.mxu0 0
    %6049 = vmatpush1.bf16.msra.mxu0 0
    %6050 = vmatprep.subr.bf16.mxu0 0
    %6051 = vmatpush1.bf16.msra.mxu0 0
    %6052 = vmatprep.subr.bf16.mxu0 0
    %6053 = vmatpush1.bf16.msra.mxu0 0
    %6054 = vmatprep.subr.bf16.mxu0 0
    %6055 = vmatpush1.bf16.msra.mxu0 0
    %6056 = vmatprep.subr.bf16.mxu0 0
    %6057 = vmatpush1.bf16.msra.mxu0 0
    %6058 = vmatprep.subr.bf16.mxu0 0
    %6059 = vmatpush1.bf16.msra.mxu0 0
    %6060 = vmatprep.subr.bf16.mxu0 0
    %6061 = vmatpush1.bf16.msra.mxu0 0
    %6062 = vmatprep.subr.bf16.mxu0 0
    %6063 = vmatpush1.bf16.msra.mxu0 0
    %6064 = vmatprep.subr.bf16.mxu0 0
    %6065 = vmatpush1.bf16.msra.mxu0 0
    %6066 = vmatprep.subr.bf16.mxu0 0
    %6067 = vmatpush1.bf16.msra.mxu0 0
    %6068 = vmatprep.subr.bf16.mxu0 0
    %6069 = vmatpush1.bf16.msra.mxu0 0
    %6070 = vmatprep.subr.bf16.mxu0 0
    %6071 = vmatpush1.bf16.msra.mxu0 0
    %6072 = vmatprep.subr.bf16.mxu0 0
    %6073 = vmatpush1.bf16.msra.mxu0 0
    %6074 = vmatprep.subr.bf16.mxu0 0
    %6075 = vmatpush1.bf16.msra.mxu0 0
    %6076 = vmatprep.mubr.bf16.mxu0 0
    %6077 = vmatmul.mubr.bf16.gmra.mrb[0].mxu0 %v4935
    %v6078 = vpop.f32.mrb[0].mxu0
    %v6079 = vadd.f32 %v6038, %v6078
    %v6080 = vpop.f32.mrb[0].mxu0
    %v6081 = vadd.f32 %v6040, %v6080
    %v6082 = vpop.f32.mrb[0].mxu0
    %v6083 = vpop.f32.mrb[0].mxu0
    %6084 = vdwg.mxu0
    %6085 = vmatprep.subr.bf16.mxu0 %v3380
    %6086 = vmatpush1.bf16.msra.mxu0 %v3379
    %6087 = vmatprep.subr.bf16.mxu0 %v3396
    %6088 = vmatpush1.bf16.msra.mxu0 %v3395
    %6089 = vmatprep.subr.bf16.mxu0 %v3412
    %6090 = vmatpush1.bf16.msra.mxu0 %v3411
    %6091 = vmatprep.subr.bf16.mxu0 %v3428
    %6092 = vmatpush1.bf16.msra.mxu0 %v3427
    %6093 = vmatprep.subr.bf16.mxu0 %v3444
    %6094 = vmatpush1.bf16.msra.mxu0 %v3443
    %6095 = vmatprep.subr.bf16.mxu0 %v3460
    %6096 = vmatpush1.bf16.msra.mxu0 %v3459
    %6097 = vmatprep.subr.bf16.mxu0 %v3476
    %6098 = vmatpush1.bf16.msra.mxu0 %v3475
    %6099 = vmatprep.subr.bf16.mxu0 %v3492
    %6100 = vmatpush1.bf16.msra.mxu0 %v3491
    %6101 = vmatprep.subr.bf16.mxu0 %v3508
    %6102 = vmatpush1.bf16.msra.mxu0 %v3507
    %6103 = vmatprep.subr.bf16.mxu0 %v3524
    %6104 = vmatpush1.bf16.msra.mxu0 %v3523
    %6105 = vmatprep.subr.bf16.mxu0 %v3540
    %6106 = vmatpush1.bf16.msra.mxu0 %v3539
    %6107 = vmatprep.subr.bf16.mxu0 %v3556
    %6108 = vmatpush1.bf16.msra.mxu0 %v3555
    %6109 = vmatprep.subr.bf16.mxu0 %v3572
    %6110 = vmatpush1.bf16.msra.mxu0 %v3571
    %6111 = vmatprep.subr.bf16.mxu0 %v3588
    %6112 = vmatpush1.bf16.msra.mxu0 %v3587
    %6113 = vmatprep.subr.bf16.mxu0 %v3604
    %6114 = vmatpush1.bf16.msra.mxu0 %v3603
    %6115 = vmatprep.subr.bf16.mxu0 %v3620
    %6116 = vmatpush1.bf16.msra.mxu0 %v3619
    %6117 = vmatprep.mubr.bf16.mxu0 %v139
    %6118 = vmatmul.mubr.bf16.gmra.mrb[0].mxu0 %v138
    %v6119 = vpop.f32.mrb[0].mxu0
    %v6120 = vadd.f32 %v992, %v6119
    %v6121 = vpop.f32.mrb[0].mxu0
    %v6122 = vadd.f32 %v996, %v6121
    %v6123 = vpop.f32.mrb[0].mxu0
    %v6124 = vpop.f32.mrb[0].mxu0
    %6125 = vdwg.mxu0
    %6126 = vmatprep.subr.bf16.mxu0 %v3636
    %6127 = vmatpush1.bf16.msra.mxu0 %v3635
    %6128 = vmatprep.subr.bf16.mxu0 %v3652
    %6129 = vmatpush1.bf16.msra.mxu0 %v3651
    %6130 = vmatprep.subr.bf16.mxu0 %v3668
    %6131 = vmatpush1.bf16.msra.mxu0 %v3667
    %6132 = vmatprep.subr.bf16.mxu0 %v3684
    %6133 = vmatpush1.bf16.msra.mxu0 %v3683
    %6134 = vmatprep.subr.bf16.mxu0 %v3700
    %6135 = vmatpush1.bf16.msra.mxu0 %v3699
    %6136 = vmatprep.subr.bf16.mxu0 %v3716
    %6137 = vmatpush1.bf16.msra.mxu0 %v3715
    %6138 = vmatprep.subr.bf16.mxu0 %v3732
    %6139 = vmatpush1.bf16.msra.mxu0 %v3731
    %6140 = vmatprep.subr.bf16.mxu0 %v3748
    %6141 = vmatpush1.bf16.msra.mxu0 %v3747
    %6142 = vmatprep.subr.bf16.mxu0 %v3764
    %6143 = vmatpush1.bf16.msra.mxu0 %v3763
    %6144 = vmatprep.subr.bf16.mxu0 %v3780
    %6145 = vmatpush1.bf16.msra.mxu0 %v3779
    %6146 = vmatprep.subr.bf16.mxu0 %v3796
    %6147 = vmatpush1.bf16.msra.mxu0 %v3795
    %6148 = vmatprep.subr.bf16.mxu0 %v3812
    %6149 = vmatpush1.bf16.msra.mxu0 %v3811
    %6150 = vmatprep.subr.bf16.mxu0 %v3828
    %6151 = vmatpush1.bf16.msra.mxu0 %v3827
    %6152 = vmatprep.subr.bf16.mxu0 %v3844
    %6153 = vmatpush1.bf16.msra.mxu0 %v3843
    %6154 = vmatprep.subr.bf16.mxu0 %v3860
    %6155 = vmatpush1.bf16.msra.mxu0 %v3859
    %6156 = vmatprep.subr.bf16.mxu0 %v3876
    %6157 = vmatpush1.bf16.msra.mxu0 %v3875
    %6158 = vmatprep.mubr.bf16.mxu0 %v141
    %6159 = vmatmul.mubr.bf16.gmra.mrb[0].mxu0 %v140
    %v6160 = vpop.f32.mrb[0].mxu0
    %v6161 = vadd.f32 %v6120, %v6160
    %v6162 = vpop.f32.mrb[0].mxu0
    %v6163 = vadd.f32 %v6122, %v6162
    %v6164 = vpop.f32.mrb[0].mxu0
    %v6165 = vpop.f32.mrb[0].mxu0
    %6166 = vdwg.mxu0
    %6167 = vmatprep.subr.bf16.mxu0 %v3892
    %6168 = vmatpush1.bf16.msra.mxu0 %v3891
    %6169 = vmatprep.subr.bf16.mxu0 %v3908
    %6170 = vmatpush1.bf16.msra.mxu0 %v3907
    %6171 = vmatprep.subr.bf16.mxu0 %v3924
    %6172 = vmatpush1.bf16.msra.mxu0 %v3923
    %6173 = vmatprep.subr.bf16.mxu0 %v3940
    %6174 = vmatpush1.bf16.msra.mxu0 %v3939
    %6175 = vmatprep.subr.bf16.mxu0 %v3956
    %6176 = vmatpush1.bf16.msra.mxu0 %v3955
    %6177 = vmatprep.subr.bf16.mxu0 %v3972
    %6178 = vmatpush1.bf16.msra.mxu0 %v3971
    %6179 = vmatprep.subr.bf16.mxu0 %v3988
    %6180 = vmatpush1.bf16.msra.mxu0 %v3987
    %6181 = vmatprep.subr.bf16.mxu0 %v4004
    %6182 = vmatpush1.bf16.msra.mxu0 %v4003
    %6183 = vmatprep.subr.bf16.mxu0 %v4020
    %6184 = vmatpush1.bf16.msra.mxu0 %v4019
    %6185 = vmatprep.subr.bf16.mxu0 %v4036
    %6186 = vmatpush1.bf16.msra.mxu0 %v4035
    %6187 = vmatprep.subr.bf16.mxu0 %v4052
    %6188 = vmatpush1.bf16.msra.mxu0 %v4051
    %6189 = vmatprep.subr.bf16.mxu0 %v4068
    %6190 = vmatpush1.bf16.msra.mxu0 %v4067
    %6191 = vmatprep.subr.bf16.mxu0 %v4084
    %6192 = vmatpush1.bf16.msra.mxu0 %v4083
    %6193 = vmatprep.subr.bf16.mxu0 %v4100
    %6194 = vmatpush1.bf16.msra.mxu0 %v4099
    %6195 = vmatprep.subr.bf16.mxu0 %v4116
    %6196 = vmatpush1.bf16.msra.mxu0 %v4115
    %6197 = vmatprep.subr.bf16.mxu0 %v4132
    %6198 = vmatpush1.bf16.msra.mxu0 %v4131
    %6199 = vmatprep.mubr.bf16.mxu0 %v143
    %6200 = vmatmul.mubr.bf16.gmra.mrb[0].mxu0 %v142
    %v6201 = vpop.f32.mrb[0].mxu0
    %v6202 = vadd.f32 %v6161, %v6201
    %v6203 = vpop.f32.mrb[0].mxu0
    %v6204 = vadd.f32 %v6163, %v6203
    %v6205 = vpop.f32.mrb[0].mxu0
    %v6206 = vpop.f32.mrb[0].mxu0
    %6207 = vdwg.mxu0
    %6208 = vmatprep.subr.bf16.mxu0 %v4148
    %6209 = vmatpush1.bf16.msra.mxu0 %v4147
    %6210 = vmatprep.subr.bf16.mxu0 0
    %6211 = vmatpush1.bf16.msra.mxu0 0
    %6212 = vmatprep.subr.bf16.mxu0 0
    %6213 = vmatpush1.bf16.msra.mxu0 0
    %6214 = vmatprep.subr.bf16.mxu0 0
    %6215 = vmatpush1.bf16.msra.mxu0 0
    %6216 = vmatprep.subr.bf16.mxu0 0
    %6217 = vmatpush1.bf16.msra.mxu0 0
    %6218 = vmatprep.subr.bf16.mxu0 0
    %6219 = vmatpush1.bf16.msra.mxu0 0
    %6220 = vmatprep.subr.bf16.mxu0 0
    %6221 = vmatpush1.bf16.msra.mxu0 0
    %6222 = vmatprep.subr.bf16.mxu0 0
    %6223 = vmatpush1.bf16.msra.mxu0 0
    %6224 = vmatprep.subr.bf16.mxu0 0
    %6225 = vmatpush1.bf16.msra.mxu0 0
    %6226 = vmatprep.subr.bf16.mxu0 0
    %6227 = vmatpush1.bf16.msra.mxu0 0
    %6228 = vmatprep.subr.bf16.mxu0 0
    %6229 = vmatpush1.bf16.msra.mxu0 0
    %6230 = vmatprep.subr.bf16.mxu0 0
    %6231 = vmatpush1.bf16.msra.mxu0 0
    %6232 = vmatprep.subr.bf16.mxu0 0
    %6233 = vmatpush1.bf16.msra.mxu0 0
    %6234 = vmatprep.subr.bf16.mxu0 0
    %6235 = vmatpush1.bf16.msra.mxu0 0
    %6236 = vmatprep.subr.bf16.mxu0 0
    %6237 = vmatpush1.bf16.msra.mxu0 0
    %6238 = vmatprep.subr.bf16.mxu0 0
    %6239 = vmatpush1.bf16.msra.mxu0 0
    %6240 = vmatprep.mubr.bf16.mxu0 0
    %6241 = vmatmul.mubr.bf16.gmra.mrb[0].mxu0 %v4935
    %v6242 = vpop.f32.mrb[0].mxu0
    %v6243 = vadd.f32 %v6202, %v6242
    %v6244 = vpop.f32.mrb[0].mxu0
    %v6245 = vadd.f32 %v6204, %v6244
    %v6246 = vpop.f32.mrb[0].mxu0
    %v6247 = vpop.f32.mrb[0].mxu0
    %6248 = vdwg.mxu0
    %vm6249 = vcmp.gt.f32.partialorder %v5095, 0.0
    %vm6250 = vcmp.gt.f32.partialorder %v5097, 0.0
    %vm6251 = vcmp.gt.f32.partialorder %v5259, 0.0
    %vm6252 = vcmp.gt.f32.partialorder %v5261, 0.0
    %vm6253 = vcmp.gt.f32.partialorder %v5423, 0.0
    %vm6254 = vcmp.gt.f32.partialorder %v5425, 0.0
    %vm6255 = vcmp.gt.f32.partialorder %v5587, 0.0
    %vm6256 = vcmp.gt.f32.partialorder %v5589, 0.0
    %vm6257 = vcmp.gt.f32.partialorder %v5751, 0.0
    %vm6258 = vcmp.gt.f32.partialorder %v5753, 0.0
    %vm6259 = vcmp.gt.f32.partialorder %v5915, 0.0
    %vm6260 = vcmp.gt.f32.partialorder %v5917, 0.0
    %vm6261 = vcmp.gt.f32.partialorder %v6079, 0.0
    %vm6262 = vcmp.gt.f32.partialorder %v6081, 0.0
    %vm6263 = vcmp.gt.f32.partialorder %v6243, 0.0
    %vm6264 = vcmp.gt.f32.partialorder %v6245, 0.0
    %v6265 = vmin.f32 %v5095, 0.0
    %v6266 = vmin.f32 %v5097, 0.0
    %v6267 = vmin.f32 %v5259, 0.0
    %v6268 = vmin.f32 %v5261, 0.0
    %v6269 = vmin.f32 %v5423, 0.0
    %v6270 = vmin.f32 %v5425, 0.0
    %v6271 = vmin.f32 %v5587, 0.0
    %v6272 = vmin.f32 %v5589, 0.0
    %v6273 = vmin.f32 %v5751, 0.0
    %v6274 = vmin.f32 %v5753, 0.0
    %v6275 = vmin.f32 %v5915, 0.0
    %v6276 = vmin.f32 %v5917, 0.0
    %v6277 = vmin.f32 %v6079, 0.0
    %v6278 = vmin.f32 %v6081, 0.0
    %v6279 = vmin.f32 %v6243, 0.0
    %v6280 = vmin.f32 %v6245, 0.0
    %v6281 = vmul.f32 %v6265, 1.442695
    %v6282 = vpow.pop %v6281
    %v6283 = vmul.f32 %v6266, 1.442695
    %v6284 = vpow.pop %v6283
    %v6285 = vmul.f32 %v6267, 1.442695
    %v6286 = vpow.pop %v6285
    %v6287 = vmul.f32 %v6268, 1.442695
    %v6288 = vpow.pop %v6287
    %v6289 = vmul.f32 %v6269, 1.442695
    %v6290 = vpow.pop %v6289
    %v6291 = vmul.f32 %v6270, 1.442695
    %v6292 = vpow.pop %v6291
    %v6293 = vmul.f32 %v6271, 1.442695
    %v6294 = vpow.pop %v6293
    %v6295 = vmul.f32 %v6272, 1.442695
    %v6296 = vpow.pop %v6295
    %v6297 = vmul.f32 %v6273, 1.442695
    %v6298 = vpow.pop %v6297
    %v6299 = vmul.f32 %v6274, 1.442695
    %v6300 = vpow.pop %v6299
    %v6301 = vmul.f32 %v6275, 1.442695
    %v6302 = vpow.pop %v6301
    %v6303 = vmul.f32 %v6276, 1.442695
    %v6304 = vpow.pop %v6303
    %v6305 = vmul.f32 %v6277, 1.442695
    %v6306 = vpow.pop %v6305
    %v6307 = vmul.f32 %v6278, 1.442695
    %v6308 = vpow.pop %v6307
    %v6309 = vmul.f32 %v6279, 1.442695
    %v6310 = vpow.pop %v6309
    %v6311 = vmul.f32 %v6280, 1.442695
    %v6312 = vpow.pop %v6311
    %v6313 = vsub.f32 %v6282, 1.0
    %v6314 = vsub.f32 %v6284, 1.0
    %v6315 = vsub.f32 %v6286, 1.0
    %v6316 = vsub.f32 %v6288, 1.0
    %v6317 = vsub.f32 %v6290, 1.0
    %v6318 = vsub.f32 %v6292, 1.0
    %v6319 = vsub.f32 %v6294, 1.0
    %v6320 = vsub.f32 %v6296, 1.0
    %v6321 = vsub.f32 %v6298, 1.0
    %v6322 = vsub.f32 %v6300, 1.0
    %v6323 = vsub.f32 %v6302, 1.0
    %v6324 = vsub.f32 %v6304, 1.0
    %v6325 = vsub.f32 %v6306, 1.0
    %v6326 = vsub.f32 %v6308, 1.0
    %v6327 = vsub.f32 %v6310, 1.0
    %v6328 = vsub.f32 %v6312, 1.0
    %v6329 = vsel %vm6249, %v5095, %v6313
    %v6330 = vsel %vm6250, %v5097, %v6314
    %v6331 = vsel %vm6251, %v5259, %v6315
    %v6332 = vsel %vm6252, %v5261, %v6316
    %v6333 = vsel %vm6253, %v5423, %v6317
    %v6334 = vsel %vm6254, %v5425, %v6318
    %v6335 = vsel %vm6255, %v5587, %v6319
    %v6336 = vsel %vm6256, %v5589, %v6320
    %v6337 = vsel %vm6257, %v5751, %v6321
    %v6338 = vsel %vm6258, %v5753, %v6322
    %v6339 = vsel %vm6259, %v5915, %v6323
    %v6340 = vsel %vm6260, %v5917, %v6324
    %v6341 = vsel %vm6261, %v6079, %v6325
    %v6342 = vsel %vm6262, %v6081, %v6326
    %v6343 = vsel %vm6263, %v6243, %v6327
    %v6344 = vsel %vm6264, %v6245, %v6328
    %v6345 = vld [vmem:[#allocation8] sm:$0xff]
    %v6346 = vld [vmem:[#allocation8 + $0x8] sm:$0xff]
    %v6349 = vlaneseq
    %v6350 = vshrl.u32 %v6349, 7
    %v6351 = vsub.s32 0, %v6350
    %v6352 = vrot.slane %v6345, %v6351
    %v6353 = vlaneseq
    %v6354 = vshrl.u32 %v6353, 7
    %v6355 = vsub.s32 1, %v6354
    %v6356 = vrot.slane %v6345, %v6355
    %v6357 = vlaneseq
    %v6358 = vshrl.u32 %v6357, 7
    %v6359 = vsub.s32 2, %v6358
    %v6360 = vrot.slane %v6345, %v6359
    %v6361 = vlaneseq
    %v6362 = vshrl.u32 %v6361, 7
    %v6363 = vsub.s32 3, %v6362
    %v6364 = vrot.slane %v6345, %v6363
    %v6365 = vlaneseq
    %v6366 = vshrl.u32 %v6365, 7
    %v6367 = vsub.s32 4, %v6366
    %v6368 = vrot.slane %v6345, %v6367
    %v6369 = vlaneseq
    %v6370 = vshrl.u32 %v6369, 7
    %v6371 = vsub.s32 5, %v6370
    %v6372 = vrot.slane %v6345, %v6371
    %v6373 = vlaneseq
    %v6374 = vshrl.u32 %v6373, 7
    %v6375 = vsub.s32 6, %v6374
    %v6376 = vrot.slane %v6345, %v6375
    %v6377 = vlaneseq
    %v6378 = vshrl.u32 %v6377, 7
    %v6379 = vsub.s32 7, %v6378
    %v6380 = vrot.slane %v6345, %v6379
    %v6381 = vlaneseq
    %v6382 = vshrl.u32 %v6381, 7
    %v6383 = vsub.s32 0, %v6382
    %v6384 = vrot.slane %v6346, %v6383
    %v6385 = vlaneseq
    %v6386 = vshrl.u32 %v6385, 7
    %v6387 = vsub.s32 1, %v6386
    %v6388 = vrot.slane %v6346, %v6387
    %v6389 = vlaneseq
    %v6390 = vshrl.u32 %v6389, 7
    %v6391 = vsub.s32 2, %v6390
    %v6392 = vrot.slane %v6346, %v6391
    %v6393 = vlaneseq
    %v6394 = vshrl.u32 %v6393, 7
    %v6395 = vsub.s32 3, %v6394
    %v6396 = vrot.slane %v6346, %v6395
    %v6397 = vlaneseq
    %v6398 = vshrl.u32 %v6397, 7
    %v6399 = vsub.s32 4, %v6398
    %v6400 = vrot.slane %v6346, %v6399
    %v6401 = vlaneseq
    %v6402 = vshrl.u32 %v6401, 7
    %v6403 = vsub.s32 5, %v6402
    %v6404 = vrot.slane %v6346, %v6403
    %v6405 = vlaneseq
    %v6406 = vshrl.u32 %v6405, 7
    %v6407 = vsub.s32 6, %v6406
    %v6408 = vrot.slane %v6346, %v6407
    %v6409 = vlaneseq
    %v6410 = vshrl.u32 %v6409, 7
    %v6411 = vsub.s32 7, %v6410
    %v6412 = vrot.slane %v6346, %v6411
    %v6429 = vmul.f32 %v6329, %v6352
    %v6430 = vmul.f32 %v6330, %v6356
    %v6431 = vmul.f32 %v6331, %v6360
    %v6432 = vmul.f32 %v6332, %v6364
    %v6433 = vmul.f32 %v6333, %v6368
    %v6434 = vmul.f32 %v6334, %v6372
    %v6435 = vmul.f32 %v6335, %v6376
    %v6436 = vmul.f32 %v6336, %v6380
    %v6437 = vmul.f32 %v6337, %v6384
    %v6438 = vmul.f32 %v6338, %v6388
    %v6439 = vmul.f32 %v6339, %v6392
    %v6440 = vmul.f32 %v6340, %v6396
    %v6441 = vmul.f32 %v6341, %v6400
    %v6442 = vmul.f32 %v6342, %v6404
    %v6443 = vmul.f32 %v6343, %v6408
    %v6444 = vmul.f32 %v6344, %v6412
    %v6445 = vld [vmem:[#allocation10] sm:$0xff]
    %v6446 = vld [vmem:[#allocation10 + $0x8] sm:$0xff]
    %v6449 = vlaneseq
    %v6450 = vshrl.u32 %v6449, 7
    %v6451 = vsub.s32 0, %v6450
    %v6452 = vrot.slane %v6445, %v6451
    %v6453 = vlaneseq
    %v6454 = vshrl.u32 %v6453, 7
    %v6455 = vsub.s32 1, %v6454
    %v6456 = vrot.slane %v6445, %v6455
    %v6457 = vlaneseq
    %v6458 = vshrl.u32 %v6457, 7
    %v6459 = vsub.s32 2, %v6458
    %v6460 = vrot.slane %v6445, %v6459
    %v6461 = vlaneseq
    %v6462 = vshrl.u32 %v6461, 7
    %v6463 = vsub.s32 3, %v6462
    %v6464 = vrot.slane %v6445, %v6463
    %v6465 = vlaneseq
    %v6466 = vshrl.u32 %v6465, 7
    %v6467 = vsub.s32 4, %v6466
    %v6468 = vrot.slane %v6445, %v6467
    %v6469 = vlaneseq
    %v6470 = vshrl.u32 %v6469, 7
    %v6471 = vsub.s32 5, %v6470
    %v6472 = vrot.slane %v6445, %v6471
    %v6473 = vlaneseq
    %v6474 = vshrl.u32 %v6473, 7
    %v6475 = vsub.s32 6, %v6474
    %v6476 = vrot.slane %v6445, %v6475
    %v6477 = vlaneseq
    %v6478 = vshrl.u32 %v6477, 7
    %v6479 = vsub.s32 7, %v6478
    %v6480 = vrot.slane %v6445, %v6479
    %v6481 = vlaneseq
    %v6482 = vshrl.u32 %v6481, 7
    %v6483 = vsub.s32 0, %v6482
    %v6484 = vrot.slane %v6446, %v6483
    %v6485 = vlaneseq
    %v6486 = vshrl.u32 %v6485, 7
    %v6487 = vsub.s32 1, %v6486
    %v6488 = vrot.slane %v6446, %v6487
    %v6489 = vlaneseq
    %v6490 = vshrl.u32 %v6489, 7
    %v6491 = vsub.s32 2, %v6490
    %v6492 = vrot.slane %v6446, %v6491
    %v6493 = vlaneseq
    %v6494 = vshrl.u32 %v6493, 7
    %v6495 = vsub.s32 3, %v6494
    %v6496 = vrot.slane %v6446, %v6495
    %v6497 = vlaneseq
    %v6498 = vshrl.u32 %v6497, 7
    %v6499 = vsub.s32 4, %v6498
    %v6500 = vrot.slane %v6446, %v6499
    %v6501 = vlaneseq
    %v6502 = vshrl.u32 %v6501, 7
    %v6503 = vsub.s32 5, %v6502
    %v6504 = vrot.slane %v6446, %v6503
    %v6505 = vlaneseq
    %v6506 = vshrl.u32 %v6505, 7
    %v6507 = vsub.s32 6, %v6506
    %v6508 = vrot.slane %v6446, %v6507
    %v6509 = vlaneseq
    %v6510 = vshrl.u32 %v6509, 7
    %v6511 = vsub.s32 7, %v6510
    %v6512 = vrot.slane %v6446, %v6511
    %v6529 = vadd.f32 %v6429, %v6452
    %v6530 = vadd.f32 %v6430, %v6456
    %v6531 = vadd.f32 %v6431, %v6460
    %v6532 = vadd.f32 %v6432, %v6464
    %v6533 = vadd.f32 %v6433, %v6468
    %v6534 = vadd.f32 %v6434, %v6472
    %v6535 = vadd.f32 %v6435, %v6476
    %v6536 = vadd.f32 %v6436, %v6480
    %v6537 = vadd.f32 %v6437, %v6484
    %v6538 = vadd.f32 %v6438, %v6488
    %v6539 = vadd.f32 %v6439, %v6492
    %v6540 = vadd.f32 %v6440, %v6496
    %v6541 = vadd.f32 %v6441, %v6500
    %v6542 = vadd.f32 %v6442, %v6504
    %v6543 = vadd.f32 %v6443, %v6508
    %v6544 = vadd.f32 %v6444, %v6512
    %v6545 = vmax.f32 %v6529, %v6533
    %v6546 = vmax.f32 %v6530, %v6534
    %v6547 = vmax.f32 %v6531, %v6535
    %v6548 = vmax.f32 %v6532, %v6536
    %v6549 = vmax.f32 %v6537, %v6541
    %v6550 = vmax.f32 %v6538, %v6542
    %v6551 = vmax.f32 %v6539, %v6543
    %v6552 = vmax.f32 %v6540, %v6544
    %v6553 = vmax.f32 %v6545, %v6549
    %v6554 = vmax.f32 %v6546, %v6550
    %v6555 = vmax.f32 %v6547, %v6551
    %v6556 = vmax.f32 %v6548, %v6552
    %v6557 = vpack.c.bf16 %v6553, %v6553
    %v6558 = vpack.c.bf16 %v6554, %v6554
    %v6559 = vpack.c.bf16 %v6555, %v6555
    %v6560 = vpack.c.bf16 %v6556, %v6556
    %v6561 = vld [vmem:[%s5] sm:$0xf]
    %v6562 = vld [vmem:[%s5 + $0x4] sm:$0xf]
    %v6563 = vld [vmem:[%s5 + $0x8] sm:$0xf]
    %v6564 = vld [vmem:[%s5 + $0xc] sm:$0xf]
    %v6565 = vld [vmem:[%s5 + $0x10] sm:$0xf]
    %v6566 = vld [vmem:[%s5 + $0x14] sm:$0xf]
    %v6567 = vld [vmem:[%s5 + $0x18] sm:$0xf]
    %v6568 = vld [vmem:[%s5 + $0x1c] sm:$0xf]
    %v6569 = vld [vmem:[%s5 + $0x20] sm:$0xf]
    %v6570 = vld [vmem:[%s5 + $0x24] sm:$0xf]
    %v6571 = vld [vmem:[%s5 + $0x28] sm:$0xf]
    %v6572 = vld [vmem:[%s5 + $0x2c] sm:$0xf]
    %v6573 = vld [vmem:[%s5 + $0x30] sm:$0xf]
    %v6574 = vld [vmem:[%s5 + $0x34] sm:$0xf]
    %v6575 = vld [vmem:[%s5 + $0x38] sm:$0xf]
    %v6576 = vld [vmem:[%s5 + $0x3c] sm:$0xf]
    %v6577 = vld [vmem:[%s5 + $0x40] sm:$0xf]
    %v6578 = vld [vmem:[%s5 + $0x44] sm:$0xf]
    %v6579 = vld [vmem:[%s5 + $0x48] sm:$0xf]
    %v6580 = vld [vmem:[%s5 + $0x4c] sm:$0xf]
    %v6581 = vld [vmem:[%s5 + $0x50] sm:$0xf]
    %v6582 = vld [vmem:[%s5 + $0x54] sm:$0xf]
    %v6583 = vld [vmem:[%s5 + $0x58] sm:$0xf]
    %v6584 = vld [vmem:[%s5 + $0x5c] sm:$0xf]
    %v6585 = vld [vmem:[%s5 + $0x60] sm:$0xf]
    %v6586 = vld [vmem:[%s5 + $0x64] sm:$0xf]
    %v6587 = vld [vmem:[%s5 + $0x68] sm:$0xf]
    %v6588 = vld [vmem:[%s5 + $0x6c] sm:$0xf]
    %v6589 = vld [vmem:[%s5 + $0x70] sm:$0xf]
    %v6590 = vld [vmem:[%s5 + $0x74] sm:$0xf]
    %v6591 = vld [vmem:[%s5 + $0x78] sm:$0xf]
    %v6592 = vld [vmem:[%s5 + $0x7c] sm:$0xf]
    %v6593 = vld [vmem:[%s5 + $0x80] sm:$0xf]
    %v6594 = vld [vmem:[%s5 + $0x84] sm:$0xf]
    %v6595 = vld [vmem:[%s5 + $0x88] sm:$0xf]
    %v6596 = vld [vmem:[%s5 + $0x8c] sm:$0xf]
    %v6597 = vld [vmem:[%s5 + $0x90] sm:$0xf]
    %v6598 = vld [vmem:[%s5 + $0x94] sm:$0xf]
    %v6599 = vld [vmem:[%s5 + $0x98] sm:$0xf]
    %v6600 = vld [vmem:[%s5 + $0x9c] sm:$0xf]
    %v6601 = vld [vmem:[%s5 + $0xa0] sm:$0xf]
    %v6602 = vld [vmem:[%s5 + $0xa4] sm:$0xf]
    %v6603 = vld [vmem:[%s5 + $0xa8] sm:$0xf]
    %v6604 = vld [vmem:[%s5 + $0xac] sm:$0xf]
    %v6605 = vld [vmem:[%s5 + $0xb0] sm:$0xf]
    %v6606 = vld [vmem:[%s5 + $0xb4] sm:$0xf]
    %v6607 = vld [vmem:[%s5 + $0xb8] sm:$0xf]
    %v6608 = vld [vmem:[%s5 + $0xbc] sm:$0xf]
    %v6609 = vld [vmem:[%s5 + $0xc0] sm:$0xf]
    %v6610 = vld [vmem:[%s5 + $0xc4] sm:$0xf]
    %v6611 = vld [vmem:[%s5 + $0xc8] sm:$0xf]
    %v6612 = vld [vmem:[%s5 + $0xcc] sm:$0xf]
    %v6613 = vld [vmem:[%s5 + $0xd0] sm:$0xf]
    %v6614 = vld [vmem:[%s5 + $0xd4] sm:$0xf]
    %v6615 = vld [vmem:[%s5 + $0xd8] sm:$0xf]
    %v6616 = vld [vmem:[%s5 + $0xdc] sm:$0xf]
    %v6617 = vld [vmem:[%s5 + $0xe0] sm:$0xf]
    %v6618 = vld [vmem:[%s5 + $0xe4] sm:$0xf]
    %v6619 = vld [vmem:[%s5 + $0xe8] sm:$0xf]
    %v6620 = vld [vmem:[%s5 + $0xec] sm:$0xf]
    %v6621 = vld [vmem:[%s5 + $0xf0] sm:$0xf]
    %v6622 = vld [vmem:[%s5 + $0xf4] sm:$0xf]
    %v6623 = vld [vmem:[%s5 + $0xf8] sm:$0xf]
    %v6624 = vld [vmem:[%s5 + $0xfc] sm:$0xf]
    %v6625 = vld [vmem:[#allocation11] sm:$0x1]
    %v6627 = vlaneseq
    %v6628 = vshrl.u32 %v6627, 7
    %v6629 = vsub.s32 0, %v6628
    %v6630 = vrot.slane %v6625, %v6629
    %v6696 = vunpack.c.l.b16 %v6561
    %v6697 = vunpack.c.l.b16 %v6562
    %v6698 = vunpack.c.l.b16 %v6563
    %v6699 = vunpack.c.l.b16 %v6564
    %v6700 = vunpack.c.l.b16 %v6565
    %v6701 = vunpack.c.l.b16 %v6566
    %v6702 = vunpack.c.l.b16 %v6567
    %v6703 = vunpack.c.l.b16 %v6568
    %v6704 = vunpack.c.l.b16 %v6569
    %v6705 = vunpack.c.l.b16 %v6570
    %v6706 = vunpack.c.l.b16 %v6571
    %v6707 = vunpack.c.l.b16 %v6572
    %v6708 = vunpack.c.l.b16 %v6573
    %v6709 = vunpack.c.l.b16 %v6574
    %v6710 = vunpack.c.l.b16 %v6575
    %v6711 = vunpack.c.l.b16 %v6576
    %v6712 = vunpack.c.l.b16 %v6577
    %v6713 = vunpack.c.l.b16 %v6578
    %v6714 = vunpack.c.l.b16 %v6579
    %v6715 = vunpack.c.l.b16 %v6580
    %v6716 = vunpack.c.l.b16 %v6581
    %v6717 = vunpack.c.l.b16 %v6582
    %v6718 = vunpack.c.l.b16 %v6583
    %v6719 = vunpack.c.l.b16 %v6584
    %v6720 = vunpack.c.l.b16 %v6585
    %v6721 = vunpack.c.l.b16 %v6586
    %v6722 = vunpack.c.l.b16 %v6587
    %v6723 = vunpack.c.l.b16 %v6588
    %v6724 = vunpack.c.l.b16 %v6589
    %v6725 = vunpack.c.l.b16 %v6590
    %v6726 = vunpack.c.l.b16 %v6591
    %v6727 = vunpack.c.l.b16 %v6592
    %v6728 = vunpack.c.l.b16 %v6593
    %v6729 = vunpack.c.l.b16 %v6594
    %v6730 = vunpack.c.l.b16 %v6595
    %v6731 = vunpack.c.l.b16 %v6596
    %v6732 = vunpack.c.l.b16 %v6597
    %v6733 = vunpack.c.l.b16 %v6598
    %v6734 = vunpack.c.l.b16 %v6599
    %v6735 = vunpack.c.l.b16 %v6600
    %v6736 = vunpack.c.l.b16 %v6601
    %v6737 = vunpack.c.l.b16 %v6602
    %v6738 = vunpack.c.l.b16 %v6603
    %v6739 = vunpack.c.l.b16 %v6604
    %v6740 = vunpack.c.l.b16 %v6605
    %v6741 = vunpack.c.l.b16 %v6606
    %v6742 = vunpack.c.l.b16 %v6607
    %v6743 = vunpack.c.l.b16 %v6608
    %v6744 = vunpack.c.l.b16 %v6609
    %v6745 = vunpack.c.l.b16 %v6610
    %v6746 = vunpack.c.l.b16 %v6611
    %v6747 = vunpack.c.l.b16 %v6612
    %v6748 = vunpack.c.l.b16 %v6613
    %v6749 = vunpack.c.l.b16 %v6614
    %v6750 = vunpack.c.l.b16 %v6615
    %v6751 = vunpack.c.l.b16 %v6616
    %v6752 = vunpack.c.l.b16 %v6617
    %v6753 = vunpack.c.l.b16 %v6618
    %v6754 = vunpack.c.l.b16 %v6619
    %v6755 = vunpack.c.l.b16 %v6620
    %v6756 = vunpack.c.l.b16 %v6621
    %v6757 = vunpack.c.l.b16 %v6622
    %v6758 = vunpack.c.l.b16 %v6623
    %v6759 = vunpack.c.l.b16 %v6624
    %v6760 = vpack.c.b16 %v6697, %v6696
    %v6761 = vpack.c.b16 %v6699, %v6698
    %v6762 = vpack.c.b16 %v6701, %v6700
    %v6763 = vpack.c.b16 %v6703, %v6702
    %v6764 = vpack.c.b16 %v6705, %v6704
    %v6765 = vpack.c.b16 %v6707, %v6706
    %v6766 = vpack.c.b16 %v6709, %v6708
    %v6767 = vpack.c.b16 %v6711, %v6710
    %v6768 = vpack.c.b16 %v6713, %v6712
    %v6769 = vpack.c.b16 %v6715, %v6714
    %v6770 = vpack.c.b16 %v6717, %v6716
    %v6771 = vpack.c.b16 %v6719, %v6718
    %v6772 = vpack.c.b16 %v6721, %v6720
    %v6773 = vpack.c.b16 %v6723, %v6722
    %v6774 = vpack.c.b16 %v6725, %v6724
    %v6775 = vpack.c.b16 %v6727, %v6726
    %v6776 = vpack.c.b16 %v6729, %v6728
    %v6777 = vpack.c.b16 %v6731, %v6730
    %v6778 = vpack.c.b16 %v6733, %v6732
    %v6779 = vpack.c.b16 %v6735, %v6734
    %v6780 = vpack.c.b16 %v6737, %v6736
    %v6781 = vpack.c.b16 %v6739, %v6738
    %v6782 = vpack.c.b16 %v6741, %v6740
    %v6783 = vpack.c.b16 %v6743, %v6742
    %v6784 = vpack.c.b16 %v6745, %v6744
    %v6785 = vpack.c.b16 %v6747, %v6746
    %v6786 = vpack.c.b16 %v6749, %v6748
    %v6787 = vpack.c.b16 %v6751, %v6750
    %v6788 = vpack.c.b16 %v6753, %v6752
    %v6789 = vpack.c.b16 %v6755, %v6754
    %v6790 = vpack.c.b16 %v6757, %v6756
    %v6791 = vpack.c.b16 %v6759, %v6758
    %6824 = vmatprep.subr.bf16.mxu0 0
    %6825 = vmatpush1.bf16.msra.mxu0 %v6760
    %6826 = vmatprep.subr.bf16.mxu0 0
    %6827 = vmatpush1.bf16.msra.mxu0 %v6761
    %6828 = vmatprep.subr.bf16.mxu0 0
    %6829 = vmatpush1.bf16.msra.mxu0 %v6762
    %6830 = vmatprep.subr.bf16.mxu0 0
    %6831 = vmatpush1.bf16.msra.mxu0 %v6763
    %6832 = vmatprep.subr.bf16.mxu0 0
    %6833 = vmatpush1.bf16.msra.mxu0 %v6764
    %6834 = vmatprep.subr.bf16.mxu0 0
    %6835 = vmatpush1.bf16.msra.mxu0 %v6765
    %6836 = vmatprep.subr.bf16.mxu0 0
    %6837 = vmatpush1.bf16.msra.mxu0 %v6766
    %6838 = vmatprep.subr.bf16.mxu0 0
    %6839 = vmatpush1.bf16.msra.mxu0 %v6767
    %6840 = vmatprep.subr.bf16.mxu0 0
    %6841 = vmatpush1.bf16.msra.mxu0 %v6768
    %6842 = vmatprep.subr.bf16.mxu0 0
    %6843 = vmatpush1.bf16.msra.mxu0 %v6769
    %6844 = vmatprep.subr.bf16.mxu0 0
    %6845 = vmatpush1.bf16.msra.mxu0 %v6770
    %6846 = vmatprep.subr.bf16.mxu0 0
    %6847 = vmatpush1.bf16.msra.mxu0 %v6771
    %6848 = vmatprep.subr.bf16.mxu0 0
    %6849 = vmatpush1.bf16.msra.mxu0 %v6772
    %6850 = vmatprep.subr.bf16.mxu0 0
    %6851 = vmatpush1.bf16.msra.mxu0 %v6773
    %6852 = vmatprep.subr.bf16.mxu0 0
    %6853 = vmatpush1.bf16.msra.mxu0 %v6774
    %6854 = vmatprep.subr.bf16.mxu0 0
    %6855 = vmatpush1.bf16.msra.mxu0 %v6775
    %6856 = vmatprep.mubr.bf16.mxu0 %v6558
    %6857 = vmatmul.mubr.bf16.gmra.mrb[0].mxu0 %v6557
    %v6858 = vpop.f32.mrb[0].mxu0
    %v6859 = vadd.f32 %v6630, %v6858
    %v6860 = vpop.f32.mrb[0].mxu0
    %v6861 = vpop.f32.mrb[0].mxu0
    %v6862 = vpop.f32.mrb[0].mxu0
    %6863 = vdwg.mxu0
    %6864 = vmatprep.subr.bf16.mxu0 0
    %6865 = vmatpush1.bf16.msra.mxu0 %v6776
    %6866 = vmatprep.subr.bf16.mxu0 0
    %6867 = vmatpush1.bf16.msra.mxu0 %v6777
    %6868 = vmatprep.subr.bf16.mxu0 0
    %6869 = vmatpush1.bf16.msra.mxu0 %v6778
    %6870 = vmatprep.subr.bf16.mxu0 0
    %6871 = vmatpush1.bf16.msra.mxu0 %v6779
    %6872 = vmatprep.subr.bf16.mxu0 0
    %6873 = vmatpush1.bf16.msra.mxu0 %v6780
    %6874 = vmatprep.subr.bf16.mxu0 0
    %6875 = vmatpush1.bf16.msra.mxu0 %v6781
    %6876 = vmatprep.subr.bf16.mxu0 0
    %6877 = vmatpush1.bf16.msra.mxu0 %v6782
    %6878 = vmatprep.subr.bf16.mxu0 0
    %6879 = vmatpush1.bf16.msra.mxu0 %v6783
    %6880 = vmatprep.subr.bf16.mxu0 0
    %6881 = vmatpush1.bf16.msra.mxu0 %v6784
    %6882 = vmatprep.subr.bf16.mxu0 0
    %6883 = vmatpush1.bf16.msra.mxu0 %v6785
    %6884 = vmatprep.subr.bf16.mxu0 0
    %6885 = vmatpush1.bf16.msra.mxu0 %v6786
    %6886 = vmatprep.subr.bf16.mxu0 0
    %6887 = vmatpush1.bf16.msra.mxu0 %v6787
    %6888 = vmatprep.subr.bf16.mxu0 0
    %6889 = vmatpush1.bf16.msra.mxu0 %v6788
    %6890 = vmatprep.subr.bf16.mxu0 0
    %6891 = vmatpush1.bf16.msra.mxu0 %v6789
    %6892 = vmatprep.subr.bf16.mxu0 0
    %6893 = vmatpush1.bf16.msra.mxu0 %v6790
    %6894 = vmatprep.subr.bf16.mxu0 0
    %6895 = vmatpush1.bf16.msra.mxu0 %v6791
    %6896 = vmatprep.mubr.bf16.mxu0 %v6560
    %6897 = vmatmul.mubr.bf16.gmra.mrb[0].mxu0 %v6559
    %v6898 = vpop.f32.mrb[0].mxu0
    %v6899 = vadd.f32 %v6859, %v6898
    %v6900 = vpop.f32.mrb[0].mxu0
    %v6901 = vpop.f32.mrb[0].mxu0
    %v6902 = vpop.f32.mrb[0].mxu0
    %6903 = vdwg.mxu0
    %vm6904 = vcmp.gt.f32.partialorder %v6899, 0.0
    %v6905 = vmin.f32 %v6899, 0.0
    %v6906 = vmul.f32 %v6905, 1.442695
    %v6907 = vpow.pop %v6906
    %v6908 = vsub.f32 %v6907, 1.0
    %v6909 = vsel %vm6904, %v6899, %v6908
    %v6910 = vpack.c.bf16 %v6909, %v6909
    %v6911 = vld [vmem:[#allocation13] sm:$0xf]
    %v6912 = vld [vmem:[#allocation13 + $0x4] sm:$0xf]
    %v6913 = vld [vmem:[#allocation13 + $0x8] sm:$0xf]
    %v6914 = vld [vmem:[#allocation13 + $0xc] sm:$0xf]
    %v6915 = vld [vmem:[#allocation13 + $0x10] sm:$0xf]
    %v6916 = vld [vmem:[#allocation13 + $0x14] sm:$0xf]
    %v6917 = vld [vmem:[#allocation13 + $0x18] sm:$0xf]
    %v6918 = vld [vmem:[#allocation13 + $0x1c] sm:$0xf]
    %v6919 = vld [vmem:[#allocation14] sm:$0x1]
    %v6921 = vlaneseq
    %v6922 = vshrl.u32 %v6921, 7
    %v6923 = vsub.s32 0, %v6922
    %v6924 = vrot.slane %v6919, %v6923
    %v6934 = vunpack.c.l.b16 %v6911
    %v6935 = vunpack.c.l.b16 %v6912
    %v6936 = vunpack.c.l.b16 %v6913
    %v6937 = vunpack.c.l.b16 %v6914
    %v6938 = vunpack.c.l.b16 %v6915
    %v6939 = vunpack.c.l.b16 %v6916
    %v6940 = vunpack.c.l.b16 %v6917
    %v6941 = vunpack.c.l.b16 %v6918
    %v6942 = vpack.c.b16 %v6935, %v6934
    %v6943 = vpack.c.b16 %v6937, %v6936
    %v6944 = vpack.c.b16 %v6939, %v6938
    %v6945 = vpack.c.b16 %v6941, %v6940
    %vm6950 = vcmask 523264
    %v6952 = vsel %vm6950, %v6910, 0
    %6954 = vmatprep.subr.bf16.mxu0 0
    %6955 = vmatpush1.bf16.msra.mxu0 %v6942
    %6956 = vmatprep.subr.bf16.mxu0 0
    %6957 = vmatpush1.bf16.msra.mxu0 %v6943
    %6958 = vmatprep.subr.bf16.mxu0 0
    %6959 = vmatpush1.bf16.msra.mxu0 %v6944
    %6960 = vmatprep.subr.bf16.mxu0 0
    %6961 = vmatpush1.bf16.msra.mxu0 %v6945
    %6962 = vmatprep.subr.bf16.mxu0 0
    %6963 = vmatpush1.bf16.msra.mxu0 0
    %6964 = vmatprep.subr.bf16.mxu0 0
    %6965 = vmatpush1.bf16.msra.mxu0 0
    %6966 = vmatprep.subr.bf16.mxu0 0
    %6967 = vmatpush1.bf16.msra.mxu0 0
    %6968 = vmatprep.subr.bf16.mxu0 0
    %6969 = vmatpush1.bf16.msra.mxu0 0
    %6970 = vmatprep.subr.bf16.mxu0 0
    %6971 = vmatpush1.bf16.msra.mxu0 0
    %6972 = vmatprep.subr.bf16.mxu0 0
    %6973 = vmatpush1.bf16.msra.mxu0 0
    %6974 = vmatprep.subr.bf16.mxu0 0
    %6975 = vmatpush1.bf16.msra.mxu0 0
    %6976 = vmatprep.subr.bf16.mxu0 0
    %6977 = vmatpush1.bf16.msra.mxu0 0
    %6978 = vmatprep.subr.bf16.mxu0 0
    %6979 = vmatpush1.bf16.msra.mxu0 0
    %6980 = vmatprep.subr.bf16.mxu0 0
    %6981 = vmatpush1.bf16.msra.mxu0 0
    %6982 = vmatprep.subr.bf16.mxu0 0
    %6983 = vmatpush1.bf16.msra.mxu0 0
    %6984 = vmatprep.subr.bf16.mxu0 0
    %6985 = vmatpush1.bf16.msra.mxu0 0
    %6986 = vmatprep.mubr.bf16.mxu0 0
    %6987 = vmatmul.mubr.bf16.gmra.mrb[0].mxu0 %v6952
    %v6988 = vpop.f32.mrb[0].mxu0
    %v6989 = vadd.f32 %v6924, %v6988
    %v6990 = vpop.f32.mrb[0].mxu0
    %v6991 = vpop.f32.mrb[0].mxu0
    %v6992 = vpop.f32.mrb[0].mxu0
    %6993 = vdwg.mxu0
    %v6994 = vxor.u32 %v6989, 2147483648
    %v6995 = vmul.f32 %v6994, 1.442695
    %v6996 = vpow.pop %v6995
    %v6997 = vadd.f32 %v6996, 1.0
    %v6998 = vrcp.pop %v6997
    %v6999 = vmul.f32 1.0, %v6998
    %7000 = vst [vmem:[#allocation16] sm:$0xff] %v6999
    // Predicated region
    $region70: #{tpu_custom_call.1} parent=1 // pred_check
      _
    $region71: #{tpu_custom_call.1} parent=1 // pred_check_branch
      %7002 = sbr.rel (0) target = $region73
    $region72: #{tpu_custom_call.1} parent=1 // pred_region
      %s7004 = ssub.s32 128, 128
      %7005 = vsyncadd [#allocation4], %s7004
      %s7007 = sshll.u32 [#allocation16], 4
      %s7008 = int_to_ptr.vmem [resolvable:$true] %s7007
      %7010 = dma.vmem_to_hbm [thread:$0]  %s7008, 128, %s9, [#allocation4]
    $region73: #{tpu_custom_call.1} parent=1 // pred_fallthru
      _
    // Predicated region
    $region74: #{tpu_custom_call.1} parent=1 // pred_check
      _
    $region75: #{tpu_custom_call.1} parent=1 // pred_check_branch
      %7012 = sbr.rel (0) target = $region77
    $region76: #{tpu_custom_call.1} parent=1 // pred_region
      %7013 = dma.done [#allocation4], 128
    $region77: #{tpu_custom_call.1} parent=1 // pred_fallthru
      _
    %7014 = vsyncpa [#allocation3], 1
    %7015 = vsyncpa [#allocation6], 1
    %7016 = vsyncpa [#allocation9], 1
    %7017 = vsyncpa [#allocation12], 1
    %7018 = vsyncpa [#allocation15], 1
    %7019 = vsyncpa [#allocation4], 1

</llo_original>
